<compile_context>
chip_gen: v7x
topology: tpu7x:2x2x1
jax: 0.10.0
libtpu: 0.0.40
codegen_flags: <defaults>
</compile_context>

<pallas_src>
import functools

import jax
import jax.numpy as jnp
from jax.experimental import pallas as pl
from jax.experimental.pallas import tpu as pltpu


# ------------------------------- helpers --------------------------------------

def _largest_divisor(n, cap):
    """Largest divisor of n that is <= cap."""
    for c in range(min(n, cap), 0, -1):
        if n % c == 0:
            return c
    return 1


def _pick_row_chunk(m, cap=512):
    """Largest multiple-of-8 divisor of m up to cap, else the full extent."""
    top = min(m, cap)
    for cand in range(top - top % 8, 0, -8):
        if m % cand == 0:
            return cand
    return m


# --------------------- hoisted input projection kernel ------------------------
# XW = x @ W_ih^T + (b_ih + b_hh): fully parallel, MXU-friendly (N = 4H lanes).

def _proj_kernel(x_ref, w_ref, b_ref, o_ref):
    o_ref[...] = (
        jnp.dot(x_ref[...], w_ref[...], preferred_element_type=jnp.float32)
        + b_ref[...]
    ).astype(o_ref.dtype)


def input_projection(x, wih_cat, bias):
    """x: (T, B, I) -> (T, B, 4H) = x @ W_ih^T + bias (f32)."""
    T, B, I = x.shape
    G = wih_cat.shape[-1]                      # 4H
    x2d = x.reshape(T * B, I)
    M = T * B
    TM = _pick_row_chunk(M)
    out = pl.pallas_call(
        _proj_kernel,
        out_shape=jax.ShapeDtypeStruct((M, G), jnp.float32),
        grid_spec=pltpu.PrefetchScalarGridSpec(
            num_scalar_prefetch=0,
            grid=(M // TM,),
            in_specs=[
                pl.BlockSpec((TM, I), lambda m: (m, 0)),
                pl.BlockSpec((I, G), lambda m: (0, 0)),
                pl.BlockSpec((1, G), lambda m: (0, 0)),
            ],
            out_specs=pl.BlockSpec((TM, G), lambda m: (m, 0)),
        ),
        compiler_params=pltpu.CompilerParams(
            dimension_semantics=("parallel",)),
    )(x2d, wih_cat, bias)
    return out.reshape(T, B, G)


# ------------------ recurrent LSTM kernel (fused weighted sum) -----------------
# Per time chunk: for each step  gates = XW[t] + h_{t-1} @ W_hh^T  (one matmul),
# gate nonlinearities, state update, and  acc[t] += nw_l * h_t  epilogue.

def _lstm_fused_kernel(nw_ref, xw_ref, whh_ref, acc_in_ref,
                       h_out_ref, acc_out_ref, h_st, c_st):
    @pl.when(pl.program_id(0) == 0)
    def _():
        h_st[...] = jnp.zeros_like(h_st)
        c_st[...] = jnp.zeros_like(c_st)

    nw_l = nw_ref[0]                 # scalar layer weight from SMEM
    whh = whh_ref[...]               # (H, 4H), hoisted out of the step loop
    H = h_st.shape[-1]
    TC = xw_ref.shape[0]

    # Static unrolled loop over the VMEM-resident time chunk.
    for i in range(TC):
        h_prev = h_st[...]
        gates = xw_ref[i] + jnp.dot(h_prev, whh,
                                    preferred_element_type=jnp.float32)  # (B, 4H)
        i_g = jax.nn.sigmoid(gates[:, 0:H])
        f_g = jax.nn.sigmoid(gates[:, H:2 * H])
        g_g = jnp.tanh(gates[:, 2 * H:3 * H])
        o_g = jax.nn.sigmoid(gates[:, 3 * H:])
        c_new = f_g * c_st[...] + i_g * g_g
        h_new = o_g * jnp.tanh(c_new)
        c_st[...] = c_new
        h_st[...] = h_new
        h_out_ref[i] = h_new.astype(h_out_ref.dtype)
        acc_out_ref[i] = acc_in_ref[i] + nw_l * h_new


def lstm_layer_fused(xw, whh_cat, acc, nw_l, *, time_chunk=8):
    """xw: (T, B, 4H) precomputed input projection, acc: (T, B, H) f32.

    Returns (h, acc_new) where h is the layer output and
    acc_new = acc + nw_l * h (fused, accumulator aliased in-place).
    """
    T, B, G = xw.shape
    H = whh_cat.shape[0]
    TC = _largest_divisor(T, time_chunk)
    h_out, acc_out = pl.pallas_call(
        _lstm_fused_kernel,
        out_shape=(jax.ShapeDtypeStruct((T, B, H), jnp.float32),
                   jax.ShapeDtypeStruct((T, B, H), jnp.float32)),
        grid_spec=pltpu.PrefetchScalarGridSpec(
            num_scalar_prefetch=0,
            grid=(T // TC,),
            in_specs=[
                pl.BlockSpec(memory_space=pltpu.MemorySpace.SMEM),   # nw_l (1,)
                pl.BlockSpec((TC, B, G), lambda t: (t, 0, 0)),       # XW chunk
                pl.BlockSpec((H, G), lambda t: (0, 0)),              # W_hh^T
                pl.BlockSpec((TC, B, H), lambda t: (t, 0, 0)),       # acc in
            ],
            out_specs=[
                pl.BlockSpec((TC, B, H), lambda t: (t, 0, 0)),       # h out
                pl.BlockSpec((TC, B, H), lambda t: (t, 0, 0)),       # acc out
            ],
            scratch_shapes=[pltpu.VMEM((B, H), jnp.float32),         # h state
                            pltpu.VMEM((B, H), jnp.float32)],        # c state
        ),
        input_output_aliases={3: 1},     # acc_in -> acc_out (in-place accumulate)
        compiler_params=pltpu.CompilerParams(
            dimension_semantics=("arbitrary",)),     # recurrence is sequential
    )(nw_l, xw, whh_cat, acc)
    return h_out, acc_out


# --------------------------------- ERNN glue ----------------------------------

def init_ernn_params(key, num_layers, input_dim, hidden_dim):
    """Parameter init mirroring nn.LSTM default U(-1/sqrt(H), 1/sqrt(H)).

    Weights are stored concatenated & transposed for right-multiplication:
      W_ih^T: (I, 4H), W_hh^T: (H, 4H), bias = b_ih + b_hh: (1, 4H),
    gate order (i, f, g, o) as in PyTorch.
    """
    H = hidden_dim
    bound = 1.0 / jnp.sqrt(jnp.float32(H))
    layers = []
    I = input_dim
    for _ in range(num_layers):
        key, k1, k2, k3, k4 = jax.random.split(key, 5)
        w_ih = jax.random.uniform(k1, (4 * H, I), jnp.float32, -bound, bound)
        w_hh = jax.random.uniform(k2, (4 * H, H), jnp.float32, -bound, bound)
        b_ih = jax.random.uniform(k3, (4 * H,), jnp.float32, -bound, bound)
        b_hh = jax.random.uniform(k4, (4 * H,), jnp.float32, -bound, bound)
        layers.append((jnp.transpose(w_ih),                # (I, 4H)
                       jnp.transpose(w_hh),                # (H, 4H)
                       (b_ih + b_hh).reshape(1, 4 * H)))   # (1, 4H)
        I = H
    return {
        "layers": layers,
        "gamma": jnp.array([1.0], jnp.float32),            # as in ERNN.__init__
        "weight_list": jnp.zeros((num_layers,), jnp.float32),
    }


@jax.jit
def ernn_forward(x, params):
    """x: (T, B, I) -> (T, B, H) = sum_l nw[l] * LSTM_l(...LSTM_1(x))."""
    T, B, _ = x.shape
    H = params["layers"][0][1].shape[0]
    nw = (params["gamma"][0] * jax.nn.softmax(params["weight_list"])
          ).astype(jnp.float32)
    acc = jnp.zeros((T, B, H), jnp.float32)
    h = x
    for l, (wih_cat, whh_cat, bias) in enumerate(params["layers"]):
        xw = input_projection(h, wih_cat, bias)            # parallel matmul
        h, acc = lstm_layer_fused(xw, whh_cat, acc, nw[l:l + 1])
    return acc.astype(x.dtype)


# ------------------------------ pure-JAX reference ----------------------------

def _lstm_ref(x, wih_cat, whh_cat, bias):
    T, B, _ = x.shape
    H = whh_cat.shape[0]
    hp = jax.lax.Precision.HIGHEST

    def step(carry, x_t):
        h, c = carry
        g = (jnp.dot(x_t, wih_cat, precision=hp)
             + jnp.dot(h, whh_cat, precision=hp) + bias[0])
        i = jax.nn.sigmoid(g[:, 0:H])
        f = jax.nn.sigmoid(g[:, H:2 * H])
        gg = jnp.tanh(g[:, 2 * H:3 * H])
        o = jax.nn.sigmoid(g[:, 3 * H:])
        c = f * c + i * gg
        h = o * jnp.tanh(c)
        return (h, c), h

    init = (jnp.zeros((B, H), jnp.float32), jnp.zeros((B, H), jnp.float32))
    _, hs = jax.lax.scan(step, init, x)
    return hs


def _ernn_ref(x, params):
    nw = params["gamma"][0] * jax.nn.softmax(params["weight_list"])
    out = 0.0
    h = x
    for ind, (wih_cat, whh_cat, bias) in enumerate(params["layers"]):
        h = _lstm_ref(h, wih_cat, whh_cat, bias)
        out = out + h * nw[ind]
    return out


# ------------------------------------ main -------------------------------------

if __name__ == "__main__":
    # seq_len, batch (sublane-friendly), hidden (4H = 128 lanes), layers
    T, B, H, L = 16, 8, 32, 2

    key = jax.random.PRNGKey(0)
    key, kx, kp = jax.random.split(key, 3)
    x = jax.random.normal(kx, (T, B, H), jnp.float32)
    params = init_ernn_params(kp, L, H, H)

    out = jax.block_until_ready(ernn_forward(x, params))
    ref = jax.block_until_ready(_ernn_ref(x, params))

    assert out.shape == (T, B, H), out.shape
    assert jnp.all(jnp.isfinite(out))
    err = float(jnp.max(jnp.abs(out - ref)))
    assert jnp.allclose(out, ref, atol=1e-3, rtol=1e-3), err

    print("KERNEL_OK")
</pallas_src>

<mosaic_0001>
module attributes {stable_mosaic.version = 11 : i64} {
  func.func @_proj_kernel(%arg0: i32, %arg1: memref<128x32xf32, #tpu.memory_space<vmem>>, %arg2: memref<32x128xf32, #tpu.memory_space<vmem>>, %arg3: memref<1x128xf32, #tpu.memory_space<vmem>>, %arg4: memref<128x128xf32, #tpu.memory_space<vmem>>) attributes {dimension_semantics = [#tpu.dimension_semantics<parallel>], iteration_bounds = array<i64: 1>, scalar_prefetch = 0 : i64, scratch_operands = 0 : i64, tpu.core_type = #tpu.core_type<tc>, window_params = [{transform_indices = @transform_0, window_bounds = array<i64: 128, 32>}, {pipeline_mode = #tpu.pipeline_mode<synchronous>, transform_indices = @transform_1, window_bounds = array<i64: 32, 128>}, {pipeline_mode = #tpu.pipeline_mode<synchronous>, transform_indices = @transform_2, window_bounds = array<i64: 1, 128>}, {transform_indices = @transform_3, window_bounds = array<i64: 128, 128>}]} {
    %c0 = arith.constant 0 : index
    %c0_0 = arith.constant 0 : index
    %0 = vector.load %arg1[%c0, %c0_0] : memref<128x32xf32, #tpu.memory_space<vmem>>, vector<128x32xf32>
    %c0_1 = arith.constant 0 : index
    %c0_2 = arith.constant 0 : index
    %1 = vector.load %arg2[%c0_1, %c0_2] : memref<32x128xf32, #tpu.memory_space<vmem>>, vector<32x128xf32>
    %cst = arith.constant dense<0.000000e+00> : vector<128x128xf32>
    %2 = tpu.matmul %0, %1, %cst {dimension_numbers = #tpu.dot_dimension_numbers<[1], [0], [0], [1], [0, 0, 1, 1], [], []>} : vector<128x32xf32>, vector<32x128xf32>, vector<128x128xf32> -> vector<128x128xf32>
    %c0_3 = arith.constant 0 : index
    %c0_4 = arith.constant 0 : index
    %3 = vector.load %arg3[%c0_3, %c0_4] : memref<1x128xf32, #tpu.memory_space<vmem>>, vector<1x128xf32>
    %4 = vector.broadcast %3 : vector<1x128xf32> to vector<128x128xf32>
    %5 = arith.addf %2, %4 : vector<128x128xf32>
    %c0_5 = arith.constant 0 : index
    %c0_6 = arith.constant 0 : index
    %6 = vector.load %arg4[%c0_5, %c0_6] : memref<128x128xf32, #tpu.memory_space<vmem>>, vector<128x128xf32>
    tpu.vector_store %arg4[%c0_5, %c0_6], %5 {strides = array<i32>} : memref<128x128xf32, #tpu.memory_space<vmem>>, vector<128x128xf32>,
    return
  }
  func.func @transform_0(%arg0: i32) -> (i32, i32) {
    %c0_i32 = arith.constant 0 : i32
    %c0_i32_0 = arith.constant 0 : i32
    return %arg0, %c0_i32 : i32, i32
  }
  func.func @transform_1(%arg0: i32) -> (i32, i32) {
    %c0_i32 = arith.constant 0 : i32
    %c0_i32_0 = arith.constant 0 : i32
    %c0_i32_1 = arith.constant 0 : i32
    return %c0_i32, %c0_i32_0 : i32, i32
  }
  func.func @transform_2(%arg0: i32) -> (i32, i32) {
    %c0_i32 = arith.constant 0 : i32
    %c0_i32_0 = arith.constant 0 : i32
    %c0_i32_1 = arith.constant 0 : i32
    return %c0_i32, %c0_i32_0 : i32, i32
  }
  func.func @transform_3(%arg0: i32) -> (i32, i32) {
    %c0_i32 = arith.constant 0 : i32
    %c0_i32_0 = arith.constant 0 : i32
    return %arg0, %c0_i32 : i32, i32
  }
}

module attributes {stable_mosaic.version = 11 : i64} {
  func.func @_proj_kernel(%arg0: i32, %arg1: memref<128x32xf32, #tpu.memory_space<vmem>>, %arg2: memref<32x128xf32, #tpu.memory_space<vmem>>, %arg3: memref<1x128xf32, #tpu.memory_space<vmem>>, %arg4: memref<128x128xf32, #tpu.memory_space<vmem>>) attributes {dimension_semantics = [#tpu.dimension_semantics<parallel>], iteration_bounds = array<i64: 1>, scalar_prefetch = 0 : i64, scratch_operands = 0 : i64, tpu.core_type = #tpu.core_type<tc>, window_params = [{transform_indices = @transform_0, window_bounds = array<i64: 128, 32>}, {pipeline_mode = #tpu.pipeline_mode<synchronous>, transform_indices = @transform_1, window_bounds = array<i64: 32, 128>}, {pipeline_mode = #tpu.pipeline_mode<synchronous>, transform_indices = @transform_2, window_bounds = array<i64: 1, 128>}, {transform_indices = @transform_3, window_bounds = array<i64: 128, 128>}]} {
    %c0 = arith.constant 0 : index
    %c0_0 = arith.constant 0 : index
    %0 = vector.load %arg1[%c0, %c0_0] : memref<128x32xf32, #tpu.memory_space<vmem>>, vector<128x32xf32>
    %c0_1 = arith.constant 0 : index
    %c0_2 = arith.constant 0 : index
    %1 = vector.load %arg2[%c0_1, %c0_2] : memref<32x128xf32, #tpu.memory_space<vmem>>, vector<32x128xf32>
    %cst = arith.constant dense<0.000000e+00> : vector<128x128xf32>
    %2 = tpu.matmul %0, %1, %cst {dimension_numbers = #tpu.dot_dimension_numbers<[1], [0], [0], [1], [0, 0, 1, 1], [], []>} : vector<128x32xf32>, vector<32x128xf32>, vector<128x128xf32> -> vector<128x128xf32>
    %c0_3 = arith.constant 0 : index
    %c0_4 = arith.constant 0 : index
    %3 = vector.load %arg3[%c0_3, %c0_4] : memref<1x128xf32, #tpu.memory_space<vmem>>, vector<1x128xf32>
    %4 = vector.broadcast %3 : vector<1x128xf32> to vector<128x128xf32>
    %5 = arith.addf %2, %4 : vector<128x128xf32>
    %c0_5 = arith.constant 0 : index
    %c0_6 = arith.constant 0 : index
    %6 = vector.load %arg4[%c0_5, %c0_6] : memref<128x128xf32, #tpu.memory_space<vmem>>, vector<128x128xf32>
    tpu.vector_store %arg4[%c0_5, %c0_6], %5 {strides = array<i32>} : memref<128x128xf32, #tpu.memory_space<vmem>>, vector<128x128xf32>,
    return
  }
  func.func @transform_0(%arg0: i32) -> (i32, i32) {
    %c0_i32 = arith.constant 0 : i32
    %c0_i32_0 = arith.constant 0 : i32
    return %arg0, %c0_i32 : i32, i32
  }
  func.func @transform_1(%arg0: i32) -> (i32, i32) {
    %c0_i32 = arith.constant 0 : i32
    %c0_i32_0 = arith.constant 0 : i32
    %c0_i32_1 = arith.constant 0 : i32
    return %c0_i32, %c0_i32_0 : i32, i32
  }
  func.func @transform_2(%arg0: i32) -> (i32, i32) {
    %c0_i32 = arith.constant 0 : i32
    %c0_i32_0 = arith.constant 0 : i32
    %c0_i32_1 = arith.constant 0 : i32
    return %c0_i32, %c0_i32_0 : i32, i32
  }
  func.func @transform_3(%arg0: i32) -> (i32, i32) {
    %c0_i32 = arith.constant 0 : i32
    %c0_i32_0 = arith.constant 0 : i32
    return %arg0, %c0_i32 : i32, i32
  }
}

module attributes {stable_mosaic.version = 11 : i64} {
  func.func @_lstm_fused_kernel(%arg0: i32, %arg1: memref<1xf32, #tpu.memory_space<smem>>, %arg2: memref<8x8x128xf32, #tpu.memory_space<vmem>>, %arg3: memref<32x128xf32, #tpu.memory_space<vmem>>, %arg4: memref<8x8x32xf32, #tpu.memory_space<vmem>>, %arg5: memref<8x8x32xf32, #tpu.memory_space<vmem>>, %arg6: memref<8x8x32xf32, #tpu.memory_space<vmem>>, %arg7: memref<8x32xf32, #tpu.memory_space<vmem>>, %arg8: memref<8x32xf32, #tpu.memory_space<vmem>>) attributes {dimension_semantics = [#tpu.dimension_semantics<arbitrary>], iteration_bounds = array<i64: 2>, scalar_prefetch = 0 : i64, scratch_operands = 2 : i64, tpu.core_type = #tpu.core_type<tc>, window_params = [{transform_indices = @transform_0, window_bounds = array<i64: 1>}, {transform_indices = @transform_1, window_bounds = array<i64: 8, 8, 128>}, {pipeline_mode = #tpu.pipeline_mode<synchronous>, transform_indices = @transform_2, window_bounds = array<i64: 32, 128>}, {transform_indices = @transform_3, window_bounds = array<i64: 8, 8, 32>}, {transform_indices = @transform_4, window_bounds = array<i64: 8, 8, 32>}, {transform_indices = @transform_5, window_bounds = array<i64: 8, 8, 32>}]} {
    %c0_i32 = arith.constant 0 : i32
    %0 = arith.cmpi eq, %arg0, %c0_i32 : i32
    %1 = arith.extui %0 : i1 to i32
    %c0_i32_0 = arith.constant 0 : i32
    %2 = arith.cmpi ne, %1, %c0_i32_0 : i32
    scf.if %2 {
      %cst_187 = arith.constant 0.000000e+00 : f32
      %357 = vector.broadcast %cst_187 : f32 to vector<8x32xf32>
      %c0_188 = arith.constant 0 : index
      %c0_189 = arith.constant 0 : index
      %358 = vector.load %arg7[%c0_188, %c0_189] : memref<8x32xf32, #tpu.memory_space<vmem>>, vector<8x32xf32>
      tpu.vector_store %arg7[%c0_188, %c0_189], %357 {strides = array<i32>} : memref<8x32xf32, #tpu.memory_space<vmem>>, vector<8x32xf32>,
      %cst_190 = arith.constant 0.000000e+00 : f32
      %359 = vector.broadcast %cst_190 : f32 to vector<8x32xf32>
      %c0_191 = arith.constant 0 : index
      %c0_192 = arith.constant 0 : index
      %360 = vector.load %arg8[%c0_191, %c0_192] : memref<8x32xf32, #tpu.memory_space<vmem>>, vector<8x32xf32>
      tpu.vector_store %arg8[%c0_191, %c0_192], %359 {strides = array<i32>} : memref<8x32xf32, #tpu.memory_space<vmem>>, vector<8x32xf32>,
    } else {
    }
    %c0 = arith.constant 0 : index
    %3 = memref.load %arg1[%c0] : memref<1xf32, #tpu.memory_space<smem>>
    %c0_1 = arith.constant 0 : index
    %c0_2 = arith.constant 0 : index
    %4 = vector.load %arg3[%c0_1, %c0_2] : memref<32x128xf32, #tpu.memory_space<vmem>>, vector<32x128xf32>
    %c0_3 = arith.constant 0 : index
    %c0_4 = arith.constant 0 : index
    %5 = vector.load %arg7[%c0_3, %c0_4] : memref<8x32xf32, #tpu.memory_space<vmem>>, vector<8x32xf32>
    %c0_5 = arith.constant 0 : index
    %c0_6 = arith.constant 0 : index
    %c0_7 = arith.constant 0 : index
    %6 = vector.load %arg2[%c0_5, %c0_6, %c0_7] : memref<8x8x128xf32, #tpu.memory_space<vmem>>, vector<1x8x128xf32>
    %7 = vector.shape_cast %6 : vector<1x8x128xf32> to vector<8x128xf32>
    %cst = arith.constant dense<0.000000e+00> : vector<8x128xf32>
    %8 = tpu.matmul %5, %4, %cst {dimension_numbers = #tpu.dot_dimension_numbers<[1], [0], [0], [1], [0, 0, 1, 1], [], []>} : vector<8x32xf32>, vector<32x128xf32>, vector<8x128xf32> -> vector<8x128xf32>
    %9 = arith.addf %7, %8 : vector<8x128xf32>
    %10 = vector.extract_strided_slice %9 {offsets = [0, 0], sizes = [8, 32], strides = [1, 1]} : vector<8x128xf32> to vector<8x32xf32>
    %11 = arith.negf %10 : vector<8x32xf32>
    %12 = math.exp %11 : vector<8x32xf32>
    %cst_8 = arith.constant 1.000000e+00 : f32
    %13 = vector.broadcast %cst_8 : f32 to vector<8x32xf32>
    %14 = arith.addf %13, %12 : vector<8x32xf32>
    %15 = arith.divf %13, %14 : vector<8x32xf32>
    %16 = vector.extract_strided_slice %9 {offsets = [0, 32], sizes = [8, 32], strides = [1, 1]} : vector<8x128xf32> to vector<8x32xf32>
    %17 = arith.negf %16 : vector<8x32xf32>
    %18 = math.exp %17 : vector<8x32xf32>
    %cst_9 = arith.constant 1.000000e+00 : f32
    %19 = vector.broadcast %cst_9 : f32 to vector<8x32xf32>
    %20 = arith.addf %19, %18 : vector<8x32xf32>
    %21 = arith.divf %19, %20 : vector<8x32xf32>
    %22 = vector.extract_strided_slice %9 {offsets = [0, 64], sizes = [8, 32], strides = [1, 1]} : vector<8x128xf32> to vector<8x32xf32>
    %23 = math.tanh %22 : vector<8x32xf32>
    %24 = vector.extract_strided_slice %9 {offsets = [0, 96], sizes = [8, 32], strides = [1, 1]} : vector<8x128xf32> to vector<8x32xf32>
    %25 = arith.negf %24 : vector<8x32xf32>
    %26 = math.exp %25 : vector<8x32xf32>
    %cst_10 = arith.constant 1.000000e+00 : f32
    %27 = vector.broadcast %cst_10 : f32 to vector<8x32xf32>
    %28 = arith.addf %27, %26 : vector<8x32xf32>
    %29 = arith.divf %27, %28 : vector<8x32xf32>
    %c0_11 = arith.constant 0 : index
    %c0_12 = arith.constant 0 : index
    %30 = vector.load %arg8[%c0_11, %c0_12] : memref<8x32xf32, #tpu.memory_space<vmem>>, vector<8x32xf32>
    %31 = arith.mulf %21, %30 : vector<8x32xf32>
    %32 = arith.mulf %15, %23 : vector<8x32xf32>
    %33 = arith.addf %31, %32 : vector<8x32xf32>
    %34 = math.tanh %33 : vector<8x32xf32>
    %35 = arith.mulf %29, %34 : vector<8x32xf32>
    %c0_13 = arith.constant 0 : index
    %c0_14 = arith.constant 0 : index
    %36 = vector.load %arg8[%c0_13, %c0_14] : memref<8x32xf32, #tpu.memory_space<vmem>>, vector<8x32xf32>
    tpu.vector_store %arg8[%c0_13, %c0_14], %33 {strides = array<i32>} : memref<8x32xf32, #tpu.memory_space<vmem>>, vector<8x32xf32>,
    %c0_15 = arith.constant 0 : index
    %c0_16 = arith.constant 0 : index
    %37 = vector.load %arg7[%c0_15, %c0_16] : memref<8x32xf32, #tpu.memory_space<vmem>>, vector<8x32xf32>
    tpu.vector_store %arg7[%c0_15, %c0_16], %35 {strides = array<i32>} : memref<8x32xf32, #tpu.memory_space<vmem>>, vector<8x32xf32>,
    %c0_17 = arith.constant 0 : index
    %c0_18 = arith.constant 0 : index
    %c0_19 = arith.constant 0 : index
    %38 = vector.load %arg5[%c0_17, %c0_18, %c0_19] : memref<8x8x32xf32, #tpu.memory_space<vmem>>, vector<1x8x32xf32>
    %39 = vector.shape_cast %38 : vector<1x8x32xf32> to vector<8x32xf32>
    %40 = vector.shape_cast %35 : vector<8x32xf32> to vector<1x8x32xf32>
    tpu.vector_store %arg5[%c0_17, %c0_18, %c0_19], %40 {strides = array<i32>} : memref<8x8x32xf32, #tpu.memory_space<vmem>>, vector<1x8x32xf32>,
    %c0_20 = arith.constant 0 : index
    %c0_21 = arith.constant 0 : index
    %c0_22 = arith.constant 0 : index
    %41 = vector.load %arg4[%c0_20, %c0_21, %c0_22] : memref<8x8x32xf32, #tpu.memory_space<vmem>>, vector<1x8x32xf32>
    %42 = vector.shape_cast %41 : vector<1x8x32xf32> to vector<8x32xf32>
    %43 = vector.broadcast %3 : f32 to vector<8x32xf32>
    %44 = arith.mulf %43, %35 : vector<8x32xf32>
    %45 = arith.addf %42, %44 : vector<8x32xf32>
    %c0_23 = arith.constant 0 : index
    %c0_24 = arith.constant 0 : index
    %c0_25 = arith.constant 0 : index
    %46 = vector.load %arg6[%c0_23, %c0_24, %c0_25] : memref<8x8x32xf32, #tpu.memory_space<vmem>>, vector<1x8x32xf32>
    %47 = vector.shape_cast %46 : vector<1x8x32xf32> to vector<8x32xf32>
    %48 = vector.shape_cast %45 : vector<8x32xf32> to vector<1x8x32xf32>
    tpu.vector_store %arg6[%c0_23, %c0_24, %c0_25], %48 {strides = array<i32>} : memref<8x8x32xf32, #tpu.memory_space<vmem>>, vector<1x8x32xf32>,
    %c0_26 = arith.constant 0 : index
    %c0_27 = arith.constant 0 : index
    %49 = vector.load %arg7[%c0_26, %c0_27] : memref<8x32xf32, #tpu.memory_space<vmem>>, vector<8x32xf32>
    %c1 = arith.constant 1 : index
    %c0_28 = arith.constant 0 : index
    %c0_29 = arith.constant 0 : index
    %50 = vector.load %arg2[%c1, %c0_28, %c0_29] : memref<8x8x128xf32, #tpu.memory_space<vmem>>, vector<1x8x128xf32>
    %51 = vector.shape_cast %50 : vector<1x8x128xf32> to vector<8x128xf32>
    %cst_30 = arith.constant dense<0.000000e+00> : vector<8x128xf32>
    %52 = tpu.matmul %49, %4, %cst_30 {dimension_numbers = #tpu.dot_dimension_numbers<[1], [0], [0], [1], [0, 0, 1, 1], [], []>} : vector<8x32xf32>, vector<32x128xf32>, vector<8x128xf32> -> vector<8x128xf32>
    %53 = arith.addf %51, %52 : vector<8x128xf32>
    %54 = vector.extract_strided_slice %53 {offsets = [0, 0], sizes = [8, 32], strides = [1, 1]} : vector<8x128xf32> to vector<8x32xf32>
    %55 = arith.negf %54 : vector<8x32xf32>
    %56 = math.exp %55 : vector<8x32xf32>
    %cst_31 = arith.constant 1.000000e+00 : f32
    %57 = vector.broadcast %cst_31 : f32 to vector<8x32xf32>
    %58 = arith.addf %57, %56 : vector<8x32xf32>
    %59 = arith.divf %57, %58 : vector<8x32xf32>
    %60 = vector.extract_strided_slice %53 {offsets = [0, 32], sizes = [8, 32], strides = [1, 1]} : vector<8x128xf32> to vector<8x32xf32>
    %61 = arith.negf %60 : vector<8x32xf32>
    %62 = math.exp %61 : vector<8x32xf32>
    %cst_32 = arith.constant 1.000000e+00 : f32
    %63 = vector.broadcast %cst_32 : f32 to vector<8x32xf32>
    %64 = arith.addf %63, %62 : vector<8x32xf32>
    %65 = arith.divf %63, %64 : vector<8x32xf32>
    %66 = vector.extract_strided_slice %53 {offsets = [0, 64], sizes = [8, 32], strides = [1, 1]} : vector<8x128xf32> to vector<8x32xf32>
    %67 = math.tanh %66 : vector<8x32xf32>
    %68 = vector.extract_strided_slice %53 {offsets = [0, 96], sizes = [8, 32], strides = [1, 1]} : vector<8x128xf32> to vector<8x32xf32>
    %69 = arith.negf %68 : vector<8x32xf32>
    %70 = math.exp %69 : vector<8x32xf32>
    %cst_33 = arith.constant 1.000000e+00 : f32
    %71 = vector.broadcast %cst_33 : f32 to vector<8x32xf32>
    %72 = arith.addf %71, %70 : vector<8x32xf32>
    %73 = arith.divf %71, %72 : vector<8x32xf32>
    %c0_34 = arith.constant 0 : index
    %c0_35 = arith.constant 0 : index
    %74 = vector.load %arg8[%c0_34, %c0_35] : memref<8x32xf32, #tpu.memory_space<vmem>>, vector<8x32xf32>
    %75 = arith.mulf %65, %74 : vector<8x32xf32>
    %76 = arith.mulf %59, %67 : vector<8x32xf32>
    %77 = arith.addf %75, %76 : vector<8x32xf32>
    %78 = math.tanh %77 : vector<8x32xf32>
    %79 = arith.mulf %73, %78 : vector<8x32xf32>
    %c0_36 = arith.constant 0 : index
    %c0_37 = arith.constant 0 : index
    %80 = vector.load %arg8[%c0_36, %c0_37] : memref<8x32xf32, #tpu.memory_space<vmem>>, vector<8x32xf32>
    tpu.vector_store %arg8[%c0_36, %c0_37], %77 {strides = array<i32>} : memref<8x32xf32, #tpu.memory_space<vmem>>, vector<8x32xf32>,
    %c0_38 = arith.constant 0 : index
    %c0_39 = arith.constant 0 : index
    %81 = vector.load %arg7[%c0_38, %c0_39] : memref<8x32xf32, #tpu.memory_space<vmem>>, vector<8x32xf32>
    tpu.vector_store %arg7[%c0_38, %c0_39], %79 {strides = array<i32>} : memref<8x32xf32, #tpu.memory_space<vmem>>, vector<8x32xf32>,
    %c1_40 = arith.constant 1 : index
    %c0_41 = arith.constant 0 : index
    %c0_42 = arith.constant 0 : index
    %82 = vector.load %arg5[%c1_40, %c0_41, %c0_42] : memref<8x8x32xf32, #tpu.memory_space<vmem>>, vector<1x8x32xf32>
    %83 = vector.shape_cast %82 : vector<1x8x32xf32> to vector<8x32xf32>
    %84 = vector.shape_cast %79 : vector<8x32xf32> to vector<1x8x32xf32>
    tpu.vector_store %arg5[%c1_40, %c0_41, %c0_42], %84 {strides = array<i32>} : memref<8x8x32xf32, #tpu.memory_space<vmem>>, vector<1x8x32xf32>,
    %c1_43 = arith.constant 1 : index
    %c0_44 = arith.constant 0 : index
    %c0_45 = arith.constant 0 : index
    %85 = vector.load %arg4[%c1_43, %c0_44, %c0_45] : memref<8x8x32xf32, #tpu.memory_space<vmem>>, vector<1x8x32xf32>
    %86 = vector.shape_cast %85 : vector<1x8x32xf32> to vector<8x32xf32>
    %87 = vector.broadcast %3 : f32 to vector<8x32xf32>
    %88 = arith.mulf %87, %79 : vector<8x32xf32>
    %89 = arith.addf %86, %88 : vector<8x32xf32>
    %c1_46 = arith.constant 1 : index
    %c0_47 = arith.constant 0 : index
    %c0_48 = arith.constant 0 : index
    %90 = vector.load %arg6[%c1_46, %c0_47, %c0_48] : memref<8x8x32xf32, #tpu.memory_space<vmem>>, vector<1x8x32xf32>
    %91 = vector.shape_cast %90 : vector<1x8x32xf32> to vector<8x32xf32>
    %92 = vector.shape_cast %89 : vector<8x32xf32> to vector<1x8x32xf32>
    tpu.vector_store %arg6[%c1_46, %c0_47, %c0_48], %92 {strides = array<i32>} : memref<8x8x32xf32, #tpu.memory_space<vmem>>, vector<1x8x32xf32>,
    %c0_49 = arith.constant 0 : index
    %c0_50 = arith.constant 0 : index
    %93 = vector.load %arg7[%c0_49, %c0_50] : memref<8x32xf32, #tpu.memory_space<vmem>>, vector<8x32xf32>
    %c2 = arith.constant 2 : index
    %c0_51 = arith.constant 0 : index
    %c0_52 = arith.constant 0 : index
    %94 = vector.load %arg2[%c2, %c0_51, %c0_52] : memref<8x8x128xf32, #tpu.memory_space<vmem>>, vector<1x8x128xf32>
    %95 = vector.shape_cast %94 : vector<1x8x128xf32> to vector<8x128xf32>
    %cst_53 = arith.constant dense<0.000000e+00> : vector<8x128xf32>
    %96 = tpu.matmul %93, %4, %cst_53 {dimension_numbers = #tpu.dot_dimension_numbers<[1], [0], [0], [1], [0, 0, 1, 1], [], []>} : vector<8x32xf32>, vector<32x128xf32>, vector<8x128xf32> -> vector<8x128xf32>
    %97 = arith.addf %95, %96 : vector<8x128xf32>
    %98 = vector.extract_strided_slice %97 {offsets = [0, 0], sizes = [8, 32], strides = [1, 1]} : vector<8x128xf32> to vector<8x32xf32>
    %99 = arith.negf %98 : vector<8x32xf32>
    %100 = math.exp %99 : vector<8x32xf32>
    %cst_54 = arith.constant 1.000000e+00 : f32
    %101 = vector.broadcast %cst_54 : f32 to vector<8x32xf32>
    %102 = arith.addf %101, %100 : vector<8x32xf32>
    %103 = arith.divf %101, %102 : vector<8x32xf32>
    %104 = vector.extract_strided_slice %97 {offsets = [0, 32], sizes = [8, 32], strides = [1, 1]} : vector<8x128xf32> to vector<8x32xf32>
    %105 = arith.negf %104 : vector<8x32xf32>
    %106 = math.exp %105 : vector<8x32xf32>
    %cst_55 = arith.constant 1.000000e+00 : f32
    %107 = vector.broadcast %cst_55 : f32 to vector<8x32xf32>
    %108 = arith.addf %107, %106 : vector<8x32xf32>
    %109 = arith.divf %107, %108 : vector<8x32xf32>
    %110 = vector.extract_strided_slice %97 {offsets = [0, 64], sizes = [8, 32], strides = [1, 1]} : vector<8x128xf32> to vector<8x32xf32>
    %111 = math.tanh %110 : vector<8x32xf32>
    %112 = vector.extract_strided_slice %97 {offsets = [0, 96], sizes = [8, 32], strides = [1, 1]} : vector<8x128xf32> to vector<8x32xf32>
    %113 = arith.negf %112 : vector<8x32xf32>
    %114 = math.exp %113 : vector<8x32xf32>
    %cst_56 = arith.constant 1.000000e+00 : f32
    %115 = vector.broadcast %cst_56 : f32 to vector<8x32xf32>
    %116 = arith.addf %115, %114 : vector<8x32xf32>
    %117 = arith.divf %115, %116 : vector<8x32xf32>
    %c0_57 = arith.constant 0 : index
    %c0_58 = arith.constant 0 : index
    %118 = vector.load %arg8[%c0_57, %c0_58] : memref<8x32xf32, #tpu.memory_space<vmem>>, vector<8x32xf32>
    %119 = arith.mulf %109, %118 : vector<8x32xf32>
    %120 = arith.mulf %103, %111 : vector<8x32xf32>
    %121 = arith.addf %119, %120 : vector<8x32xf32>
    %122 = math.tanh %121 : vector<8x32xf32>
    %123 = arith.mulf %117, %122 : vector<8x32xf32>
    %c0_59 = arith.constant 0 : index
    %c0_60 = arith.constant 0 : index
    %124 = vector.load %arg8[%c0_59, %c0_60] : memref<8x32xf32, #tpu.memory_space<vmem>>, vector<8x32xf32>
    tpu.vector_store %arg8[%c0_59, %c0_60], %121 {strides = array<i32>} : memref<8x32xf32, #tpu.memory_space<vmem>>, vector<8x32xf32>,
    %c0_61 = arith.constant 0 : index
    %c0_62 = arith.constant 0 : index
    %125 = vector.load %arg7[%c0_61, %c0_62] : memref<8x32xf32, #tpu.memory_space<vmem>>, vector<8x32xf32>
    tpu.vector_store %arg7[%c0_61, %c0_62], %123 {strides = array<i32>} : memref<8x32xf32, #tpu.memory_space<vmem>>, vector<8x32xf32>,
    %c2_63 = arith.constant 2 : index
    %c0_64 = arith.constant 0 : index
    %c0_65 = arith.constant 0 : index
    %126 = vector.load %arg5[%c2_63, %c0_64, %c0_65] : memref<8x8x32xf32, #tpu.memory_space<vmem>>, vector<1x8x32xf32>
    %127 = vector.shape_cast %126 : vector<1x8x32xf32> to vector<8x32xf32>
    %128 = vector.shape_cast %123 : vector<8x32xf32> to vector<1x8x32xf32>
    tpu.vector_store %arg5[%c2_63, %c0_64, %c0_65], %128 {strides = array<i32>} : memref<8x8x32xf32, #tpu.memory_space<vmem>>, vector<1x8x32xf32>,
    %c2_66 = arith.constant 2 : index
    %c0_67 = arith.constant 0 : index
    %c0_68 = arith.constant 0 : index
    %129 = vector.load %arg4[%c2_66, %c0_67, %c0_68] : memref<8x8x32xf32, #tpu.memory_space<vmem>>, vector<1x8x32xf32>
    %130 = vector.shape_cast %129 : vector<1x8x32xf32> to vector<8x32xf32>
    %131 = vector.broadcast %3 : f32 to vector<8x32xf32>
    %132 = arith.mulf %131, %123 : vector<8x32xf32>
    %133 = arith.addf %130, %132 : vector<8x32xf32>
    %c2_69 = arith.constant 2 : index
    %c0_70 = arith.constant 0 : index
    %c0_71 = arith.constant 0 : index
    %134 = vector.load %arg6[%c2_69, %c0_70, %c0_71] : memref<8x8x32xf32, #tpu.memory_space<vmem>>, vector<1x8x32xf32>
    %135 = vector.shape_cast %134 : vector<1x8x32xf32> to vector<8x32xf32>
    %136 = vector.shape_cast %133 : vector<8x32xf32> to vector<1x8x32xf32>
    tpu.vector_store %arg6[%c2_69, %c0_70, %c0_71], %136 {strides = array<i32>} : memref<8x8x32xf32, #tpu.memory_space<vmem>>, vector<1x8x32xf32>,
    %c0_72 = arith.constant 0 : index
    %c0_73 = arith.constant 0 : index
    %137 = vector.load %arg7[%c0_72, %c0_73] : memref<8x32xf32, #tpu.memory_space<vmem>>, vector<8x32xf32>
    %c3 = arith.constant 3 : index
    %c0_74 = arith.constant 0 : index
    %c0_75 = arith.constant 0 : index
    %138 = vector.load %arg2[%c3, %c0_74, %c0_75] : memref<8x8x128xf32, #tpu.memory_space<vmem>>, vector<1x8x128xf32>
    %139 = vector.shape_cast %138 : vector<1x8x128xf32> to vector<8x128xf32>
    %cst_76 = arith.constant dense<0.000000e+00> : vector<8x128xf32>
    %140 = tpu.matmul %137, %4, %cst_76 {dimension_numbers = #tpu.dot_dimension_numbers<[1], [0], [0], [1], [0, 0, 1, 1], [], []>} : vector<8x32xf32>, vector<32x128xf32>, vector<8x128xf32> -> vector<8x128xf32>
    %141 = arith.addf %139, %140 : vector<8x128xf32>
    %142 = vector.extract_strided_slice %141 {offsets = [0, 0], sizes = [8, 32], strides = [1, 1]} : vector<8x128xf32> to vector<8x32xf32>
    %143 = arith.negf %142 : vector<8x32xf32>
    %144 = math.exp %143 : vector<8x32xf32>
    %cst_77 = arith.constant 1.000000e+00 : f32
    %145 = vector.broadcast %cst_77 : f32 to vector<8x32xf32>
    %146 = arith.addf %145, %144 : vector<8x32xf32>
    %147 = arith.divf %145, %146 : vector<8x32xf32>
    %148 = vector.extract_strided_slice %141 {offsets = [0, 32], sizes = [8, 32], strides = [1, 1]} : vector<8x128xf32> to vector<8x32xf32>
    %149 = arith.negf %148 : vector<8x32xf32>
    %150 = math.exp %149 : vector<8x32xf32>
    %cst_78 = arith.constant 1.000000e+00 : f32
    %151 = vector.broadcast %cst_78 : f32 to vector<8x32xf32>
    %152 = arith.addf %151, %150 : vector<8x32xf32>
    %153 = arith.divf %151, %152 : vector<8x32xf32>
    %154 = vector.extract_strided_slice %141 {offsets = [0, 64], sizes = [8, 32], strides = [1, 1]} : vector<8x128xf32> to vector<8x32xf32>
    %155 = math.tanh %154 : vector<8x32xf32>
    %156 = vector.extract_strided_slice %141 {offsets = [0, 96], sizes = [8, 32], strides = [1, 1]} : vector<8x128xf32> to vector<8x32xf32>
    %157 = arith.negf %156 : vector<8x32xf32>
    %158 = math.exp %157 : vector<8x32xf32>
    %cst_79 = arith.constant 1.000000e+00 : f32
    %159 = vector.broadcast %cst_79 : f32 to vector<8x32xf32>
    %160 = arith.addf %159, %158 : vector<8x32xf32>
    %161 = arith.divf %159, %160 : vector<8x32xf32>
    %c0_80 = arith.constant 0 : index
    %c0_81 = arith.constant 0 : index
    %162 = vector.load %arg8[%c0_80, %c0_81] : memref<8x32xf32, #tpu.memory_space<vmem>>, vector<8x32xf32>
    %163 = arith.mulf %153, %162 : vector<8x32xf32>
    %164 = arith.mulf %147, %155 : vector<8x32xf32>
    %165 = arith.addf %163, %164 : vector<8x32xf32>
    %166 = math.tanh %165 : vector<8x32xf32>
    %167 = arith.mulf %161, %166 : vector<8x32xf32>
    %c0_82 = arith.constant 0 : index
    %c0_83 = arith.constant 0 : index
    %168 = vector.load %arg8[%c0_82, %c0_83] : memref<8x32xf32, #tpu.memory_space<vmem>>, vector<8x32xf32>
    tpu.vector_store %arg8[%c0_82, %c0_83], %165 {strides = array<i32>} : memref<8x32xf32, #tpu.memory_space<vmem>>, vector<8x32xf32>,
    %c0_84 = arith.constant 0 : index
    %c0_85 = arith.constant 0 : index
    %169 = vector.load %arg7[%c0_84, %c0_85] : memref<8x32xf32, #tpu.memory_space<vmem>>, vector<8x32xf32>
    tpu.vector_store %arg7[%c0_84, %c0_85], %167 {strides = array<i32>} : memref<8x32xf32, #tpu.memory_space<vmem>>, vector<8x32xf32>,
    %c3_86 = arith.constant 3 : index
    %c0_87 = arith.constant 0 : index
    %c0_88 = arith.constant 0 : index
    %170 = vector.load %arg5[%c3_86, %c0_87, %c0_88] : memref<8x8x32xf32, #tpu.memory_space<vmem>>, vector<1x8x32xf32>
    %171 = vector.shape_cast %170 : vector<1x8x32xf32> to vector<8x32xf32>
    %172 = vector.shape_cast %167 : vector<8x32xf32> to vector<1x8x32xf32>
    tpu.vector_store %arg5[%c3_86, %c0_87, %c0_88], %172 {strides = array<i32>} : memref<8x8x32xf32, #tpu.memory_space<vmem>>, vector<1x8x32xf32>,
    %c3_89 = arith.constant 3 : index
    %c0_90 = arith.constant 0 : index
    %c0_91 = arith.constant 0 : index
    %173 = vector.load %arg4[%c3_89, %c0_90, %c0_91] : memref<8x8x32xf32, #tpu.memory_space<vmem>>, vector<1x8x32xf32>
    %174 = vector.shape_cast %173 : vector<1x8x32xf32> to vector<8x32xf32>
    %175 = vector.broadcast %3 : f32 to vector<8x32xf32>
    %176 = arith.mulf %175, %167 : vector<8x32xf32>
    %177 = arith.addf %174, %176 : vector<8x32xf32>
    %c3_92 = arith.constant 3 : index
    %c0_93 = arith.constant 0 : index
    %c0_94 = arith.constant 0 : index
    %178 = vector.load %arg6[%c3_92, %c0_93, %c0_94] : memref<8x8x32xf32, #tpu.memory_space<vmem>>, vector<1x8x32xf32>
    %179 = vector.shape_cast %178 : vector<1x8x32xf32> to vector<8x32xf32>
    %180 = vector.shape_cast %177 : vector<8x32xf32> to vector<1x8x32xf32>
    tpu.vector_store %arg6[%c3_92, %c0_93, %c0_94], %180 {strides = array<i32>} : memref<8x8x32xf32, #tpu.memory_space<vmem>>, vector<1x8x32xf32>,
    %c0_95 = arith.constant 0 : index
    %c0_96 = arith.constant 0 : index
    %181 = vector.load %arg7[%c0_95, %c0_96] : memref<8x32xf32, #tpu.memory_space<vmem>>, vector<8x32xf32>
    %c4 = arith.constant 4 : index
    %c0_97 = arith.constant 0 : index
    %c0_98 = arith.constant 0 : index
    %182 = vector.load %arg2[%c4, %c0_97, %c0_98] : memref<8x8x128xf32, #tpu.memory_space<vmem>>, vector<1x8x128xf32>
    %183 = vector.shape_cast %182 : vector<1x8x128xf32> to vector<8x128xf32>
    %cst_99 = arith.constant dense<0.000000e+00> : vector<8x128xf32>
    %184 = tpu.matmul %181, %4, %cst_99 {dimension_numbers = #tpu.dot_dimension_numbers<[1], [0], [0], [1], [0, 0, 1, 1], [], []>} : vector<8x32xf32>, vector<32x128xf32>, vector<8x128xf32> -> vector<8x128xf32>
    %185 = arith.addf %183, %184 : vector<8x128xf32>
    %186 = vector.extract_strided_slice %185 {offsets = [0, 0], sizes = [8, 32], strides = [1, 1]} : vector<8x128xf32> to vector<8x32xf32>
    %187 = arith.negf %186 : vector<8x32xf32>
    %188 = math.exp %187 : vector<8x32xf32>
    %cst_100 = arith.constant 1.000000e+00 : f32
    %189 = vector.broadcast %cst_100 : f32 to vector<8x32xf32>
    %190 = arith.addf %189, %188 : vector<8x32xf32>
    %191 = arith.divf %189, %190 : vector<8x32xf32>
    %192 = vector.extract_strided_slice %185 {offsets = [0, 32], sizes = [8, 32], strides = [1, 1]} : vector<8x128xf32> to vector<8x32xf32>
    %193 = arith.negf %192 : vector<8x32xf32>
    %194 = math.exp %193 : vector<8x32xf32>
    %cst_101 = arith.constant 1.000000e+00 : f32
    %195 = vector.broadcast %cst_101 : f32 to vector<8x32xf32>
    %196 = arith.addf %195, %194 : vector<8x32xf32>
    %197 = arith.divf %195, %196 : vector<8x32xf32>
    %198 = vector.extract_strided_slice %185 {offsets = [0, 64], sizes = [8, 32], strides = [1, 1]} : vector<8x128xf32> to vector<8x32xf32>
    %199 = math.tanh %198 : vector<8x32xf32>
    %200 = vector.extract_strided_slice %185 {offsets = [0, 96], sizes = [8, 32], strides = [1, 1]} : vector<8x128xf32> to vector<8x32xf32>
    %201 = arith.negf %200 : vector<8x32xf32>
    %202 = math.exp %201 : vector<8x32xf32>
    %cst_102 = arith.constant 1.000000e+00 : f32
    %203 = vector.broadcast %cst_102 : f32 to vector<8x32xf32>
    %204 = arith.addf %203, %202 : vector<8x32xf32>
    %205 = arith.divf %203, %204 : vector<8x32xf32>
    %c0_103 = arith.constant 0 : index
    %c0_104 = arith.constant 0 : index
    %206 = vector.load %arg8[%c0_103, %c0_104] : memref<8x32xf32, #tpu.memory_space<vmem>>, vector<8x32xf32>
    %207 = arith.mulf %197, %206 : vector<8x32xf32>
    %208 = arith.mulf %191, %199 : vector<8x32xf32>
    %209 = arith.addf %207, %208 : vector<8x32xf32>
    %210 = math.tanh %209 : vector<8x32xf32>
    %211 = arith.mulf %205, %210 : vector<8x32xf32>
    %c0_105 = arith.constant 0 : index
    %c0_106 = arith.constant 0 : index
    %212 = vector.load %arg8[%c0_105, %c0_106] : memref<8x32xf32, #tpu.memory_space<vmem>>, vector<8x32xf32>
    tpu.vector_store %arg8[%c0_105, %c0_106], %209 {strides = array<i32>} : memref<8x32xf32, #tpu.memory_space<vmem>>, vector<8x32xf32>,
    %c0_107 = arith.constant 0 : index
    %c0_108 = arith.constant 0 : index
    %213 = vector.load %arg7[%c0_107, %c0_108] : memref<8x32xf32, #tpu.memory_space<vmem>>, vector<8x32xf32>
    tpu.vector_store %arg7[%c0_107, %c0_108], %211 {strides = array<i32>} : memref<8x32xf32, #tpu.memory_space<vmem>>, vector<8x32xf32>,
    %c4_109 = arith.constant 4 : index
    %c0_110 = arith.constant 0 : index
    %c0_111 = arith.constant 0 : index
    %214 = vector.load %arg5[%c4_109, %c0_110, %c0_111] : memref<8x8x32xf32, #tpu.memory_space<vmem>>, vector<1x8x32xf32>
    %215 = vector.shape_cast %214 : vector<1x8x32xf32> to vector<8x32xf32>
    %216 = vector.shape_cast %211 : vector<8x32xf32> to vector<1x8x32xf32>
    tpu.vector_store %arg5[%c4_109, %c0_110, %c0_111], %216 {strides = array<i32>} : memref<8x8x32xf32, #tpu.memory_space<vmem>>, vector<1x8x32xf32>,
    %c4_112 = arith.constant 4 : index
    %c0_113 = arith.constant 0 : index
    %c0_114 = arith.constant 0 : index
    %217 = vector.load %arg4[%c4_112, %c0_113, %c0_114] : memref<8x8x32xf32, #tpu.memory_space<vmem>>, vector<1x8x32xf32>
    %218 = vector.shape_cast %217 : vector<1x8x32xf32> to vector<8x32xf32>
    %219 = vector.broadcast %3 : f32 to vector<8x32xf32>
    %220 = arith.mulf %219, %211 : vector<8x32xf32>
    %221 = arith.addf %218, %220 : vector<8x32xf32>
    %c4_115 = arith.constant 4 : index
    %c0_116 = arith.constant 0 : index
    %c0_117 = arith.constant 0 : index
    %222 = vector.load %arg6[%c4_115, %c0_116, %c0_117] : memref<8x8x32xf32, #tpu.memory_space<vmem>>, vector<1x8x32xf32>
    %223 = vector.shape_cast %222 : vector<1x8x32xf32> to vector<8x32xf32>
    %224 = vector.shape_cast %221 : vector<8x32xf32> to vector<1x8x32xf32>
    tpu.vector_store %arg6[%c4_115, %c0_116, %c0_117], %224 {strides = array<i32>} : memref<8x8x32xf32, #tpu.memory_space<vmem>>, vector<1x8x32xf32>,
    %c0_118 = arith.constant 0 : index
    %c0_119 = arith.constant 0 : index
    %225 = vector.load %arg7[%c0_118, %c0_119] : memref<8x32xf32, #tpu.memory_space<vmem>>, vector<8x32xf32>
    %c5 = arith.constant 5 : index
    %c0_120 = arith.constant 0 : index
    %c0_121 = arith.constant 0 : index
    %226 = vector.load %arg2[%c5, %c0_120, %c0_121] : memref<8x8x128xf32, #tpu.memory_space<vmem>>, vector<1x8x128xf32>
    %227 = vector.shape_cast %226 : vector<1x8x128xf32> to vector<8x128xf32>
    %cst_122 = arith.constant dense<0.000000e+00> : vector<8x128xf32>
    %228 = tpu.matmul %225, %4, %cst_122 {dimension_numbers = #tpu.dot_dimension_numbers<[1], [0], [0], [1], [0, 0, 1, 1], [], []>} : vector<8x32xf32>, vector<32x128xf32>, vector<8x128xf32> -> vector<8x128xf32>
    %229 = arith.addf %227, %228 : vector<8x128xf32>
    %230 = vector.extract_strided_slice %229 {offsets = [0, 0], sizes = [8, 32], strides = [1, 1]} : vector<8x128xf32> to vector<8x32xf32>
    %231 = arith.negf %230 : vector<8x32xf32>
    %232 = math.exp %231 : vector<8x32xf32>
    %cst_123 = arith.constant 1.000000e+00 : f32
    %233 = vector.broadcast %cst_123 : f32 to vector<8x32xf32>
    %234 = arith.addf %233, %232 : vector<8x32xf32>
    %235 = arith.divf %233, %234 : vector<8x32xf32>
    %236 = vector.extract_strided_slice %229 {offsets = [0, 32], sizes = [8, 32], strides = [1, 1]} : vector<8x128xf32> to vector<8x32xf32>
    %237 = arith.negf %236 : vector<8x32xf32>
    %238 = math.exp %237 : vector<8x32xf32>
    %cst_124 = arith.constant 1.000000e+00 : f32
    %239 = vector.broadcast %cst_124 : f32 to vector<8x32xf32>
    %240 = arith.addf %239, %238 : vector<8x32xf32>
    %241 = arith.divf %239, %240 : vector<8x32xf32>
    %242 = vector.extract_strided_slice %229 {offsets = [0, 64], sizes = [8, 32], strides = [1, 1]} : vector<8x128xf32> to vector<8x32xf32>
    %243 = math.tanh %242 : vector<8x32xf32>
    %244 = vector.extract_strided_slice %229 {offsets = [0, 96], sizes = [8, 32], strides = [1, 1]} : vector<8x128xf32> to vector<8x32xf32>
    %245 = arith.negf %244 : vector<8x32xf32>
    %246 = math.exp %245 : vector<8x32xf32>
    %cst_125 = arith.constant 1.000000e+00 : f32
    %247 = vector.broadcast %cst_125 : f32 to vector<8x32xf32>
    %248 = arith.addf %247, %246 : vector<8x32xf32>
    %249 = arith.divf %247, %248 : vector<8x32xf32>
    %c0_126 = arith.constant 0 : index
    %c0_127 = arith.constant 0 : index
    %250 = vector.load %arg8[%c0_126, %c0_127] : memref<8x32xf32, #tpu.memory_space<vmem>>, vector<8x32xf32>
    %251 = arith.mulf %241, %250 : vector<8x32xf32>
    %252 = arith.mulf %235, %243 : vector<8x32xf32>
    %253 = arith.addf %251, %252 : vector<8x32xf32>
    %254 = math.tanh %253 : vector<8x32xf32>
    %255 = arith.mulf %249, %254 : vector<8x32xf32>
    %c0_128 = arith.constant 0 : index
    %c0_129 = arith.constant 0 : index
    %256 = vector.load %arg8[%c0_128, %c0_129] : memref<8x32xf32, #tpu.memory_space<vmem>>, vector<8x32xf32>
    tpu.vector_store %arg8[%c0_128, %c0_129], %253 {strides = array<i32>} : memref<8x32xf32, #tpu.memory_space<vmem>>, vector<8x32xf32>,
    %c0_130 = arith.constant 0 : index
    %c0_131 = arith.constant 0 : index
    %257 = vector.load %arg7[%c0_130, %c0_131] : memref<8x32xf32, #tpu.memory_space<vmem>>, vector<8x32xf32>
    tpu.vector_store %arg7[%c0_130, %c0_131], %255 {strides = array<i32>} : memref<8x32xf32, #tpu.memory_space<vmem>>, vector<8x32xf32>,
    %c5_132 = arith.constant 5 : index
    %c0_133 = arith.constant 0 : index
    %c0_134 = arith.constant 0 : index
    %258 = vector.load %arg5[%c5_132, %c0_133, %c0_134] : memref<8x8x32xf32, #tpu.memory_space<vmem>>, vector<1x8x32xf32>
    %259 = vector.shape_cast %258 : vector<1x8x32xf32> to vector<8x32xf32>
    %260 = vector.shape_cast %255 : vector<8x32xf32> to vector<1x8x32xf32>
    tpu.vector_store %arg5[%c5_132, %c0_133, %c0_134], %260 {strides = array<i32>} : memref<8x8x32xf32, #tpu.memory_space<vmem>>, vector<1x8x32xf32>,
    %c5_135 = arith.constant 5 : index
    %c0_136 = arith.constant 0 : index
    %c0_137 = arith.constant 0 : index
    %261 = vector.load %arg4[%c5_135, %c0_136, %c0_137] : memref<8x8x32xf32, #tpu.memory_space<vmem>>, vector<1x8x32xf32>
    %262 = vector.shape_cast %261 : vector<1x8x32xf32> to vector<8x32xf32>
    %263 = vector.broadcast %3 : f32 to vector<8x32xf32>
    %264 = arith.mulf %263, %255 : vector<8x32xf32>
    %265 = arith.addf %262, %264 : vector<8x32xf32>
    %c5_138 = arith.constant 5 : index
    %c0_139 = arith.constant 0 : index
    %c0_140 = arith.constant 0 : index
    %266 = vector.load %arg6[%c5_138, %c0_139, %c0_140] : memref<8x8x32xf32, #tpu.memory_space<vmem>>, vector<1x8x32xf32>
    %267 = vector.shape_cast %266 : vector<1x8x32xf32> to vector<8x32xf32>
    %268 = vector.shape_cast %265 : vector<8x32xf32> to vector<1x8x32xf32>
    tpu.vector_store %arg6[%c5_138, %c0_139, %c0_140], %268 {strides = array<i32>} : memref<8x8x32xf32, #tpu.memory_space<vmem>>, vector<1x8x32xf32>,
    %c0_141 = arith.constant 0 : index
    %c0_142 = arith.constant 0 : index
    %269 = vector.load %arg7[%c0_141, %c0_142] : memref<8x32xf32, #tpu.memory_space<vmem>>, vector<8x32xf32>
    %c6 = arith.constant 6 : index
    %c0_143 = arith.constant 0 : index
    %c0_144 = arith.constant 0 : index
    %270 = vector.load %arg2[%c6, %c0_143, %c0_144] : memref<8x8x128xf32, #tpu.memory_space<vmem>>, vector<1x8x128xf32>
    %271 = vector.shape_cast %270 : vector<1x8x128xf32> to vector<8x128xf32>
    %cst_145 = arith.constant dense<0.000000e+00> : vector<8x128xf32>
    %272 = tpu.matmul %269, %4, %cst_145 {dimension_numbers = #tpu.dot_dimension_numbers<[1], [0], [0], [1], [0, 0, 1, 1], [], []>} : vector<8x32xf32>, vector<32x128xf32>, vector<8x128xf32> -> vector<8x128xf32>
    %273 = arith.addf %271, %272 : vector<8x128xf32>
    %274 = vector.extract_strided_slice %273 {offsets = [0, 0], sizes = [8, 32], strides = [1, 1]} : vector<8x128xf32> to vector<8x32xf32>
    %275 = arith.negf %274 : vector<8x32xf32>
    %276 = math.exp %275 : vector<8x32xf32>
    %cst_146 = arith.constant 1.000000e+00 : f32
    %277 = vector.broadcast %cst_146 : f32 to vector<8x32xf32>
    %278 = arith.addf %277, %276 : vector<8x32xf32>
    %279 = arith.divf %277, %278 : vector<8x32xf32>
    %280 = vector.extract_strided_slice %273 {offsets = [0, 32], sizes = [8, 32], strides = [1, 1]} : vector<8x128xf32> to vector<8x32xf32>
    %281 = arith.negf %280 : vector<8x32xf32>
    %282 = math.exp %281 : vector<8x32xf32>
    %cst_147 = arith.constant 1.000000e+00 : f32
    %283 = vector.broadcast %cst_147 : f32 to vector<8x32xf32>
    %284 = arith.addf %283, %282 : vector<8x32xf32>
    %285 = arith.divf %283, %284 : vector<8x32xf32>
    %286 = vector.extract_strided_slice %273 {offsets = [0, 64], sizes = [8, 32], strides = [1, 1]} : vector<8x128xf32> to vector<8x32xf32>
    %287 = math.tanh %286 : vector<8x32xf32>
    %288 = vector.extract_strided_slice %273 {offsets = [0, 96], sizes = [8, 32], strides = [1, 1]} : vector<8x128xf32> to vector<8x32xf32>
    %289 = arith.negf %288 : vector<8x32xf32>
    %290 = math.exp %289 : vector<8x32xf32>
    %cst_148 = arith.constant 1.000000e+00 : f32
    %291 = vector.broadcast %cst_148 : f32 to vector<8x32xf32>
    %292 = arith.addf %291, %290 : vector<8x32xf32>
    %293 = arith.divf %291, %292 : vector<8x32xf32>
    %c0_149 = arith.constant 0 : index
    %c0_150 = arith.constant 0 : index
    %294 = vector.load %arg8[%c0_149, %c0_150] : memref<8x32xf32, #tpu.memory_space<vmem>>, vector<8x32xf32>
    %295 = arith.mulf %285, %294 : vector<8x32xf32>
    %296 = arith.mulf %279, %287 : vector<8x32xf32>
    %297 = arith.addf %295, %296 : vector<8x32xf32>
    %298 = math.tanh %297 : vector<8x32xf32>
    %299 = arith.mulf %293, %298 : vector<8x32xf32>
    %c0_151 = arith.constant 0 : index
    %c0_152 = arith.constant 0 : index
    %300 = vector.load %arg8[%c0_151, %c0_152] : memref<8x32xf32, #tpu.memory_space<vmem>>, vector<8x32xf32>
    tpu.vector_store %arg8[%c0_151, %c0_152], %297 {strides = array<i32>} : memref<8x32xf32, #tpu.memory_space<vmem>>, vector<8x32xf32>,
    %c0_153 = arith.constant 0 : index
    %c0_154 = arith.constant 0 : index
    %301 = vector.load %arg7[%c0_153, %c0_154] : memref<8x32xf32, #tpu.memory_space<vmem>>, vector<8x32xf32>
    tpu.vector_store %arg7[%c0_153, %c0_154], %299 {strides = array<i32>} : memref<8x32xf32, #tpu.memory_space<vmem>>, vector<8x32xf32>,
    %c6_155 = arith.constant 6 : index
    %c0_156 = arith.constant 0 : index
    %c0_157 = arith.constant 0 : index
    %302 = vector.load %arg5[%c6_155, %c0_156, %c0_157] : memref<8x8x32xf32, #tpu.memory_space<vmem>>, vector<1x8x32xf32>
    %303 = vector.shape_cast %302 : vector<1x8x32xf32> to vector<8x32xf32>
    %304 = vector.shape_cast %299 : vector<8x32xf32> to vector<1x8x32xf32>
    tpu.vector_store %arg5[%c6_155, %c0_156, %c0_157], %304 {strides = array<i32>} : memref<8x8x32xf32, #tpu.memory_space<vmem>>, vector<1x8x32xf32>,
    %c6_158 = arith.constant 6 : index
    %c0_159 = arith.constant 0 : index
    %c0_160 = arith.constant 0 : index
    %305 = vector.load %arg4[%c6_158, %c0_159, %c0_160] : memref<8x8x32xf32, #tpu.memory_space<vmem>>, vector<1x8x32xf32>
    %306 = vector.shape_cast %305 : vector<1x8x32xf32> to vector<8x32xf32>
    %307 = vector.broadcast %3 : f32 to vector<8x32xf32>
    %308 = arith.mulf %307, %299 : vector<8x32xf32>
    %309 = arith.addf %306, %308 : vector<8x32xf32>
    %c6_161 = arith.constant 6 : index
    %c0_162 = arith.constant 0 : index
    %c0_163 = arith.constant 0 : index
    %310 = vector.load %arg6[%c6_161, %c0_162, %c0_163] : memref<8x8x32xf32, #tpu.memory_space<vmem>>, vector<1x8x32xf32>
    %311 = vector.shape_cast %310 : vector<1x8x32xf32> to vector<8x32xf32>
    %312 = vector.shape_cast %309 : vector<8x32xf32> to vector<1x8x32xf32>
    tpu.vector_store %arg6[%c6_161, %c0_162, %c0_163], %312 {strides = array<i32>} : memref<8x8x32xf32, #tpu.memory_space<vmem>>, vector<1x8x32xf32>,
    %c0_164 = arith.constant 0 : index
    %c0_165 = arith.constant 0 : index
    %313 = vector.load %arg7[%c0_164, %c0_165] : memref<8x32xf32, #tpu.memory_space<vmem>>, vector<8x32xf32>
    %c7 = arith.constant 7 : index
    %c0_166 = arith.constant 0 : index
    %c0_167 = arith.constant 0 : index
    %314 = vector.load %arg2[%c7, %c0_166, %c0_167] : memref<8x8x128xf32, #tpu.memory_space<vmem>>, vector<1x8x128xf32>
    %315 = vector.shape_cast %314 : vector<1x8x128xf32> to vector<8x128xf32>
    %cst_168 = arith.constant dense<0.000000e+00> : vector<8x128xf32>
    %316 = tpu.matmul %313, %4, %cst_168 {dimension_numbers = #tpu.dot_dimension_numbers<[1], [0], [0], [1], [0, 0, 1, 1], [], []>} : vector<8x32xf32>, vector<32x128xf32>, vector<8x128xf32> -> vector<8x128xf32>
    %317 = arith.addf %315, %316 : vector<8x128xf32>
    %318 = vector.extract_strided_slice %317 {offsets = [0, 0], sizes = [8, 32], strides = [1, 1]} : vector<8x128xf32> to vector<8x32xf32>
    %319 = arith.negf %318 : vector<8x32xf32>
    %320 = math.exp %319 : vector<8x32xf32>
    %cst_169 = arith.constant 1.000000e+00 : f32
    %321 = vector.broadcast %cst_169 : f32 to vector<8x32xf32>
    %322 = arith.addf %321, %320 : vector<8x32xf32>
    %323 = arith.divf %321, %322 : vector<8x32xf32>
    %324 = vector.extract_strided_slice %317 {offsets = [0, 32], sizes = [8, 32], strides = [1, 1]} : vector<8x128xf32> to vector<8x32xf32>
    %325 = arith.negf %324 : vector<8x32xf32>
    %326 = math.exp %325 : vector<8x32xf32>
    %cst_170 = arith.constant 1.000000e+00 : f32
    %327 = vector.broadcast %cst_170 : f32 to vector<8x32xf32>
    %328 = arith.addf %327, %326 : vector<8x32xf32>
    %329 = arith.divf %327, %328 : vector<8x32xf32>
    %330 = vector.extract_strided_slice %317 {offsets = [0, 64], sizes = [8, 32], strides = [1, 1]} : vector<8x128xf32> to vector<8x32xf32>
    %331 = math.tanh %330 : vector<8x32xf32>
    %332 = vector.extract_strided_slice %317 {offsets = [0, 96], sizes = [8, 32], strides = [1, 1]} : vector<8x128xf32> to vector<8x32xf32>
    %333 = arith.negf %332 : vector<8x32xf32>
    %334 = math.exp %333 : vector<8x32xf32>
    %cst_171 = arith.constant 1.000000e+00 : f32
    %335 = vector.broadcast %cst_171 : f32 to vector<8x32xf32>
    %336 = arith.addf %335, %334 : vector<8x32xf32>
    %337 = arith.divf %335, %336 : vector<8x32xf32>
    %c0_172 = arith.constant 0 : index
    %c0_173 = arith.constant 0 : index
    %338 = vector.load %arg8[%c0_172, %c0_173] : memref<8x32xf32, #tpu.memory_space<vmem>>, vector<8x32xf32>
    %339 = arith.mulf %329, %338 : vector<8x32xf32>
    %340 = arith.mulf %323, %331 : vector<8x32xf32>
    %341 = arith.addf %339, %340 : vector<8x32xf32>
    %342 = math.tanh %341 : vector<8x32xf32>
    %343 = arith.mulf %337, %342 : vector<8x32xf32>
    %c0_174 = arith.constant 0 : index
    %c0_175 = arith.constant 0 : index
    %344 = vector.load %arg8[%c0_174, %c0_175] : memref<8x32xf32, #tpu.memory_space<vmem>>, vector<8x32xf32>
    tpu.vector_store %arg8[%c0_174, %c0_175], %341 {strides = array<i32>} : memref<8x32xf32, #tpu.memory_space<vmem>>, vector<8x32xf32>,
    %c0_176 = arith.constant 0 : index
    %c0_177 = arith.constant 0 : index
    %345 = vector.load %arg7[%c0_176, %c0_177] : memref<8x32xf32, #tpu.memory_space<vmem>>, vector<8x32xf32>
    tpu.vector_store %arg7[%c0_176, %c0_177], %343 {strides = array<i32>} : memref<8x32xf32, #tpu.memory_space<vmem>>, vector<8x32xf32>,
    %c7_178 = arith.constant 7 : index
    %c0_179 = arith.constant 0 : index
    %c0_180 = arith.constant 0 : index
    %346 = vector.load %arg5[%c7_178, %c0_179, %c0_180] : memref<8x8x32xf32, #tpu.memory_space<vmem>>, vector<1x8x32xf32>
    %347 = vector.shape_cast %346 : vector<1x8x32xf32> to vector<8x32xf32>
    %348 = vector.shape_cast %343 : vector<8x32xf32> to vector<1x8x32xf32>
    tpu.vector_store %arg5[%c7_178, %c0_179, %c0_180], %348 {strides = array<i32>} : memref<8x8x32xf32, #tpu.memory_space<vmem>>, vector<1x8x32xf32>,
    %c7_181 = arith.constant 7 : index
    %c0_182 = arith.constant 0 : index
    %c0_183 = arith.constant 0 : index
    %349 = vector.load %arg4[%c7_181, %c0_182, %c0_183] : memref<8x8x32xf32, #tpu.memory_space<vmem>>, vector<1x8x32xf32>
    %350 = vector.shape_cast %349 : vector<1x8x32xf32> to vector<8x32xf32>
    %351 = vector.broadcast %3 : f32 to vector<8x32xf32>
    %352 = arith.mulf %351, %343 : vector<8x32xf32>
    %353 = arith.addf %350, %352 : vector<8x32xf32>
    %c7_184 = arith.constant 7 : index
    %c0_185 = arith.constant 0 : index
    %c0_186 = arith.constant 0 : index
    %354 = vector.load %arg6[%c7_184, %c0_185, %c0_186] : memref<8x8x32xf32, #tpu.memory_space<vmem>>, vector<1x8x32xf32>
    %355 = vector.shape_cast %354 : vector<1x8x32xf32> to vector<8x32xf32>
    %356 = vector.shape_cast %353 : vector<8x32xf32> to vector<1x8x32xf32>
    tpu.vector_store %arg6[%c7_184, %c0_185, %c0_186], %356 {strides = array<i32>} : memref<8x8x32xf32, #tpu.memory_space<vmem>>, vector<1x8x32xf32>,
    return
  }
  func.func @transform_0(%arg0: i32) -> i32 {
    %c0_i32 = arith.constant 0 : i32
    %c0_i32_0 = arith.constant 0 : i32
    return %c0_i32 : i32
  }
  func.func @transform_1(%arg0: i32) -> (i32, i32, i32) {
    %c0_i32 = arith.constant 0 : i32
    %c0_i32_0 = arith.constant 0 : i32
    %c0_i32_1 = arith.constant 0 : i32
    return %arg0, %c0_i32, %c0_i32_0 : i32, i32, i32
  }
  func.func @transform_2(%arg0: i32) -> (i32, i32) {
    %c0_i32 = arith.constant 0 : i32
    %c0_i32_0 = arith.constant 0 : i32
    %c0_i32_1 = arith.constant 0 : i32
    return %c0_i32, %c0_i32_0 : i32, i32
  }
  func.func @transform_3(%arg0: i32) -> (i32, i32, i32) {
    %c0_i32 = arith.constant 0 : i32
    %c0_i32_0 = arith.constant 0 : i32
    %c0_i32_1 = arith.constant 0 : i32
    return %arg0, %c0_i32, %c0_i32_0 : i32, i32, i32
  }
  func.func @transform_4(%arg0: i32) -> (i32, i32, i32) {
    %c0_i32 = arith.constant 0 : i32
    %c0_i32_0 = arith.constant 0 : i32
    %c0_i32_1 = arith.constant 0 : i32
    return %arg0, %c0_i32, %c0_i32_0 : i32, i32, i32
  }
  func.func @transform_5(%arg0: i32) -> (i32, i32, i32) {
    %c0_i32 = arith.constant 0 : i32
    %c0_i32_0 = arith.constant 0 : i32
    %c0_i32_1 = arith.constant 0 : i32
    return %arg0, %c0_i32, %c0_i32_0 : i32, i32, i32
  }
}

module attributes {stable_mosaic.version = 11 : i64} {
  func.func @_lstm_fused_kernel(%arg0: i32, %arg1: memref<1xf32, #tpu.memory_space<smem>>, %arg2: memref<8x8x128xf32, #tpu.memory_space<vmem>>, %arg3: memref<32x128xf32, #tpu.memory_space<vmem>>, %arg4: memref<8x8x32xf32, #tpu.memory_space<vmem>>, %arg5: memref<8x8x32xf32, #tpu.memory_space<vmem>>, %arg6: memref<8x8x32xf32, #tpu.memory_space<vmem>>, %arg7: memref<8x32xf32, #tpu.memory_space<vmem>>, %arg8: memref<8x32xf32, #tpu.memory_space<vmem>>) attributes {dimension_semantics = [#tpu.dimension_semantics<arbitrary>], iteration_bounds = array<i64: 2>, scalar_prefetch = 0 : i64, scratch_operands = 2 : i64, tpu.core_type = #tpu.core_type<tc>, window_params = [{transform_indices = @transform_0, window_bounds = array<i64: 1>}, {transform_indices = @transform_1, window_bounds = array<i64: 8, 8, 128>}, {pipeline_mode = #tpu.pipeline_mode<synchronous>, transform_indices = @transform_2, window_bounds = array<i64: 32, 128>}, {transform_indices = @transform_3, window_bounds = array<i64: 8, 8, 32>}, {transform_indices = @transform_4, window_bounds = array<i64: 8, 8, 32>}, {transform_indices = @transform_5, window_bounds = array<i64: 8, 8, 32>}]} {
    %c0_i32 = arith.constant 0 : i32
    %0 = arith.cmpi eq, %arg0, %c0_i32 : i32
    %1 = arith.extui %0 : i1 to i32
    %c0_i32_0 = arith.constant 0 : i32
    %2 = arith.cmpi ne, %1, %c0_i32_0 : i32
    scf.if %2 {
      %cst_187 = arith.constant 0.000000e+00 : f32
      %357 = vector.broadcast %cst_187 : f32 to vector<8x32xf32>
      %c0_188 = arith.constant 0 : index
      %c0_189 = arith.constant 0 : index
      %358 = vector.load %arg7[%c0_188, %c0_189] : memref<8x32xf32, #tpu.memory_space<vmem>>, vector<8x32xf32>
      tpu.vector_store %arg7[%c0_188, %c0_189], %357 {strides = array<i32>} : memref<8x32xf32, #tpu.memory_space<vmem>>, vector<8x32xf32>,
      %cst_190 = arith.constant 0.000000e+00 : f32
      %359 = vector.broadcast %cst_190 : f32 to vector<8x32xf32>
      %c0_191 = arith.constant 0 : index
      %c0_192 = arith.constant 0 : index
      %360 = vector.load %arg8[%c0_191, %c0_192] : memref<8x32xf32, #tpu.memory_space<vmem>>, vector<8x32xf32>
      tpu.vector_store %arg8[%c0_191, %c0_192], %359 {strides = array<i32>} : memref<8x32xf32, #tpu.memory_space<vmem>>, vector<8x32xf32>,
    } else {
    }
    %c0 = arith.constant 0 : index
    %3 = memref.load %arg1[%c0] : memref<1xf32, #tpu.memory_space<smem>>
    %c0_1 = arith.constant 0 : index
    %c0_2 = arith.constant 0 : index
    %4 = vector.load %arg3[%c0_1, %c0_2] : memref<32x128xf32, #tpu.memory_space<vmem>>, vector<32x128xf32>
    %c0_3 = arith.constant 0 : index
    %c0_4 = arith.constant 0 : index
    %5 = vector.load %arg7[%c0_3, %c0_4] : memref<8x32xf32, #tpu.memory_space<vmem>>, vector<8x32xf32>
    %c0_5 = arith.constant 0 : index
    %c0_6 = arith.constant 0 : index
    %c0_7 = arith.constant 0 : index
    %6 = vector.load %arg2[%c0_5, %c0_6, %c0_7] : memref<8x8x128xf32, #tpu.memory_space<vmem>>, vector<1x8x128xf32>
    %7 = vector.shape_cast %6 : vector<1x8x128xf32> to vector<8x128xf32>
    %cst = arith.constant dense<0.000000e+00> : vector<8x128xf32>
    %8 = tpu.matmul %5, %4, %cst {dimension_numbers = #tpu.dot_dimension_numbers<[1], [0], [0], [1], [0, 0, 1, 1], [], []>} : vector<8x32xf32>, vector<32x128xf32>, vector<8x128xf32> -> vector<8x128xf32>
    %9 = arith.addf %7, %8 : vector<8x128xf32>
    %10 = vector.extract_strided_slice %9 {offsets = [0, 0], sizes = [8, 32], strides = [1, 1]} : vector<8x128xf32> to vector<8x32xf32>
    %11 = arith.negf %10 : vector<8x32xf32>
    %12 = math.exp %11 : vector<8x32xf32>
    %cst_8 = arith.constant 1.000000e+00 : f32
    %13 = vector.broadcast %cst_8 : f32 to vector<8x32xf32>
    %14 = arith.addf %13, %12 : vector<8x32xf32>
    %15 = arith.divf %13, %14 : vector<8x32xf32>
    %16 = vector.extract_strided_slice %9 {offsets = [0, 32], sizes = [8, 32], strides = [1, 1]} : vector<8x128xf32> to vector<8x32xf32>
    %17 = arith.negf %16 : vector<8x32xf32>
    %18 = math.exp %17 : vector<8x32xf32>
    %cst_9 = arith.constant 1.000000e+00 : f32
    %19 = vector.broadcast %cst_9 : f32 to vector<8x32xf32>
    %20 = arith.addf %19, %18 : vector<8x32xf32>
    %21 = arith.divf %19, %20 : vector<8x32xf32>
    %22 = vector.extract_strided_slice %9 {offsets = [0, 64], sizes = [8, 32], strides = [1, 1]} : vector<8x128xf32> to vector<8x32xf32>
    %23 = math.tanh %22 : vector<8x32xf32>
    %24 = vector.extract_strided_slice %9 {offsets = [0, 96], sizes = [8, 32], strides = [1, 1]} : vector<8x128xf32> to vector<8x32xf32>
    %25 = arith.negf %24 : vector<8x32xf32>
    %26 = math.exp %25 : vector<8x32xf32>
    %cst_10 = arith.constant 1.000000e+00 : f32
    %27 = vector.broadcast %cst_10 : f32 to vector<8x32xf32>
    %28 = arith.addf %27, %26 : vector<8x32xf32>
    %29 = arith.divf %27, %28 : vector<8x32xf32>
    %c0_11 = arith.constant 0 : index
    %c0_12 = arith.constant 0 : index
    %30 = vector.load %arg8[%c0_11, %c0_12] : memref<8x32xf32, #tpu.memory_space<vmem>>, vector<8x32xf32>
    %31 = arith.mulf %21, %30 : vector<8x32xf32>
    %32 = arith.mulf %15, %23 : vector<8x32xf32>
    %33 = arith.addf %31, %32 : vector<8x32xf32>
    %34 = math.tanh %33 : vector<8x32xf32>
    %35 = arith.mulf %29, %34 : vector<8x32xf32>
    %c0_13 = arith.constant 0 : index
    %c0_14 = arith.constant 0 : index
    %36 = vector.load %arg8[%c0_13, %c0_14] : memref<8x32xf32, #tpu.memory_space<vmem>>, vector<8x32xf32>
    tpu.vector_store %arg8[%c0_13, %c0_14], %33 {strides = array<i32>} : memref<8x32xf32, #tpu.memory_space<vmem>>, vector<8x32xf32>,
    %c0_15 = arith.constant 0 : index
    %c0_16 = arith.constant 0 : index
    %37 = vector.load %arg7[%c0_15, %c0_16] : memref<8x32xf32, #tpu.memory_space<vmem>>, vector<8x32xf32>
    tpu.vector_store %arg7[%c0_15, %c0_16], %35 {strides = array<i32>} : memref<8x32xf32, #tpu.memory_space<vmem>>, vector<8x32xf32>,
    %c0_17 = arith.constant 0 : index
    %c0_18 = arith.constant 0 : index
    %c0_19 = arith.constant 0 : index
    %38 = vector.load %arg5[%c0_17, %c0_18, %c0_19] : memref<8x8x32xf32, #tpu.memory_space<vmem>>, vector<1x8x32xf32>
    %39 = vector.shape_cast %38 : vector<1x8x32xf32> to vector<8x32xf32>
    %40 = vector.shape_cast %35 : vector<8x32xf32> to vector<1x8x32xf32>
    tpu.vector_store %arg5[%c0_17, %c0_18, %c0_19], %40 {strides = array<i32>} : memref<8x8x32xf32, #tpu.memory_space<vmem>>, vector<1x8x32xf32>,
    %c0_20 = arith.constant 0 : index
    %c0_21 = arith.constant 0 : index
    %c0_22 = arith.constant 0 : index
    %41 = vector.load %arg4[%c0_20, %c0_21, %c0_22] : memref<8x8x32xf32, #tpu.memory_space<vmem>>, vector<1x8x32xf32>
    %42 = vector.shape_cast %41 : vector<1x8x32xf32> to vector<8x32xf32>
    %43 = vector.broadcast %3 : f32 to vector<8x32xf32>
    %44 = arith.mulf %43, %35 : vector<8x32xf32>
    %45 = arith.addf %42, %44 : vector<8x32xf32>
    %c0_23 = arith.constant 0 : index
    %c0_24 = arith.constant 0 : index
    %c0_25 = arith.constant 0 : index
    %46 = vector.load %arg6[%c0_23, %c0_24, %c0_25] : memref<8x8x32xf32, #tpu.memory_space<vmem>>, vector<1x8x32xf32>
    %47 = vector.shape_cast %46 : vector<1x8x32xf32> to vector<8x32xf32>
    %48 = vector.shape_cast %45 : vector<8x32xf32> to vector<1x8x32xf32>
    tpu.vector_store %arg6[%c0_23, %c0_24, %c0_25], %48 {strides = array<i32>} : memref<8x8x32xf32, #tpu.memory_space<vmem>>, vector<1x8x32xf32>,
    %c0_26 = arith.constant 0 : index
    %c0_27 = arith.constant 0 : index
    %49 = vector.load %arg7[%c0_26, %c0_27] : memref<8x32xf32, #tpu.memory_space<vmem>>, vector<8x32xf32>
    %c1 = arith.constant 1 : index
    %c0_28 = arith.constant 0 : index
    %c0_29 = arith.constant 0 : index
    %50 = vector.load %arg2[%c1, %c0_28, %c0_29] : memref<8x8x128xf32, #tpu.memory_space<vmem>>, vector<1x8x128xf32>
    %51 = vector.shape_cast %50 : vector<1x8x128xf32> to vector<8x128xf32>
    %cst_30 = arith.constant dense<0.000000e+00> : vector<8x128xf32>
    %52 = tpu.matmul %49, %4, %cst_30 {dimension_numbers = #tpu.dot_dimension_numbers<[1], [0], [0], [1], [0, 0, 1, 1], [], []>} : vector<8x32xf32>, vector<32x128xf32>, vector<8x128xf32> -> vector<8x128xf32>
    %53 = arith.addf %51, %52 : vector<8x128xf32>
    %54 = vector.extract_strided_slice %53 {offsets = [0, 0], sizes = [8, 32], strides = [1, 1]} : vector<8x128xf32> to vector<8x32xf32>
    %55 = arith.negf %54 : vector<8x32xf32>
    %56 = math.exp %55 : vector<8x32xf32>
    %cst_31 = arith.constant 1.000000e+00 : f32
    %57 = vector.broadcast %cst_31 : f32 to vector<8x32xf32>
    %58 = arith.addf %57, %56 : vector<8x32xf32>
    %59 = arith.divf %57, %58 : vector<8x32xf32>
    %60 = vector.extract_strided_slice %53 {offsets = [0, 32], sizes = [8, 32], strides = [1, 1]} : vector<8x128xf32> to vector<8x32xf32>
    %61 = arith.negf %60 : vector<8x32xf32>
    %62 = math.exp %61 : vector<8x32xf32>
    %cst_32 = arith.constant 1.000000e+00 : f32
    %63 = vector.broadcast %cst_32 : f32 to vector<8x32xf32>
    %64 = arith.addf %63, %62 : vector<8x32xf32>
    %65 = arith.divf %63, %64 : vector<8x32xf32>
    %66 = vector.extract_strided_slice %53 {offsets = [0, 64], sizes = [8, 32], strides = [1, 1]} : vector<8x128xf32> to vector<8x32xf32>
    %67 = math.tanh %66 : vector<8x32xf32>
    %68 = vector.extract_strided_slice %53 {offsets = [0, 96], sizes = [8, 32], strides = [1, 1]} : vector<8x128xf32> to vector<8x32xf32>
    %69 = arith.negf %68 : vector<8x32xf32>
    %70 = math.exp %69 : vector<8x32xf32>
    %cst_33 = arith.constant 1.000000e+00 : f32
    %71 = vector.broadcast %cst_33 : f32 to vector<8x32xf32>
    %72 = arith.addf %71, %70 : vector<8x32xf32>
    %73 = arith.divf %71, %72 : vector<8x32xf32>
    %c0_34 = arith.constant 0 : index
    %c0_35 = arith.constant 0 : index
    %74 = vector.load %arg8[%c0_34, %c0_35] : memref<8x32xf32, #tpu.memory_space<vmem>>, vector<8x32xf32>
    %75 = arith.mulf %65, %74 : vector<8x32xf32>
    %76 = arith.mulf %59, %67 : vector<8x32xf32>
    %77 = arith.addf %75, %76 : vector<8x32xf32>
    %78 = math.tanh %77 : vector<8x32xf32>
    %79 = arith.mulf %73, %78 : vector<8x32xf32>
    %c0_36 = arith.constant 0 : index
    %c0_37 = arith.constant 0 : index
    %80 = vector.load %arg8[%c0_36, %c0_37] : memref<8x32xf32, #tpu.memory_space<vmem>>, vector<8x32xf32>
    tpu.vector_store %arg8[%c0_36, %c0_37], %77 {strides = array<i32>} : memref<8x32xf32, #tpu.memory_space<vmem>>, vector<8x32xf32>,
    %c0_38 = arith.constant 0 : index
    %c0_39 = arith.constant 0 : index
    %81 = vector.load %arg7[%c0_38, %c0_39] : memref<8x32xf32, #tpu.memory_space<vmem>>, vector<8x32xf32>
    tpu.vector_store %arg7[%c0_38, %c0_39], %79 {strides = array<i32>} : memref<8x32xf32, #tpu.memory_space<vmem>>, vector<8x32xf32>,
    %c1_40 = arith.constant 1 : index
    %c0_41 = arith.constant 0 : index
    %c0_42 = arith.constant 0 : index
    %82 = vector.load %arg5[%c1_40, %c0_41, %c0_42] : memref<8x8x32xf32, #tpu.memory_space<vmem>>, vector<1x8x32xf32>
    %83 = vector.shape_cast %82 : vector<1x8x32xf32> to vector<8x32xf32>
    %84 = vector.shape_cast %79 : vector<8x32xf32> to vector<1x8x32xf32>
    tpu.vector_store %arg5[%c1_40, %c0_41, %c0_42], %84 {strides = array<i32>} : memref<8x8x32xf32, #tpu.memory_space<vmem>>, vector<1x8x32xf32>,
    %c1_43 = arith.constant 1 : index
    %c0_44 = arith.constant 0 : index
    %c0_45 = arith.constant 0 : index
    %85 = vector.load %arg4[%c1_43, %c0_44, %c0_45] : memref<8x8x32xf32, #tpu.memory_space<vmem>>, vector<1x8x32xf32>
    %86 = vector.shape_cast %85 : vector<1x8x32xf32> to vector<8x32xf32>
    %87 = vector.broadcast %3 : f32 to vector<8x32xf32>
    %88 = arith.mulf %87, %79 : vector<8x32xf32>
    %89 = arith.addf %86, %88 : vector<8x32xf32>
    %c1_46 = arith.constant 1 : index
    %c0_47 = arith.constant 0 : index
    %c0_48 = arith.constant 0 : index
    %90 = vector.load %arg6[%c1_46, %c0_47, %c0_48] : memref<8x8x32xf32, #tpu.memory_space<vmem>>, vector<1x8x32xf32>
    %91 = vector.shape_cast %90 : vector<1x8x32xf32> to vector<8x32xf32>
    %92 = vector.shape_cast %89 : vector<8x32xf32> to vector<1x8x32xf32>
    tpu.vector_store %arg6[%c1_46, %c0_47, %c0_48], %92 {strides = array<i32>} : memref<8x8x32xf32, #tpu.memory_space<vmem>>, vector<1x8x32xf32>,
    %c0_49 = arith.constant 0 : index
    %c0_50 = arith.constant 0 : index
    %93 = vector.load %arg7[%c0_49, %c0_50] : memref<8x32xf32, #tpu.memory_space<vmem>>, vector<8x32xf32>
    %c2 = arith.constant 2 : index
    %c0_51 = arith.constant 0 : index
    %c0_52 = arith.constant 0 : index
    %94 = vector.load %arg2[%c2, %c0_51, %c0_52] : memref<8x8x128xf32, #tpu.memory_space<vmem>>, vector<1x8x128xf32>
    %95 = vector.shape_cast %94 : vector<1x8x128xf32> to vector<8x128xf32>
    %cst_53 = arith.constant dense<0.000000e+00> : vector<8x128xf32>
    %96 = tpu.matmul %93, %4, %cst_53 {dimension_numbers = #tpu.dot_dimension_numbers<[1], [0], [0], [1], [0, 0, 1, 1], [], []>} : vector<8x32xf32>, vector<32x128xf32>, vector<8x128xf32> -> vector<8x128xf32>
    %97 = arith.addf %95, %96 : vector<8x128xf32>
    %98 = vector.extract_strided_slice %97 {offsets = [0, 0], sizes = [8, 32], strides = [1, 1]} : vector<8x128xf32> to vector<8x32xf32>
    %99 = arith.negf %98 : vector<8x32xf32>
    %100 = math.exp %99 : vector<8x32xf32>
    %cst_54 = arith.constant 1.000000e+00 : f32
    %101 = vector.broadcast %cst_54 : f32 to vector<8x32xf32>
    %102 = arith.addf %101, %100 : vector<8x32xf32>
    %103 = arith.divf %101, %102 : vector<8x32xf32>
    %104 = vector.extract_strided_slice %97 {offsets = [0, 32], sizes = [8, 32], strides = [1, 1]} : vector<8x128xf32> to vector<8x32xf32>
    %105 = arith.negf %104 : vector<8x32xf32>
    %106 = math.exp %105 : vector<8x32xf32>
    %cst_55 = arith.constant 1.000000e+00 : f32
    %107 = vector.broadcast %cst_55 : f32 to vector<8x32xf32>
    %108 = arith.addf %107, %106 : vector<8x32xf32>
    %109 = arith.divf %107, %108 : vector<8x32xf32>
    %110 = vector.extract_strided_slice %97 {offsets = [0, 64], sizes = [8, 32], strides = [1, 1]} : vector<8x128xf32> to vector<8x32xf32>
    %111 = math.tanh %110 : vector<8x32xf32>
    %112 = vector.extract_strided_slice %97 {offsets = [0, 96], sizes = [8, 32], strides = [1, 1]} : vector<8x128xf32> to vector<8x32xf32>
    %113 = arith.negf %112 : vector<8x32xf32>
    %114 = math.exp %113 : vector<8x32xf32>
    %cst_56 = arith.constant 1.000000e+00 : f32
    %115 = vector.broadcast %cst_56 : f32 to vector<8x32xf32>
    %116 = arith.addf %115, %114 : vector<8x32xf32>
    %117 = arith.divf %115, %116 : vector<8x32xf32>
    %c0_57 = arith.constant 0 : index
    %c0_58 = arith.constant 0 : index
    %118 = vector.load %arg8[%c0_57, %c0_58] : memref<8x32xf32, #tpu.memory_space<vmem>>, vector<8x32xf32>
    %119 = arith.mulf %109, %118 : vector<8x32xf32>
    %120 = arith.mulf %103, %111 : vector<8x32xf32>
    %121 = arith.addf %119, %120 : vector<8x32xf32>
    %122 = math.tanh %121 : vector<8x32xf32>
    %123 = arith.mulf %117, %122 : vector<8x32xf32>
    %c0_59 = arith.constant 0 : index
    %c0_60 = arith.constant 0 : index
    %124 = vector.load %arg8[%c0_59, %c0_60] : memref<8x32xf32, #tpu.memory_space<vmem>>, vector<8x32xf32>
    tpu.vector_store %arg8[%c0_59, %c0_60], %121 {strides = array<i32>} : memref<8x32xf32, #tpu.memory_space<vmem>>, vector<8x32xf32>,
    %c0_61 = arith.constant 0 : index
    %c0_62 = arith.constant 0 : index
    %125 = vector.load %arg7[%c0_61, %c0_62] : memref<8x32xf32, #tpu.memory_space<vmem>>, vector<8x32xf32>
    tpu.vector_store %arg7[%c0_61, %c0_62], %123 {strides = array<i32>} : memref<8x32xf32, #tpu.memory_space<vmem>>, vector<8x32xf32>,
    %c2_63 = arith.constant 2 : index
    %c0_64 = arith.constant 0 : index
    %c0_65 = arith.constant 0 : index
    %126 = vector.load %arg5[%c2_63, %c0_64, %c0_65] : memref<8x8x32xf32, #tpu.memory_space<vmem>>, vector<1x8x32xf32>
    %127 = vector.shape_cast %126 : vector<1x8x32xf32> to vector<8x32xf32>
    %128 = vector.shape_cast %123 : vector<8x32xf32> to vector<1x8x32xf32>
    tpu.vector_store %arg5[%c2_63, %c0_64, %c0_65], %128 {strides = array<i32>} : memref<8x8x32xf32, #tpu.memory_space<vmem>>, vector<1x8x32xf32>,
    %c2_66 = arith.constant 2 : index
    %c0_67 = arith.constant 0 : index
    %c0_68 = arith.constant 0 : index
    %129 = vector.load %arg4[%c2_66, %c0_67, %c0_68] : memref<8x8x32xf32, #tpu.memory_space<vmem>>, vector<1x8x32xf32>
    %130 = vector.shape_cast %129 : vector<1x8x32xf32> to vector<8x32xf32>
    %131 = vector.broadcast %3 : f32 to vector<8x32xf32>
    %132 = arith.mulf %131, %123 : vector<8x32xf32>
    %133 = arith.addf %130, %132 : vector<8x32xf32>
    %c2_69 = arith.constant 2 : index
    %c0_70 = arith.constant 0 : index
    %c0_71 = arith.constant 0 : index
    %134 = vector.load %arg6[%c2_69, %c0_70, %c0_71] : memref<8x8x32xf32, #tpu.memory_space<vmem>>, vector<1x8x32xf32>
    %135 = vector.shape_cast %134 : vector<1x8x32xf32> to vector<8x32xf32>
    %136 = vector.shape_cast %133 : vector<8x32xf32> to vector<1x8x32xf32>
    tpu.vector_store %arg6[%c2_69, %c0_70, %c0_71], %136 {strides = array<i32>} : memref<8x8x32xf32, #tpu.memory_space<vmem>>, vector<1x8x32xf32>,
    %c0_72 = arith.constant 0 : index
    %c0_73 = arith.constant 0 : index
    %137 = vector.load %arg7[%c0_72, %c0_73] : memref<8x32xf32, #tpu.memory_space<vmem>>, vector<8x32xf32>
    %c3 = arith.constant 3 : index
    %c0_74 = arith.constant 0 : index
    %c0_75 = arith.constant 0 : index
    %138 = vector.load %arg2[%c3, %c0_74, %c0_75] : memref<8x8x128xf32, #tpu.memory_space<vmem>>, vector<1x8x128xf32>
    %139 = vector.shape_cast %138 : vector<1x8x128xf32> to vector<8x128xf32>
    %cst_76 = arith.constant dense<0.000000e+00> : vector<8x128xf32>
    %140 = tpu.matmul %137, %4, %cst_76 {dimension_numbers = #tpu.dot_dimension_numbers<[1], [0], [0], [1], [0, 0, 1, 1], [], []>} : vector<8x32xf32>, vector<32x128xf32>, vector<8x128xf32> -> vector<8x128xf32>
    %141 = arith.addf %139, %140 : vector<8x128xf32>
    %142 = vector.extract_strided_slice %141 {offsets = [0, 0], sizes = [8, 32], strides = [1, 1]} : vector<8x128xf32> to vector<8x32xf32>
    %143 = arith.negf %142 : vector<8x32xf32>
    %144 = math.exp %143 : vector<8x32xf32>
    %cst_77 = arith.constant 1.000000e+00 : f32
    %145 = vector.broadcast %cst_77 : f32 to vector<8x32xf32>
    %146 = arith.addf %145, %144 : vector<8x32xf32>
    %147 = arith.divf %145, %146 : vector<8x32xf32>
    %148 = vector.extract_strided_slice %141 {offsets = [0, 32], sizes = [8, 32], strides = [1, 1]} : vector<8x128xf32> to vector<8x32xf32>
    %149 = arith.negf %148 : vector<8x32xf32>
    %150 = math.exp %149 : vector<8x32xf32>
    %cst_78 = arith.constant 1.000000e+00 : f32
    %151 = vector.broadcast %cst_78 : f32 to vector<8x32xf32>
    %152 = arith.addf %151, %150 : vector<8x32xf32>
    %153 = arith.divf %151, %152 : vector<8x32xf32>
    %154 = vector.extract_strided_slice %141 {offsets = [0, 64], sizes = [8, 32], strides = [1, 1]} : vector<8x128xf32> to vector<8x32xf32>
    %155 = math.tanh %154 : vector<8x32xf32>
    %156 = vector.extract_strided_slice %141 {offsets = [0, 96], sizes = [8, 32], strides = [1, 1]} : vector<8x128xf32> to vector<8x32xf32>
    %157 = arith.negf %156 : vector<8x32xf32>
    %158 = math.exp %157 : vector<8x32xf32>
    %cst_79 = arith.constant 1.000000e+00 : f32
    %159 = vector.broadcast %cst_79 : f32 to vector<8x32xf32>
    %160 = arith.addf %159, %158 : vector<8x32xf32>
    %161 = arith.divf %159, %160 : vector<8x32xf32>
    %c0_80 = arith.constant 0 : index
    %c0_81 = arith.constant 0 : index
    %162 = vector.load %arg8[%c0_80, %c0_81] : memref<8x32xf32, #tpu.memory_space<vmem>>, vector<8x32xf32>
    %163 = arith.mulf %153, %162 : vector<8x32xf32>
    %164 = arith.mulf %147, %155 : vector<8x32xf32>
    %165 = arith.addf %163, %164 : vector<8x32xf32>
    %166 = math.tanh %165 : vector<8x32xf32>
    %167 = arith.mulf %161, %166 : vector<8x32xf32>
    %c0_82 = arith.constant 0 : index
    %c0_83 = arith.constant 0 : index
    %168 = vector.load %arg8[%c0_82, %c0_83] : memref<8x32xf32, #tpu.memory_space<vmem>>, vector<8x32xf32>
    tpu.vector_store %arg8[%c0_82, %c0_83], %165 {strides = array<i32>} : memref<8x32xf32, #tpu.memory_space<vmem>>, vector<8x32xf32>,
    %c0_84 = arith.constant 0 : index
    %c0_85 = arith.constant 0 : index
    %169 = vector.load %arg7[%c0_84, %c0_85] : memref<8x32xf32, #tpu.memory_space<vmem>>, vector<8x32xf32>
    tpu.vector_store %arg7[%c0_84, %c0_85], %167 {strides = array<i32>} : memref<8x32xf32, #tpu.memory_space<vmem>>, vector<8x32xf32>,
    %c3_86 = arith.constant 3 : index
    %c0_87 = arith.constant 0 : index
    %c0_88 = arith.constant 0 : index
    %170 = vector.load %arg5[%c3_86, %c0_87, %c0_88] : memref<8x8x32xf32, #tpu.memory_space<vmem>>, vector<1x8x32xf32>
    %171 = vector.shape_cast %170 : vector<1x8x32xf32> to vector<8x32xf32>
    %172 = vector.shape_cast %167 : vector<8x32xf32> to vector<1x8x32xf32>
    tpu.vector_store %arg5[%c3_86, %c0_87, %c0_88], %172 {strides = array<i32>} : memref<8x8x32xf32, #tpu.memory_space<vmem>>, vector<1x8x32xf32>,
    %c3_89 = arith.constant 3 : index
    %c0_90 = arith.constant 0 : index
    %c0_91 = arith.constant 0 : index
    %173 = vector.load %arg4[%c3_89, %c0_90, %c0_91] : memref<8x8x32xf32, #tpu.memory_space<vmem>>, vector<1x8x32xf32>
    %174 = vector.shape_cast %173 : vector<1x8x32xf32> to vector<8x32xf32>
    %175 = vector.broadcast %3 : f32 to vector<8x32xf32>
    %176 = arith.mulf %175, %167 : vector<8x32xf32>
    %177 = arith.addf %174, %176 : vector<8x32xf32>
    %c3_92 = arith.constant 3 : index
    %c0_93 = arith.constant 0 : index
    %c0_94 = arith.constant 0 : index
    %178 = vector.load %arg6[%c3_92, %c0_93, %c0_94] : memref<8x8x32xf32, #tpu.memory_space<vmem>>, vector<1x8x32xf32>
    %179 = vector.shape_cast %178 : vector<1x8x32xf32> to vector<8x32xf32>
    %180 = vector.shape_cast %177 : vector<8x32xf32> to vector<1x8x32xf32>
    tpu.vector_store %arg6[%c3_92, %c0_93, %c0_94], %180 {strides = array<i32>} : memref<8x8x32xf32, #tpu.memory_space<vmem>>, vector<1x8x32xf32>,
    %c0_95 = arith.constant 0 : index
    %c0_96 = arith.constant 0 : index
    %181 = vector.load %arg7[%c0_95, %c0_96] : memref<8x32xf32, #tpu.memory_space<vmem>>, vector<8x32xf32>
    %c4 = arith.constant 4 : index
    %c0_97 = arith.constant 0 : index
    %c0_98 = arith.constant 0 : index
    %182 = vector.load %arg2[%c4, %c0_97, %c0_98] : memref<8x8x128xf32, #tpu.memory_space<vmem>>, vector<1x8x128xf32>
    %183 = vector.shape_cast %182 : vector<1x8x128xf32> to vector<8x128xf32>
    %cst_99 = arith.constant dense<0.000000e+00> : vector<8x128xf32>
    %184 = tpu.matmul %181, %4, %cst_99 {dimension_numbers = #tpu.dot_dimension_numbers<[1], [0], [0], [1], [0, 0, 1, 1], [], []>} : vector<8x32xf32>, vector<32x128xf32>, vector<8x128xf32> -> vector<8x128xf32>
    %185 = arith.addf %183, %184 : vector<8x128xf32>
    %186 = vector.extract_strided_slice %185 {offsets = [0, 0], sizes = [8, 32], strides = [1, 1]} : vector<8x128xf32> to vector<8x32xf32>
    %187 = arith.negf %186 : vector<8x32xf32>
    %188 = math.exp %187 : vector<8x32xf32>
    %cst_100 = arith.constant 1.000000e+00 : f32
    %189 = vector.broadcast %cst_100 : f32 to vector<8x32xf32>
    %190 = arith.addf %189, %188 : vector<8x32xf32>
    %191 = arith.divf %189, %190 : vector<8x32xf32>
    %192 = vector.extract_strided_slice %185 {offsets = [0, 32], sizes = [8, 32], strides = [1, 1]} : vector<8x128xf32> to vector<8x32xf32>
    %193 = arith.negf %192 : vector<8x32xf32>
    %194 = math.exp %193 : vector<8x32xf32>
    %cst_101 = arith.constant 1.000000e+00 : f32
    %195 = vector.broadcast %cst_101 : f32 to vector<8x32xf32>
    %196 = arith.addf %195, %194 : vector<8x32xf32>
    %197 = arith.divf %195, %196 : vector<8x32xf32>
    %198 = vector.extract_strided_slice %185 {offsets = [0, 64], sizes = [8, 32], strides = [1, 1]} : vector<8x128xf32> to vector<8x32xf32>
    %199 = math.tanh %198 : vector<8x32xf32>
    %200 = vector.extract_strided_slice %185 {offsets = [0, 96], sizes = [8, 32], strides = [1, 1]} : vector<8x128xf32> to vector<8x32xf32>
    %201 = arith.negf %200 : vector<8x32xf32>
    %202 = math.exp %201 : vector<8x32xf32>
    %cst_102 = arith.constant 1.000000e+00 : f32
    %203 = vector.broadcast %cst_102 : f32 to vector<8x32xf32>
    %204 = arith.addf %203, %202 : vector<8x32xf32>
    %205 = arith.divf %203, %204 : vector<8x32xf32>
    %c0_103 = arith.constant 0 : index
    %c0_104 = arith.constant 0 : index
    %206 = vector.load %arg8[%c0_103, %c0_104] : memref<8x32xf32, #tpu.memory_space<vmem>>, vector<8x32xf32>
    %207 = arith.mulf %197, %206 : vector<8x32xf32>
    %208 = arith.mulf %191, %199 : vector<8x32xf32>
    %209 = arith.addf %207, %208 : vector<8x32xf32>
    %210 = math.tanh %209 : vector<8x32xf32>
    %211 = arith.mulf %205, %210 : vector<8x32xf32>
    %c0_105 = arith.constant 0 : index
    %c0_106 = arith.constant 0 : index
    %212 = vector.load %arg8[%c0_105, %c0_106] : memref<8x32xf32, #tpu.memory_space<vmem>>, vector<8x32xf32>
    tpu.vector_store %arg8[%c0_105, %c0_106], %209 {strides = array<i32>} : memref<8x32xf32, #tpu.memory_space<vmem>>, vector<8x32xf32>,
    %c0_107 = arith.constant 0 : index
    %c0_108 = arith.constant 0 : index
    %213 = vector.load %arg7[%c0_107, %c0_108] : memref<8x32xf32, #tpu.memory_space<vmem>>, vector<8x32xf32>
    tpu.vector_store %arg7[%c0_107, %c0_108], %211 {strides = array<i32>} : memref<8x32xf32, #tpu.memory_space<vmem>>, vector<8x32xf32>,
    %c4_109 = arith.constant 4 : index
    %c0_110 = arith.constant 0 : index
    %c0_111 = arith.constant 0 : index
    %214 = vector.load %arg5[%c4_109, %c0_110, %c0_111] : memref<8x8x32xf32, #tpu.memory_space<vmem>>, vector<1x8x32xf32>
    %215 = vector.shape_cast %214 : vector<1x8x32xf32> to vector<8x32xf32>
    %216 = vector.shape_cast %211 : vector<8x32xf32> to vector<1x8x32xf32>
    tpu.vector_store %arg5[%c4_109, %c0_110, %c0_111], %216 {strides = array<i32>} : memref<8x8x32xf32, #tpu.memory_space<vmem>>, vector<1x8x32xf32>,
    %c4_112 = arith.constant 4 : index
    %c0_113 = arith.constant 0 : index
    %c0_114 = arith.constant 0 : index
    %217 = vector.load %arg4[%c4_112, %c0_113, %c0_114] : memref<8x8x32xf32, #tpu.memory_space<vmem>>, vector<1x8x32xf32>
    %218 = vector.shape_cast %217 : vector<1x8x32xf32> to vector<8x32xf32>
    %219 = vector.broadcast %3 : f32 to vector<8x32xf32>
    %220 = arith.mulf %219, %211 : vector<8x32xf32>
    %221 = arith.addf %218, %220 : vector<8x32xf32>
    %c4_115 = arith.constant 4 : index
    %c0_116 = arith.constant 0 : index
    %c0_117 = arith.constant 0 : index
    %222 = vector.load %arg6[%c4_115, %c0_116, %c0_117] : memref<8x8x32xf32, #tpu.memory_space<vmem>>, vector<1x8x32xf32>
    %223 = vector.shape_cast %222 : vector<1x8x32xf32> to vector<8x32xf32>
    %224 = vector.shape_cast %221 : vector<8x32xf32> to vector<1x8x32xf32>
    tpu.vector_store %arg6[%c4_115, %c0_116, %c0_117], %224 {strides = array<i32>} : memref<8x8x32xf32, #tpu.memory_space<vmem>>, vector<1x8x32xf32>,
    %c0_118 = arith.constant 0 : index
    %c0_119 = arith.constant 0 : index
    %225 = vector.load %arg7[%c0_118, %c0_119] : memref<8x32xf32, #tpu.memory_space<vmem>>, vector<8x32xf32>
    %c5 = arith.constant 5 : index
    %c0_120 = arith.constant 0 : index
    %c0_121 = arith.constant 0 : index
    %226 = vector.load %arg2[%c5, %c0_120, %c0_121] : memref<8x8x128xf32, #tpu.memory_space<vmem>>, vector<1x8x128xf32>
    %227 = vector.shape_cast %226 : vector<1x8x128xf32> to vector<8x128xf32>
    %cst_122 = arith.constant dense<0.000000e+00> : vector<8x128xf32>
    %228 = tpu.matmul %225, %4, %cst_122 {dimension_numbers = #tpu.dot_dimension_numbers<[1], [0], [0], [1], [0, 0, 1, 1], [], []>} : vector<8x32xf32>, vector<32x128xf32>, vector<8x128xf32> -> vector<8x128xf32>
    %229 = arith.addf %227, %228 : vector<8x128xf32>
    %230 = vector.extract_strided_slice %229 {offsets = [0, 0], sizes = [8, 32], strides = [1, 1]} : vector<8x128xf32> to vector<8x32xf32>
    %231 = arith.negf %230 : vector<8x32xf32>
    %232 = math.exp %231 : vector<8x32xf32>
    %cst_123 = arith.constant 1.000000e+00 : f32
    %233 = vector.broadcast %cst_123 : f32 to vector<8x32xf32>
    %234 = arith.addf %233, %232 : vector<8x32xf32>
    %235 = arith.divf %233, %234 : vector<8x32xf32>
    %236 = vector.extract_strided_slice %229 {offsets = [0, 32], sizes = [8, 32], strides = [1, 1]} : vector<8x128xf32> to vector<8x32xf32>
    %237 = arith.negf %236 : vector<8x32xf32>
    %238 = math.exp %237 : vector<8x32xf32>
    %cst_124 = arith.constant 1.000000e+00 : f32
    %239 = vector.broadcast %cst_124 : f32 to vector<8x32xf32>
    %240 = arith.addf %239, %238 : vector<8x32xf32>
    %241 = arith.divf %239, %240 : vector<8x32xf32>
    %242 = vector.extract_strided_slice %229 {offsets = [0, 64], sizes = [8, 32], strides = [1, 1]} : vector<8x128xf32> to vector<8x32xf32>
    %243 = math.tanh %242 : vector<8x32xf32>
    %244 = vector.extract_strided_slice %229 {offsets = [0, 96], sizes = [8, 32], strides = [1, 1]} : vector<8x128xf32> to vector<8x32xf32>
    %245 = arith.negf %244 : vector<8x32xf32>
    %246 = math.exp %245 : vector<8x32xf32>
    %cst_125 = arith.constant 1.000000e+00 : f32
    %247 = vector.broadcast %cst_125 : f32 to vector<8x32xf32>
    %248 = arith.addf %247, %246 : vector<8x32xf32>
    %249 = arith.divf %247, %248 : vector<8x32xf32>
    %c0_126 = arith.constant 0 : index
    %c0_127 = arith.constant 0 : index
    %250 = vector.load %arg8[%c0_126, %c0_127] : memref<8x32xf32, #tpu.memory_space<vmem>>, vector<8x32xf32>
    %251 = arith.mulf %241, %250 : vector<8x32xf32>
    %252 = arith.mulf %235, %243 : vector<8x32xf32>
    %253 = arith.addf %251, %252 : vector<8x32xf32>
    %254 = math.tanh %253 : vector<8x32xf32>
    %255 = arith.mulf %249, %254 : vector<8x32xf32>
    %c0_128 = arith.constant 0 : index
    %c0_129 = arith.constant 0 : index
    %256 = vector.load %arg8[%c0_128, %c0_129] : memref<8x32xf32, #tpu.memory_space<vmem>>, vector<8x32xf32>
    tpu.vector_store %arg8[%c0_128, %c0_129], %253 {strides = array<i32>} : memref<8x32xf32, #tpu.memory_space<vmem>>, vector<8x32xf32>,
    %c0_130 = arith.constant 0 : index
    %c0_131 = arith.constant 0 : index
    %257 = vector.load %arg7[%c0_130, %c0_131] : memref<8x32xf32, #tpu.memory_space<vmem>>, vector<8x32xf32>
    tpu.vector_store %arg7[%c0_130, %c0_131], %255 {strides = array<i32>} : memref<8x32xf32, #tpu.memory_space<vmem>>, vector<8x32xf32>,
    %c5_132 = arith.constant 5 : index
    %c0_133 = arith.constant 0 : index
    %c0_134 = arith.constant 0 : index
    %258 = vector.load %arg5[%c5_132, %c0_133, %c0_134] : memref<8x8x32xf32, #tpu.memory_space<vmem>>, vector<1x8x32xf32>
    %259 = vector.shape_cast %258 : vector<1x8x32xf32> to vector<8x32xf32>
    %260 = vector.shape_cast %255 : vector<8x32xf32> to vector<1x8x32xf32>
    tpu.vector_store %arg5[%c5_132, %c0_133, %c0_134], %260 {strides = array<i32>} : memref<8x8x32xf32, #tpu.memory_space<vmem>>, vector<1x8x32xf32>,
    %c5_135 = arith.constant 5 : index
    %c0_136 = arith.constant 0 : index
    %c0_137 = arith.constant 0 : index
    %261 = vector.load %arg4[%c5_135, %c0_136, %c0_137] : memref<8x8x32xf32, #tpu.memory_space<vmem>>, vector<1x8x32xf32>
    %262 = vector.shape_cast %261 : vector<1x8x32xf32> to vector<8x32xf32>
    %263 = vector.broadcast %3 : f32 to vector<8x32xf32>
    %264 = arith.mulf %263, %255 : vector<8x32xf32>
    %265 = arith.addf %262, %264 : vector<8x32xf32>
    %c5_138 = arith.constant 5 : index
    %c0_139 = arith.constant 0 : index
    %c0_140 = arith.constant 0 : index
    %266 = vector.load %arg6[%c5_138, %c0_139, %c0_140] : memref<8x8x32xf32, #tpu.memory_space<vmem>>, vector<1x8x32xf32>
    %267 = vector.shape_cast %266 : vector<1x8x32xf32> to vector<8x32xf32>
    %268 = vector.shape_cast %265 : vector<8x32xf32> to vector<1x8x32xf32>
    tpu.vector_store %arg6[%c5_138, %c0_139, %c0_140], %268 {strides = array<i32>} : memref<8x8x32xf32, #tpu.memory_space<vmem>>, vector<1x8x32xf32>,
    %c0_141 = arith.constant 0 : index
    %c0_142 = arith.constant 0 : index
    %269 = vector.load %arg7[%c0_141, %c0_142] : memref<8x32xf32, #tpu.memory_space<vmem>>, vector<8x32xf32>
    %c6 = arith.constant 6 : index
    %c0_143 = arith.constant 0 : index
    %c0_144 = arith.constant 0 : index
    %270 = vector.load %arg2[%c6, %c0_143, %c0_144] : memref<8x8x128xf32, #tpu.memory_space<vmem>>, vector<1x8x128xf32>
    %271 = vector.shape_cast %270 : vector<1x8x128xf32> to vector<8x128xf32>
    %cst_145 = arith.constant dense<0.000000e+00> : vector<8x128xf32>
    %272 = tpu.matmul %269, %4, %cst_145 {dimension_numbers = #tpu.dot_dimension_numbers<[1], [0], [0], [1], [0, 0, 1, 1], [], []>} : vector<8x32xf32>, vector<32x128xf32>, vector<8x128xf32> -> vector<8x128xf32>
    %273 = arith.addf %271, %272 : vector<8x128xf32>
    %274 = vector.extract_strided_slice %273 {offsets = [0, 0], sizes = [8, 32], strides = [1, 1]} : vector<8x128xf32> to vector<8x32xf32>
    %275 = arith.negf %274 : vector<8x32xf32>
    %276 = math.exp %275 : vector<8x32xf32>
    %cst_146 = arith.constant 1.000000e+00 : f32
    %277 = vector.broadcast %cst_146 : f32 to vector<8x32xf32>
    %278 = arith.addf %277, %276 : vector<8x32xf32>
    %279 = arith.divf %277, %278 : vector<8x32xf32>
    %280 = vector.extract_strided_slice %273 {offsets = [0, 32], sizes = [8, 32], strides = [1, 1]} : vector<8x128xf32> to vector<8x32xf32>
    %281 = arith.negf %280 : vector<8x32xf32>
    %282 = math.exp %281 : vector<8x32xf32>
    %cst_147 = arith.constant 1.000000e+00 : f32
    %283 = vector.broadcast %cst_147 : f32 to vector<8x32xf32>
    %284 = arith.addf %283, %282 : vector<8x32xf32>
    %285 = arith.divf %283, %284 : vector<8x32xf32>
    %286 = vector.extract_strided_slice %273 {offsets = [0, 64], sizes = [8, 32], strides = [1, 1]} : vector<8x128xf32> to vector<8x32xf32>
    %287 = math.tanh %286 : vector<8x32xf32>
    %288 = vector.extract_strided_slice %273 {offsets = [0, 96], sizes = [8, 32], strides = [1, 1]} : vector<8x128xf32> to vector<8x32xf32>
    %289 = arith.negf %288 : vector<8x32xf32>
    %290 = math.exp %289 : vector<8x32xf32>
    %cst_148 = arith.constant 1.000000e+00 : f32
    %291 = vector.broadcast %cst_148 : f32 to vector<8x32xf32>
    %292 = arith.addf %291, %290 : vector<8x32xf32>
    %293 = arith.divf %291, %292 : vector<8x32xf32>
    %c0_149 = arith.constant 0 : index
    %c0_150 = arith.constant 0 : index
    %294 = vector.load %arg8[%c0_149, %c0_150] : memref<8x32xf32, #tpu.memory_space<vmem>>, vector<8x32xf32>
    %295 = arith.mulf %285, %294 : vector<8x32xf32>
    %296 = arith.mulf %279, %287 : vector<8x32xf32>
    %297 = arith.addf %295, %296 : vector<8x32xf32>
    %298 = math.tanh %297 : vector<8x32xf32>
    %299 = arith.mulf %293, %298 : vector<8x32xf32>
    %c0_151 = arith.constant 0 : index
    %c0_152 = arith.constant 0 : index
    %300 = vector.load %arg8[%c0_151, %c0_152] : memref<8x32xf32, #tpu.memory_space<vmem>>, vector<8x32xf32>
    tpu.vector_store %arg8[%c0_151, %c0_152], %297 {strides = array<i32>} : memref<8x32xf32, #tpu.memory_space<vmem>>, vector<8x32xf32>,
    %c0_153 = arith.constant 0 : index
    %c0_154 = arith.constant 0 : index
    %301 = vector.load %arg7[%c0_153, %c0_154] : memref<8x32xf32, #tpu.memory_space<vmem>>, vector<8x32xf32>
    tpu.vector_store %arg7[%c0_153, %c0_154], %299 {strides = array<i32>} : memref<8x32xf32, #tpu.memory_space<vmem>>, vector<8x32xf32>,
    %c6_155 = arith.constant 6 : index
    %c0_156 = arith.constant 0 : index
    %c0_157 = arith.constant 0 : index
    %302 = vector.load %arg5[%c6_155, %c0_156, %c0_157] : memref<8x8x32xf32, #tpu.memory_space<vmem>>, vector<1x8x32xf32>
    %303 = vector.shape_cast %302 : vector<1x8x32xf32> to vector<8x32xf32>
    %304 = vector.shape_cast %299 : vector<8x32xf32> to vector<1x8x32xf32>
    tpu.vector_store %arg5[%c6_155, %c0_156, %c0_157], %304 {strides = array<i32>} : memref<8x8x32xf32, #tpu.memory_space<vmem>>, vector<1x8x32xf32>,
    %c6_158 = arith.constant 6 : index
    %c0_159 = arith.constant 0 : index
    %c0_160 = arith.constant 0 : index
    %305 = vector.load %arg4[%c6_158, %c0_159, %c0_160] : memref<8x8x32xf32, #tpu.memory_space<vmem>>, vector<1x8x32xf32>
    %306 = vector.shape_cast %305 : vector<1x8x32xf32> to vector<8x32xf32>
    %307 = vector.broadcast %3 : f32 to vector<8x32xf32>
    %308 = arith.mulf %307, %299 : vector<8x32xf32>
    %309 = arith.addf %306, %308 : vector<8x32xf32>
    %c6_161 = arith.constant 6 : index
    %c0_162 = arith.constant 0 : index
    %c0_163 = arith.constant 0 : index
    %310 = vector.load %arg6[%c6_161, %c0_162, %c0_163] : memref<8x8x32xf32, #tpu.memory_space<vmem>>, vector<1x8x32xf32>
    %311 = vector.shape_cast %310 : vector<1x8x32xf32> to vector<8x32xf32>
    %312 = vector.shape_cast %309 : vector<8x32xf32> to vector<1x8x32xf32>
    tpu.vector_store %arg6[%c6_161, %c0_162, %c0_163], %312 {strides = array<i32>} : memref<8x8x32xf32, #tpu.memory_space<vmem>>, vector<1x8x32xf32>,
    %c0_164 = arith.constant 0 : index
    %c0_165 = arith.constant 0 : index
    %313 = vector.load %arg7[%c0_164, %c0_165] : memref<8x32xf32, #tpu.memory_space<vmem>>, vector<8x32xf32>
    %c7 = arith.constant 7 : index
    %c0_166 = arith.constant 0 : index
    %c0_167 = arith.constant 0 : index
    %314 = vector.load %arg2[%c7, %c0_166, %c0_167] : memref<8x8x128xf32, #tpu.memory_space<vmem>>, vector<1x8x128xf32>
    %315 = vector.shape_cast %314 : vector<1x8x128xf32> to vector<8x128xf32>
    %cst_168 = arith.constant dense<0.000000e+00> : vector<8x128xf32>
    %316 = tpu.matmul %313, %4, %cst_168 {dimension_numbers = #tpu.dot_dimension_numbers<[1], [0], [0], [1], [0, 0, 1, 1], [], []>} : vector<8x32xf32>, vector<32x128xf32>, vector<8x128xf32> -> vector<8x128xf32>
    %317 = arith.addf %315, %316 : vector<8x128xf32>
    %318 = vector.extract_strided_slice %317 {offsets = [0, 0], sizes = [8, 32], strides = [1, 1]} : vector<8x128xf32> to vector<8x32xf32>
    %319 = arith.negf %318 : vector<8x32xf32>
    %320 = math.exp %319 : vector<8x32xf32>
    %cst_169 = arith.constant 1.000000e+00 : f32
    %321 = vector.broadcast %cst_169 : f32 to vector<8x32xf32>
    %322 = arith.addf %321, %320 : vector<8x32xf32>
    %323 = arith.divf %321, %322 : vector<8x32xf32>
    %324 = vector.extract_strided_slice %317 {offsets = [0, 32], sizes = [8, 32], strides = [1, 1]} : vector<8x128xf32> to vector<8x32xf32>
    %325 = arith.negf %324 : vector<8x32xf32>
    %326 = math.exp %325 : vector<8x32xf32>
    %cst_170 = arith.constant 1.000000e+00 : f32
    %327 = vector.broadcast %cst_170 : f32 to vector<8x32xf32>
    %328 = arith.addf %327, %326 : vector<8x32xf32>
    %329 = arith.divf %327, %328 : vector<8x32xf32>
    %330 = vector.extract_strided_slice %317 {offsets = [0, 64], sizes = [8, 32], strides = [1, 1]} : vector<8x128xf32> to vector<8x32xf32>
    %331 = math.tanh %330 : vector<8x32xf32>
    %332 = vector.extract_strided_slice %317 {offsets = [0, 96], sizes = [8, 32], strides = [1, 1]} : vector<8x128xf32> to vector<8x32xf32>
    %333 = arith.negf %332 : vector<8x32xf32>
    %334 = math.exp %333 : vector<8x32xf32>
    %cst_171 = arith.constant 1.000000e+00 : f32
    %335 = vector.broadcast %cst_171 : f32 to vector<8x32xf32>
    %336 = arith.addf %335, %334 : vector<8x32xf32>
    %337 = arith.divf %335, %336 : vector<8x32xf32>
    %c0_172 = arith.constant 0 : index
    %c0_173 = arith.constant 0 : index
    %338 = vector.load %arg8[%c0_172, %c0_173] : memref<8x32xf32, #tpu.memory_space<vmem>>, vector<8x32xf32>
    %339 = arith.mulf %329, %338 : vector<8x32xf32>
    %340 = arith.mulf %323, %331 : vector<8x32xf32>
    %341 = arith.addf %339, %340 : vector<8x32xf32>
    %342 = math.tanh %341 : vector<8x32xf32>
    %343 = arith.mulf %337, %342 : vector<8x32xf32>
    %c0_174 = arith.constant 0 : index
    %c0_175 = arith.constant 0 : index
    %344 = vector.load %arg8[%c0_174, %c0_175] : memref<8x32xf32, #tpu.memory_space<vmem>>, vector<8x32xf32>
    tpu.vector_store %arg8[%c0_174, %c0_175], %341 {strides = array<i32>} : memref<8x32xf32, #tpu.memory_space<vmem>>, vector<8x32xf32>,
    %c0_176 = arith.constant 0 : index
    %c0_177 = arith.constant 0 : index
    %345 = vector.load %arg7[%c0_176, %c0_177] : memref<8x32xf32, #tpu.memory_space<vmem>>, vector<8x32xf32>
    tpu.vector_store %arg7[%c0_176, %c0_177], %343 {strides = array<i32>} : memref<8x32xf32, #tpu.memory_space<vmem>>, vector<8x32xf32>,
    %c7_178 = arith.constant 7 : index
    %c0_179 = arith.constant 0 : index
    %c0_180 = arith.constant 0 : index
    %346 = vector.load %arg5[%c7_178, %c0_179, %c0_180] : memref<8x8x32xf32, #tpu.memory_space<vmem>>, vector<1x8x32xf32>
    %347 = vector.shape_cast %346 : vector<1x8x32xf32> to vector<8x32xf32>
    %348 = vector.shape_cast %343 : vector<8x32xf32> to vector<1x8x32xf32>
    tpu.vector_store %arg5[%c7_178, %c0_179, %c0_180], %348 {strides = array<i32>} : memref<8x8x32xf32, #tpu.memory_space<vmem>>, vector<1x8x32xf32>,
    %c7_181 = arith.constant 7 : index
    %c0_182 = arith.constant 0 : index
    %c0_183 = arith.constant 0 : index
    %349 = vector.load %arg4[%c7_181, %c0_182, %c0_183] : memref<8x8x32xf32, #tpu.memory_space<vmem>>, vector<1x8x32xf32>
    %350 = vector.shape_cast %349 : vector<1x8x32xf32> to vector<8x32xf32>
    %351 = vector.broadcast %3 : f32 to vector<8x32xf32>
    %352 = arith.mulf %351, %343 : vector<8x32xf32>
    %353 = arith.addf %350, %352 : vector<8x32xf32>
    %c7_184 = arith.constant 7 : index
    %c0_185 = arith.constant 0 : index
    %c0_186 = arith.constant 0 : index
    %354 = vector.load %arg6[%c7_184, %c0_185, %c0_186] : memref<8x8x32xf32, #tpu.memory_space<vmem>>, vector<1x8x32xf32>
    %355 = vector.shape_cast %354 : vector<1x8x32xf32> to vector<8x32xf32>
    %356 = vector.shape_cast %353 : vector<8x32xf32> to vector<1x8x32xf32>
    tpu.vector_store %arg6[%c7_184, %c0_185, %c0_186], %356 {strides = array<i32>} : memref<8x8x32xf32, #tpu.memory_space<vmem>>, vector<1x8x32xf32>,
    return
  }
  func.func @transform_0(%arg0: i32) -> i32 {
    %c0_i32 = arith.constant 0 : i32
    %c0_i32_0 = arith.constant 0 : i32
    return %c0_i32 : i32
  }
  func.func @transform_1(%arg0: i32) -> (i32, i32, i32) {
    %c0_i32 = arith.constant 0 : i32
    %c0_i32_0 = arith.constant 0 : i32
    %c0_i32_1 = arith.constant 0 : i32
    return %arg0, %c0_i32, %c0_i32_0 : i32, i32, i32
  }
  func.func @transform_2(%arg0: i32) -> (i32, i32) {
    %c0_i32 = arith.constant 0 : i32
    %c0_i32_0 = arith.constant 0 : i32
    %c0_i32_1 = arith.constant 0 : i32
    return %c0_i32, %c0_i32_0 : i32, i32
  }
  func.func @transform_3(%arg0: i32) -> (i32, i32, i32) {
    %c0_i32 = arith.constant 0 : i32
    %c0_i32_0 = arith.constant 0 : i32
    %c0_i32_1 = arith.constant 0 : i32
    return %arg0, %c0_i32, %c0_i32_0 : i32, i32, i32
  }
  func.func @transform_4(%arg0: i32) -> (i32, i32, i32) {
    %c0_i32 = arith.constant 0 : i32
    %c0_i32_0 = arith.constant 0 : i32
    %c0_i32_1 = arith.constant 0 : i32
    return %arg0, %c0_i32, %c0_i32_0 : i32, i32, i32
  }
  func.func @transform_5(%arg0: i32) -> (i32, i32, i32) {
    %c0_i32 = arith.constant 0 : i32
    %c0_i32_0 = arith.constant 0 : i32
    %c0_i32_1 = arith.constant 0 : i32
    return %arg0, %c0_i32, %c0_i32_0 : i32, i32, i32
  }
}

</mosaic_0001>

<llo_original>
// kernel: ernn_forward.4
$region0: #{ernn_forward.4}
  #allocation0 [shape = 'u32[]', space=smem, size = 0x4, offset = 0x4, fixed_abs, tag = 'smem constant byte address 0x4 - core index']
  #allocation1 [shape = 'u32[144,128]{1,0:T(1,128)}', space=vmem, size = 0x12000, scoped, tag = 'internal scratch']
  %s0 = inlined_call_operand.hbm [shape: f32[128,32], index: 0, kind: input, shape index: {}]
  %s1 = inlined_call_operand.vmem [shape: f32[32,128], index: 1, kind: input, shape index: {}]
  %s2 = inlined_call_operand.vmem [shape: f32[1,128], index: 2, kind: input, shape index: {}]
  %s3 = inlined_call_operand.vmem [shape: f32[128,128], index: 3, kind: output, shape index: {}]
  %s4 = sld [smem:[#allocation0]]
  $region26: #{ernn_forward.4} parent=0
    _
  %s6 = ssub.s32 1, %s4
  %s7 = scalar_select 0, %s6, %s4
  $region1: #{ernn_forward.4} parent=0
    #allocation2 [shape = 'u8[65536]{0}', space=vmem, size = 0x10000, scoped, tag = 'input window, operand 0, single buffered']
    #allocation3 [shape = 's32[1]{0}', space=sflag, size = 0x4, scoped, tag = 'scoped memory for ernn_forward.4']
    %8 = vsyncpa [#allocation3], 0
    // Predicated region
    $region2: #{ernn_forward.4} parent=1 // pred_check
      _
    $region3: #{ernn_forward.4} parent=1 // pred_check_branch
      %10 = sbr.rel (0) target = $region5
    $region4: #{ernn_forward.4} parent=1 // pred_region
      %s12 = ssub.s32 2048, 2048
      %13 = vsyncadd [#allocation3], %s12
      %s14 = sshll.u32 [#allocation2], 4
      %s15 = int_to_ptr.vmem [resolvable:$true] %s14
      %20 = dma.hbm_to_vmem [thread:$0]  %s0, 2048, %s15, [#allocation3], 128, 128, 8
    $region5: #{ernn_forward.4} parent=1 // pred_fallthru
      _
    // Predicated region
    $region6: #{ernn_forward.4} parent=1 // pred_check
      _
    $region7: #{ernn_forward.4} parent=1 // pred_check_branch
      %22 = sbr.rel (0) target = $region9
    $region8: #{ernn_forward.4} parent=1 // pred_region
      _
    $region9: #{ernn_forward.4} parent=1 // pred_fallthru
      _
    // Predicated region
    $region10: #{ernn_forward.4} parent=1 // pred_check
      _
    $region11: #{ernn_forward.4} parent=1 // pred_check_branch
      %24 = sbr.rel (0) target = $region13
    $region12: #{ernn_forward.4} parent=1 // pred_region
      _
    $region13: #{ernn_forward.4} parent=1 // pred_fallthru
      _
    // Predicated region
    $region14: #{ernn_forward.4} parent=1 // pred_check
      _
    $region15: #{ernn_forward.4} parent=1 // pred_check_branch
      %26 = sbr.rel (0) target = $region17
    $region16: #{ernn_forward.4} parent=1 // pred_region
      %27 = dma.done [#allocation3], 2048
    $region17: #{ernn_forward.4} parent=1 // pred_fallthru
      _
    %v28 = vld [vmem:[#allocation2] sm:$0xff]
    %v29 = vld [vmem:[#allocation2 + $0x8] sm:$0xff]
    %v30 = vld [vmem:[#allocation2 + $0x10] sm:$0xff]
    %v31 = vld [vmem:[#allocation2 + $0x18] sm:$0xff]
    %v32 = vld [vmem:[#allocation2 + $0x20] sm:$0xff]
    %v33 = vld [vmem:[#allocation2 + $0x28] sm:$0xff]
    %v34 = vld [vmem:[#allocation2 + $0x30] sm:$0xff]
    %v35 = vld [vmem:[#allocation2 + $0x38] sm:$0xff]
    %v36 = vld [vmem:[#allocation2 + $0x40] sm:$0xff]
    %v37 = vld [vmem:[#allocation2 + $0x48] sm:$0xff]
    %v38 = vld [vmem:[#allocation2 + $0x50] sm:$0xff]
    %v39 = vld [vmem:[#allocation2 + $0x58] sm:$0xff]
    %v40 = vld [vmem:[#allocation2 + $0x60] sm:$0xff]
    %v41 = vld [vmem:[#allocation2 + $0x68] sm:$0xff]
    %v42 = vld [vmem:[#allocation2 + $0x70] sm:$0xff]
    %v43 = vld [vmem:[#allocation2 + $0x78] sm:$0xff]
    %v44 = vld [vmem:[%s1] sm:$0xff]
    %v45 = vld [vmem:[%s1 + $0x8] sm:$0xff]
    %v46 = vld [vmem:[%s1 + $0x10] sm:$0xff]
    %v47 = vld [vmem:[%s1 + $0x18] sm:$0xff]
    %v48 = vld [vmem:[%s2] sm:$0x1]
    %v50 = vlaneseq
    %v51 = vshrl.u32 %v50, 7
    %v52 = vsub.s32 0, %v51
    %v53 = vrot.slane %v48, %v52
    %vm55 = vcmask 261120
    %v57 = vsel %vm55, %v28, 0
    %v60 = vsel %vm55, %v29, 0
    %v63 = vsel %vm55, %v30, 0
    %v66 = vsel %vm55, %v31, 0
    %v69 = vsel %vm55, %v32, 0
    %v72 = vsel %vm55, %v33, 0
    %v75 = vsel %vm55, %v34, 0
    %v78 = vsel %vm55, %v35, 0
    %v81 = vsel %vm55, %v36, 0
    %v84 = vsel %vm55, %v37, 0
    %v87 = vsel %vm55, %v38, 0
    %v90 = vsel %vm55, %v39, 0
    %v93 = vsel %vm55, %v40, 0
    %v96 = vsel %vm55, %v41, 0
    %v99 = vsel %vm55, %v42, 0
    %v102 = vsel %vm55, %v43, 0
    %104 = vmatprep.subr.mxu0 0.0
    %105 = vmatpush1.msra.mxu0 %v44
    %106 = vmatprep.subr.mxu0 0.0
    %107 = vmatpush1.msra.mxu0 %v45
    %108 = vmatprep.subr.mxu0 0.0
    %109 = vmatpush1.msra.mxu0 %v46
    %110 = vmatprep.subr.mxu0 0.0
    %111 = vmatpush1.msra.mxu0 %v47
    %112 = vmatprep.subr.mxu0 0.0
    %113 = vmatpush1.msra.mxu0 0.0
    %114 = vmatprep.subr.mxu0 0.0
    %115 = vmatpush1.msra.mxu0 0.0
    %116 = vmatprep.subr.mxu0 0.0
    %117 = vmatpush1.msra.mxu0 0.0
    %118 = vmatprep.subr.mxu0 0.0
    %119 = vmatpush1.msra.mxu0 0.0
    %120 = vmatprep.subr.mxu0 0.0
    %121 = vmatpush1.msra.mxu0 0.0
    %122 = vmatprep.subr.mxu0 0.0
    %123 = vmatpush1.msra.mxu0 0.0
    %124 = vmatprep.subr.mxu0 0.0
    %125 = vmatpush1.msra.mxu0 0.0
    %126 = vmatprep.subr.mxu0 0.0
    %127 = vmatpush1.msra.mxu0 0.0
    %128 = vmatprep.subr.mxu0 0.0
    %129 = vmatpush1.msra.mxu0 0.0
    %130 = vmatprep.subr.mxu0 0.0
    %131 = vmatpush1.msra.mxu0 0.0
    %132 = vmatprep.subr.mxu0 0.0
    %133 = vmatpush1.msra.mxu0 0.0
    %134 = vmatprep.subr.mxu0 0.0
    %135 = vmatpush1.msra.mxu0 0.0
    %136 = vmatprep.subr.mxu0 0.0
    %137 = vmatpush1.msra.mxu0 0.0
    %138 = vmatprep.subr.mxu0 0.0
    %139 = vmatpush1.msra.mxu0 0.0
    %140 = vmatprep.subr.mxu0 0.0
    %141 = vmatpush1.msra.mxu0 0.0
    %142 = vmatprep.subr.mxu0 0.0
    %143 = vmatpush1.msra.mxu0 0.0
    %144 = vmatprep.subr.mxu0 0.0
    %145 = vmatpush1.msra.mxu0 0.0
    %146 = vmatprep.subr.mxu0 0.0
    %147 = vmatpush1.msra.mxu0 0.0
    %148 = vmatprep.subr.mxu0 0.0
    %149 = vmatpush1.msra.mxu0 0.0
    %150 = vmatprep.subr.mxu0 0.0
    %151 = vmatpush1.msra.mxu0 0.0
    %152 = vmatprep.subr.mxu0 0.0
    %153 = vmatpush1.msra.mxu0 0.0
    %154 = vmatprep.subr.mxu0 0.0
    %155 = vmatpush1.msra.mxu0 0.0
    %156 = vmatprep.subr.mxu0 0.0
    %157 = vmatpush1.msra.mxu0 0.0
    %158 = vmatprep.subr.mxu0 0.0
    %159 = vmatpush1.msra.mxu0 0.0
    %160 = vmatprep.subr.mxu0 0.0
    %161 = vmatpush1.msra.mxu0 0.0
    %162 = vmatprep.subr.mxu0 0.0
    %163 = vmatpush1.msra.mxu0 0.0
    %164 = vmatprep.subr.mxu0 0.0
    %165 = vmatpush1.msra.mxu0 0.0
    %166 = vmatprep.subr.mxu0 0.0
    %167 = vmatpush1.msra.mxu0 0.0
    %168 = vmatprep.mubr.f32.mxu0 0.0
    %169 = vmatmul.mubr.f32.gmra.mrb[0].mxu0 %v57
    %v170 = vpop.f32.mrb[0].mxu0
    %v171 = vadd.f32 %v53, %v170
    %v172 = vpop.f32.mrb[0].mxu0
    %173 = vmatprep.mubr.f32.mxu0 0.0
    %174 = vmatmul.mubr.f32.gmra.mrb[0].mxu0 %v60
    %v175 = vpop.f32.mrb[0].mxu0
    %v176 = vadd.f32 %v53, %v175
    %v177 = vpop.f32.mrb[0].mxu0
    %178 = vmatprep.mubr.f32.mxu0 0.0
    %179 = vmatmul.mubr.f32.gmra.mrb[0].mxu0 %v63
    %v180 = vpop.f32.mrb[0].mxu0
    %v181 = vadd.f32 %v53, %v180
    %v182 = vpop.f32.mrb[0].mxu0
    %183 = vmatprep.mubr.f32.mxu0 0.0
    %184 = vmatmul.mubr.f32.gmra.mrb[0].mxu0 %v66
    %v185 = vpop.f32.mrb[0].mxu0
    %v186 = vadd.f32 %v53, %v185
    %v187 = vpop.f32.mrb[0].mxu0
    %188 = vmatprep.mubr.f32.mxu0 0.0
    %189 = vmatmul.mubr.f32.gmra.mrb[0].mxu0 %v69
    %v190 = vpop.f32.mrb[0].mxu0
    %v191 = vadd.f32 %v53, %v190
    %v192 = vpop.f32.mrb[0].mxu0
    %193 = vmatprep.mubr.f32.mxu0 0.0
    %194 = vmatmul.mubr.f32.gmra.mrb[0].mxu0 %v72
    %v195 = vpop.f32.mrb[0].mxu0
    %v196 = vadd.f32 %v53, %v195
    %v197 = vpop.f32.mrb[0].mxu0
    %198 = vmatprep.mubr.f32.mxu0 0.0
    %199 = vmatmul.mubr.f32.gmra.mrb[0].mxu0 %v75
    %v200 = vpop.f32.mrb[0].mxu0
    %v201 = vadd.f32 %v53, %v200
    %v202 = vpop.f32.mrb[0].mxu0
    %203 = vmatprep.mubr.f32.mxu0 0.0
    %204 = vmatmul.mubr.f32.gmra.mrb[0].mxu0 %v78
    %v205 = vpop.f32.mrb[0].mxu0
    %v206 = vadd.f32 %v53, %v205
    %v207 = vpop.f32.mrb[0].mxu0
    %208 = vmatprep.mubr.f32.mxu0 0.0
    %209 = vmatmul.mubr.f32.gmra.mrb[0].mxu0 %v81
    %v210 = vpop.f32.mrb[0].mxu0
    %v211 = vadd.f32 %v53, %v210
    %v212 = vpop.f32.mrb[0].mxu0
    %213 = vmatprep.mubr.f32.mxu0 0.0
    %214 = vmatmul.mubr.f32.gmra.mrb[0].mxu0 %v84
    %v215 = vpop.f32.mrb[0].mxu0
    %v216 = vadd.f32 %v53, %v215
    %v217 = vpop.f32.mrb[0].mxu0
    %218 = vmatprep.mubr.f32.mxu0 0.0
    %219 = vmatmul.mubr.f32.gmra.mrb[0].mxu0 %v87
    %v220 = vpop.f32.mrb[0].mxu0
    %v221 = vadd.f32 %v53, %v220
    %v222 = vpop.f32.mrb[0].mxu0
    %223 = vmatprep.mubr.f32.mxu0 0.0
    %224 = vmatmul.mubr.f32.gmra.mrb[0].mxu0 %v90
    %v225 = vpop.f32.mrb[0].mxu0
    %v226 = vadd.f32 %v53, %v225
    %v227 = vpop.f32.mrb[0].mxu0
    %228 = vmatprep.mubr.f32.mxu0 0.0
    %229 = vmatmul.mubr.f32.gmra.mrb[0].mxu0 %v93
    %v230 = vpop.f32.mrb[0].mxu0
    %v231 = vadd.f32 %v53, %v230
    %v232 = vpop.f32.mrb[0].mxu0
    %233 = vmatprep.mubr.f32.mxu0 0.0
    %234 = vmatmul.mubr.f32.gmra.mrb[0].mxu0 %v96
    %v235 = vpop.f32.mrb[0].mxu0
    %v236 = vadd.f32 %v53, %v235
    %v237 = vpop.f32.mrb[0].mxu0
    %238 = vmatprep.mubr.f32.mxu0 0.0
    %239 = vmatmul.mubr.f32.gmra.mrb[0].mxu0 %v99
    %v240 = vpop.f32.mrb[0].mxu0
    %v241 = vadd.f32 %v53, %v240
    %v242 = vpop.f32.mrb[0].mxu0
    %243 = vmatprep.mubr.f32.mxu0 0.0
    %244 = vmatmul.mubr.f32.gmra.mrb[0].mxu0 %v102
    %v245 = vpop.f32.mrb[0].mxu0
    %v246 = vadd.f32 %v53, %v245
    %v247 = vpop.f32.mrb[0].mxu0
    %248 = vdwg.mxu0
    %249 = vst [vmem:[%s3] sm:$0xff] %v171
    %250 = vst [vmem:[%s3 + $0x8] sm:$0xff] %v176
    %251 = vst [vmem:[%s3 + $0x10] sm:$0xff] %v181
    %252 = vst [vmem:[%s3 + $0x18] sm:$0xff] %v186
    %253 = vst [vmem:[%s3 + $0x20] sm:$0xff] %v191
    %254 = vst [vmem:[%s3 + $0x28] sm:$0xff] %v196
    %255 = vst [vmem:[%s3 + $0x30] sm:$0xff] %v201
    %256 = vst [vmem:[%s3 + $0x38] sm:$0xff] %v206
    %257 = vst [vmem:[%s3 + $0x40] sm:$0xff] %v211
    %258 = vst [vmem:[%s3 + $0x48] sm:$0xff] %v216
    %259 = vst [vmem:[%s3 + $0x50] sm:$0xff] %v221
    %260 = vst [vmem:[%s3 + $0x58] sm:$0xff] %v226
    %261 = vst [vmem:[%s3 + $0x60] sm:$0xff] %v231
    %262 = vst [vmem:[%s3 + $0x68] sm:$0xff] %v236
    %263 = vst [vmem:[%s3 + $0x70] sm:$0xff] %v241
    %264 = vst [vmem:[%s3 + $0x78] sm:$0xff] %v246
    // Predicated region
    $region18: #{ernn_forward.4} parent=1 // pred_check
      _
    $region19: #{ernn_forward.4} parent=1 // pred_check_branch
      %266 = sbr.rel (0) target = $region21
    $region20: #{ernn_forward.4} parent=1 // pred_region
      _
    $region21: #{ernn_forward.4} parent=1 // pred_fallthru
      _
    // Predicated region
    $region22: #{ernn_forward.4} parent=1 // pred_check
      _
    $region23: #{ernn_forward.4} parent=1 // pred_check_branch
      %268 = sbr.rel (0) target = $region25
    $region24: #{ernn_forward.4} parent=1 // pred_region
      _
    $region25: #{ernn_forward.4} parent=1 // pred_fallthru
      _
    %269 = vsyncpa [#allocation3], 1

// kernel: ernn_forward.6
$region0: #{ernn_forward.6}
  #allocation0 [shape = 'u32[]', space=smem, size = 0x4, offset = 0x4, fixed_abs, tag = 'smem constant byte address 0x4 - core index']
  #allocation1 [shape = 'u32[144,128]{1,0:T(1,128)}', space=vmem, size = 0x12000, scoped, tag = 'internal scratch']
  %s0 = inlined_call_operand.vmem [shape: f32[128,32], index: 0, kind: input, shape index: {}]
  %s1 = inlined_call_operand.vmem [shape: f32[32,128], index: 1, kind: input, shape index: {}]
  %s2 = inlined_call_operand.vmem [shape: f32[1,128], index: 2, kind: input, shape index: {}]
  %s3 = inlined_call_operand.vmem [shape: f32[128,128], index: 3, kind: output, shape index: {}]
  %s4 = sld [smem:[#allocation0]]
  $region22: #{ernn_forward.6} parent=0
    _
  %s6 = ssub.s32 1, %s4
  %s7 = scalar_select 0, %s6, %s4
  // Predicated region
  $region2: #{ernn_forward.6} parent=0 // pred_check
    _
  $region3: #{ernn_forward.6} parent=0 // pred_check_branch
    %9 = sbr.rel (0) target = $region5
  $region4: #{ernn_forward.6} parent=0 // pred_region
    _
  $region5: #{ernn_forward.6} parent=0 // pred_fallthru
    _
  // Predicated region
  $region6: #{ernn_forward.6} parent=0 // pred_check
    _
  $region7: #{ernn_forward.6} parent=0 // pred_check_branch
    %11 = sbr.rel (0) target = $region9
  $region8: #{ernn_forward.6} parent=0 // pred_region
    _
  $region9: #{ernn_forward.6} parent=0 // pred_fallthru
    _
  // Predicated region
  $region10: #{ernn_forward.6} parent=0 // pred_check
    _
  $region11: #{ernn_forward.6} parent=0 // pred_check_branch
    %13 = sbr.rel (0) target = $region13
  $region12: #{ernn_forward.6} parent=0 // pred_region
    _
  $region13: #{ernn_forward.6} parent=0 // pred_fallthru
    _
  %v14 = vld [vmem:[%s0] sm:$0xff]
  %v15 = vld [vmem:[%s0 + $0x8] sm:$0xff]
  %v16 = vld [vmem:[%s0 + $0x10] sm:$0xff]
  %v17 = vld [vmem:[%s0 + $0x18] sm:$0xff]
  %v18 = vld [vmem:[%s0 + $0x20] sm:$0xff]
  %v19 = vld [vmem:[%s0 + $0x28] sm:$0xff]
  %v20 = vld [vmem:[%s0 + $0x30] sm:$0xff]
  %v21 = vld [vmem:[%s0 + $0x38] sm:$0xff]
  %v22 = vld [vmem:[%s0 + $0x40] sm:$0xff]
  %v23 = vld [vmem:[%s0 + $0x48] sm:$0xff]
  %v24 = vld [vmem:[%s0 + $0x50] sm:$0xff]
  %v25 = vld [vmem:[%s0 + $0x58] sm:$0xff]
  %v26 = vld [vmem:[%s0 + $0x60] sm:$0xff]
  %v27 = vld [vmem:[%s0 + $0x68] sm:$0xff]
  %v28 = vld [vmem:[%s0 + $0x70] sm:$0xff]
  %v29 = vld [vmem:[%s0 + $0x78] sm:$0xff]
  %v30 = vld [vmem:[%s1] sm:$0xff]
  %v31 = vld [vmem:[%s1 + $0x8] sm:$0xff]
  %v32 = vld [vmem:[%s1 + $0x10] sm:$0xff]
  %v33 = vld [vmem:[%s1 + $0x18] sm:$0xff]
  %v34 = vld [vmem:[%s2] sm:$0x1]
  %v36 = vlaneseq
  %v37 = vshrl.u32 %v36, 7
  %v38 = vsub.s32 0, %v37
  %v39 = vrot.slane %v34, %v38
  %vm41 = vcmask 261120
  %v43 = vsel %vm41, %v14, 0
  %v46 = vsel %vm41, %v15, 0
  %v49 = vsel %vm41, %v16, 0
  %v52 = vsel %vm41, %v17, 0
  %v55 = vsel %vm41, %v18, 0
  %v58 = vsel %vm41, %v19, 0
  %v61 = vsel %vm41, %v20, 0
  %v64 = vsel %vm41, %v21, 0
  %v67 = vsel %vm41, %v22, 0
  %v70 = vsel %vm41, %v23, 0
  %v73 = vsel %vm41, %v24, 0
  %v76 = vsel %vm41, %v25, 0
  %v79 = vsel %vm41, %v26, 0
  %v82 = vsel %vm41, %v27, 0
  %v85 = vsel %vm41, %v28, 0
  %v88 = vsel %vm41, %v29, 0
  %90 = vmatprep.subr.mxu0 0.0
  %91 = vmatpush1.msra.mxu0 %v30
  %92 = vmatprep.subr.mxu0 0.0
  %93 = vmatpush1.msra.mxu0 %v31
  %94 = vmatprep.subr.mxu0 0.0
  %95 = vmatpush1.msra.mxu0 %v32
  %96 = vmatprep.subr.mxu0 0.0
  %97 = vmatpush1.msra.mxu0 %v33
  %98 = vmatprep.subr.mxu0 0.0
  %99 = vmatpush1.msra.mxu0 0.0
  %100 = vmatprep.subr.mxu0 0.0
  %101 = vmatpush1.msra.mxu0 0.0
  %102 = vmatprep.subr.mxu0 0.0
  %103 = vmatpush1.msra.mxu0 0.0
  %104 = vmatprep.subr.mxu0 0.0
  %105 = vmatpush1.msra.mxu0 0.0
  %106 = vmatprep.subr.mxu0 0.0
  %107 = vmatpush1.msra.mxu0 0.0
  %108 = vmatprep.subr.mxu0 0.0
  %109 = vmatpush1.msra.mxu0 0.0
  %110 = vmatprep.subr.mxu0 0.0
  %111 = vmatpush1.msra.mxu0 0.0
  %112 = vmatprep.subr.mxu0 0.0
  %113 = vmatpush1.msra.mxu0 0.0
  %114 = vmatprep.subr.mxu0 0.0
  %115 = vmatpush1.msra.mxu0 0.0
  %116 = vmatprep.subr.mxu0 0.0
  %117 = vmatpush1.msra.mxu0 0.0
  %118 = vmatprep.subr.mxu0 0.0
  %119 = vmatpush1.msra.mxu0 0.0
  %120 = vmatprep.subr.mxu0 0.0
  %121 = vmatpush1.msra.mxu0 0.0
  %122 = vmatprep.subr.mxu0 0.0
  %123 = vmatpush1.msra.mxu0 0.0
  %124 = vmatprep.subr.mxu0 0.0
  %125 = vmatpush1.msra.mxu0 0.0
  %126 = vmatprep.subr.mxu0 0.0
  %127 = vmatpush1.msra.mxu0 0.0
  %128 = vmatprep.subr.mxu0 0.0
  %129 = vmatpush1.msra.mxu0 0.0
  %130 = vmatprep.subr.mxu0 0.0
  %131 = vmatpush1.msra.mxu0 0.0
  %132 = vmatprep.subr.mxu0 0.0
  %133 = vmatpush1.msra.mxu0 0.0
  %134 = vmatprep.subr.mxu0 0.0
  %135 = vmatpush1.msra.mxu0 0.0
  %136 = vmatprep.subr.mxu0 0.0
  %137 = vmatpush1.msra.mxu0 0.0
  %138 = vmatprep.subr.mxu0 0.0
  %139 = vmatpush1.msra.mxu0 0.0
  %140 = vmatprep.subr.mxu0 0.0
  %141 = vmatpush1.msra.mxu0 0.0
  %142 = vmatprep.subr.mxu0 0.0
  %143 = vmatpush1.msra.mxu0 0.0
  %144 = vmatprep.subr.mxu0 0.0
  %145 = vmatpush1.msra.mxu0 0.0
  %146 = vmatprep.subr.mxu0 0.0
  %147 = vmatpush1.msra.mxu0 0.0
  %148 = vmatprep.subr.mxu0 0.0
  %149 = vmatpush1.msra.mxu0 0.0
  %150 = vmatprep.subr.mxu0 0.0
  %151 = vmatpush1.msra.mxu0 0.0
  %152 = vmatprep.subr.mxu0 0.0
  %153 = vmatpush1.msra.mxu0 0.0
  %154 = vmatprep.mubr.f32.mxu0 0.0
  %155 = vmatmul.mubr.f32.gmra.mrb[0].mxu0 %v43
  %v156 = vpop.f32.mrb[0].mxu0
  %v157 = vadd.f32 %v39, %v156
  %v158 = vpop.f32.mrb[0].mxu0
  %159 = vmatprep.mubr.f32.mxu0 0.0
  %160 = vmatmul.mubr.f32.gmra.mrb[0].mxu0 %v46
  %v161 = vpop.f32.mrb[0].mxu0
  %v162 = vadd.f32 %v39, %v161
  %v163 = vpop.f32.mrb[0].mxu0
  %164 = vmatprep.mubr.f32.mxu0 0.0
  %165 = vmatmul.mubr.f32.gmra.mrb[0].mxu0 %v49
  %v166 = vpop.f32.mrb[0].mxu0
  %v167 = vadd.f32 %v39, %v166
  %v168 = vpop.f32.mrb[0].mxu0
  %169 = vmatprep.mubr.f32.mxu0 0.0
  %170 = vmatmul.mubr.f32.gmra.mrb[0].mxu0 %v52
  %v171 = vpop.f32.mrb[0].mxu0
  %v172 = vadd.f32 %v39, %v171
  %v173 = vpop.f32.mrb[0].mxu0
  %174 = vmatprep.mubr.f32.mxu0 0.0
  %175 = vmatmul.mubr.f32.gmra.mrb[0].mxu0 %v55
  %v176 = vpop.f32.mrb[0].mxu0
  %v177 = vadd.f32 %v39, %v176
  %v178 = vpop.f32.mrb[0].mxu0
  %179 = vmatprep.mubr.f32.mxu0 0.0
  %180 = vmatmul.mubr.f32.gmra.mrb[0].mxu0 %v58
  %v181 = vpop.f32.mrb[0].mxu0
  %v182 = vadd.f32 %v39, %v181
  %v183 = vpop.f32.mrb[0].mxu0
  %184 = vmatprep.mubr.f32.mxu0 0.0
  %185 = vmatmul.mubr.f32.gmra.mrb[0].mxu0 %v61
  %v186 = vpop.f32.mrb[0].mxu0
  %v187 = vadd.f32 %v39, %v186
  %v188 = vpop.f32.mrb[0].mxu0
  %189 = vmatprep.mubr.f32.mxu0 0.0
  %190 = vmatmul.mubr.f32.gmra.mrb[0].mxu0 %v64
  %v191 = vpop.f32.mrb[0].mxu0
  %v192 = vadd.f32 %v39, %v191
  %v193 = vpop.f32.mrb[0].mxu0
  %194 = vmatprep.mubr.f32.mxu0 0.0
  %195 = vmatmul.mubr.f32.gmra.mrb[0].mxu0 %v67
  %v196 = vpop.f32.mrb[0].mxu0
  %v197 = vadd.f32 %v39, %v196
  %v198 = vpop.f32.mrb[0].mxu0
  %199 = vmatprep.mubr.f32.mxu0 0.0
  %200 = vmatmul.mubr.f32.gmra.mrb[0].mxu0 %v70
  %v201 = vpop.f32.mrb[0].mxu0
  %v202 = vadd.f32 %v39, %v201
  %v203 = vpop.f32.mrb[0].mxu0
  %204 = vmatprep.mubr.f32.mxu0 0.0
  %205 = vmatmul.mubr.f32.gmra.mrb[0].mxu0 %v73
  %v206 = vpop.f32.mrb[0].mxu0
  %v207 = vadd.f32 %v39, %v206
  %v208 = vpop.f32.mrb[0].mxu0
  %209 = vmatprep.mubr.f32.mxu0 0.0
  %210 = vmatmul.mubr.f32.gmra.mrb[0].mxu0 %v76
  %v211 = vpop.f32.mrb[0].mxu0
  %v212 = vadd.f32 %v39, %v211
  %v213 = vpop.f32.mrb[0].mxu0
  %214 = vmatprep.mubr.f32.mxu0 0.0
  %215 = vmatmul.mubr.f32.gmra.mrb[0].mxu0 %v79
  %v216 = vpop.f32.mrb[0].mxu0
  %v217 = vadd.f32 %v39, %v216
  %v218 = vpop.f32.mrb[0].mxu0
  %219 = vmatprep.mubr.f32.mxu0 0.0
  %220 = vmatmul.mubr.f32.gmra.mrb[0].mxu0 %v82
  %v221 = vpop.f32.mrb[0].mxu0
  %v222 = vadd.f32 %v39, %v221
  %v223 = vpop.f32.mrb[0].mxu0
  %224 = vmatprep.mubr.f32.mxu0 0.0
  %225 = vmatmul.mubr.f32.gmra.mrb[0].mxu0 %v85
  %v226 = vpop.f32.mrb[0].mxu0
  %v227 = vadd.f32 %v39, %v226
  %v228 = vpop.f32.mrb[0].mxu0
  %229 = vmatprep.mubr.f32.mxu0 0.0
  %230 = vmatmul.mubr.f32.gmra.mrb[0].mxu0 %v88
  %v231 = vpop.f32.mrb[0].mxu0
  %v232 = vadd.f32 %v39, %v231
  %v233 = vpop.f32.mrb[0].mxu0
  %234 = vdwg.mxu0
  %235 = vst [vmem:[%s3] sm:$0xff] %v157
  %236 = vst [vmem:[%s3 + $0x8] sm:$0xff] %v162
  %237 = vst [vmem:[%s3 + $0x10] sm:$0xff] %v167
  %238 = vst [vmem:[%s3 + $0x18] sm:$0xff] %v172
  %239 = vst [vmem:[%s3 + $0x20] sm:$0xff] %v177
  %240 = vst [vmem:[%s3 + $0x28] sm:$0xff] %v182
  %241 = vst [vmem:[%s3 + $0x30] sm:$0xff] %v187
  %242 = vst [vmem:[%s3 + $0x38] sm:$0xff] %v192
  %243 = vst [vmem:[%s3 + $0x40] sm:$0xff] %v197
  %244 = vst [vmem:[%s3 + $0x48] sm:$0xff] %v202
  %245 = vst [vmem:[%s3 + $0x50] sm:$0xff] %v207
  %246 = vst [vmem:[%s3 + $0x58] sm:$0xff] %v212
  %247 = vst [vmem:[%s3 + $0x60] sm:$0xff] %v217
  %248 = vst [vmem:[%s3 + $0x68] sm:$0xff] %v222
  %249 = vst [vmem:[%s3 + $0x70] sm:$0xff] %v227
  %250 = vst [vmem:[%s3 + $0x78] sm:$0xff] %v232
  // Predicated region
  $region14: #{ernn_forward.6} parent=0 // pred_check
    _
  $region15: #{ernn_forward.6} parent=0 // pred_check_branch
    %252 = sbr.rel (0) target = $region17
  $region16: #{ernn_forward.6} parent=0 // pred_region
    _
  $region17: #{ernn_forward.6} parent=0 // pred_fallthru
    _
  // Predicated region
  $region18: #{ernn_forward.6} parent=0 // pred_check
    _
  $region19: #{ernn_forward.6} parent=0 // pred_check_branch
    %254 = sbr.rel (0) target = $region21
  $region20: #{ernn_forward.6} parent=0 // pred_region
    _
  $region21: #{ernn_forward.6} parent=0 // pred_fallthru
    _

// kernel: ernn_forward.5
$region0: #{ernn_forward.5}
  #allocation0 [shape = 'u32[]', space=smem, size = 0x4, offset = 0x4, fixed_abs, tag = 'smem constant byte address 0x4 - core index']
  #allocation1 [shape = 'u32[144,128]{1,0:T(1,128)}', space=vmem, size = 0x12000, scoped, tag = 'internal scratch']
  #allocation2 [shape = 'f32[8,32]{1,0:T(8,128)}', space=vmem, size = 0x1000, scoped, tag = 'scratch operand']
  #allocation3 [shape = 'f32[8,32]{1,0:T(8,128)}', space=vmem, size = 0x1000, scoped, tag = 'scratch operand']
  #allocation4 [shape = 'f32[1]{0:T(128)S(6)}', space=smem, size = 0x200, scoped, tag = 'scoped memory for ernn_forward.5']
  %s0 = inlined_call_operand.<no memory space> [shape: f32[1], index: 0, kind: input, shape index: {}]
  %s1 = inlined_call_operand.vmem [shape: f32[16,8,128], index: 1, kind: input, shape index: {}]
  %s2 = inlined_call_operand.vmem [shape: f32[32,128], index: 2, kind: input, shape index: {}]
  %s3 = inlined_call_operand.vmem [shape: f32[16,8,32], index: 3, kind: input, shape index: {}, may-alias: {3,5}]
  %s4 = inlined_call_operand.vmem [shape: f32[16,8,32], index: 4, kind: output, shape index: {0}]
  %s5 = inlined_call_operand.vmem [shape: f32[16,8,32], index: 5, kind: output, shape index: {1}, may-alias: {3,5}]
  %6 = xla_tuple %s4, %s5
  %s7 = sld [smem:[#allocation0]]
  $region61: #{ernn_forward.5} parent=0
    _
  %s9 = ssub.s32 1, %s7
  %s10 = scalar_select 0, %s9, %s7
  %11 = sst [smem:[#allocation4]] %s0
  loop: start=0, step=1, limit=4
  $region2: #{ernn_forward.5} parent=0 // loop_pre_header
    _
  $region3: #{ernn_forward.5} parent=0 // loop_header
    %s13 = sphi 0, %s17
    %p14 = scmp.ge.s32.totalorder %s13, 4
    %s21 = sphi 0, %s21
    %s23 = sphi 0, %s21
    %s24 = sphi 0, %s23
    %s38 = sphi 0, %s24
    %s44 = sphi 0, %s46
    %s47 = sphi 0, %s44
    %s48 = sphi 0, %s47
    %s64 = sphi 0, %s48
    %s68 = sphi 0, %s68
    %s70 = sphi 0, %s68
    %s71 = sphi 0, %s70
    %s85 = sphi 0, %s71
    %s91 = sphi 0, %s93
    %s94 = sphi 0, %s91
    %s95 = sphi 0, %s94
    %s111 = sphi 0, %s95
    %s117 = sphi 0, %s119
    %s120 = sphi 0, %s117
    %s121 = sphi 0, %s120
    %s137 = sphi 0, %s121
    %s143 = sphi 0, %s145
    %s146 = sphi 0, %s143
    %s147 = sphi 0, %s146
    %s163 = sphi 0, %s147
  $region4: #{ernn_forward.5} parent=0 // loop_header_branch
    %16 = sbr.rel (%p14) target = $region8
  $region5: #{ernn_forward.5} parent=0 // loop_body
    %s18 = ssub.s32 %s13, 1
    %s19 = ssub.s32 %s13, 2
    %s20 = sadd.s32 %s13, 1
    %s22 = sadd.s32 %s21, 1
    %p25 = scmp.eq.s32.totalorder %s13, 1
    %p26 = scmp.ne.s32.totalorder %s21, %s23
    %p27 = scmp.eq.s32.totalorder %s13, 0
    %p28 = por %p26, %p27
    %p29 = scmp.ne.s32.totalorder %s21, %s23
    %p30 = scmp.eq.s32.totalorder %s18, 1
    %p31 = por %p29, %p30
    %p32 = scmp.ne.s32.totalorder %s23, %s24
    %p33 = scmp.eq.s32.totalorder %s18, 0
    %p34 = por %p32, %p33
    %p35 = scmp.ne.s32.totalorder %s23, %s24
    %p36 = scmp.eq.s32.totalorder %s19, 1
    %p37 = por %p35, %p36
    %p39 = scmp.ne.s32.totalorder %s24, %s38
    %p40 = scmp.eq.s32.totalorder %s19, 0
    %p41 = por %p39, %p40
    %s42 = ssub.s32 %s13, %s20
    %p43 = scmp.eq.s32.totalorder %s42, 0
    %s45 = sadd.s32 %s44, 1
    %s46 = scalar_select %p43, %s44, %s45
    %p49 = pneg %p43
    %p50 = scmp.eq.s32.totalorder %s13, 1
    %p51 = por %p49, %p50
    %p52 = scmp.ne.s32.totalorder %s44, %s47
    %p53 = scmp.eq.s32.totalorder %s13, 0
    %p54 = por %p52, %p53
    %p55 = scmp.ne.s32.totalorder %s44, %s47
    %p56 = scmp.eq.s32.totalorder %s18, 1
    %p57 = por %p55, %p56
    %p58 = scmp.ne.s32.totalorder %s47, %s48
    %p59 = scmp.eq.s32.totalorder %s18, 0
    %p60 = por %p58, %p59
    %p61 = scmp.ne.s32.totalorder %s47, %s48
    %p62 = scmp.eq.s32.totalorder %s19, 1
    %p63 = por %p61, %p62
    %p65 = scmp.ne.s32.totalorder %s48, %s64
    %p66 = scmp.eq.s32.totalorder %s19, 0
    %p67 = por %p65, %p66
    %s69 = sadd.s32 %s68, 1
    %p72 = scmp.eq.s32.totalorder %s13, 1
    %p73 = scmp.ne.s32.totalorder %s68, %s70
    %p74 = scmp.eq.s32.totalorder %s13, 0
    %p75 = por %p73, %p74
    %p76 = scmp.ne.s32.totalorder %s68, %s70
    %p77 = scmp.eq.s32.totalorder %s18, 1
    %p78 = por %p76, %p77
    %p79 = scmp.ne.s32.totalorder %s70, %s71
    %p80 = scmp.eq.s32.totalorder %s18, 0
    %p81 = por %p79, %p80
    %p82 = scmp.ne.s32.totalorder %s70, %s71
    %p83 = scmp.eq.s32.totalorder %s19, 1
    %p84 = por %p82, %p83
    %p86 = scmp.ne.s32.totalorder %s71, %s85
    %p87 = scmp.eq.s32.totalorder %s19, 0
    %p88 = por %p86, %p87
    %s89 = ssub.s32 %s13, %s20
    %p90 = scmp.eq.s32.totalorder %s89, 0
    %s92 = sadd.s32 %s91, 1
    %s93 = scalar_select %p90, %s91, %s92
    %p96 = pneg %p90
    %p97 = scmp.eq.s32.totalorder %s13, 1
    %p98 = por %p96, %p97
    %p99 = scmp.ne.s32.totalorder %s91, %s94
    %p100 = scmp.eq.s32.totalorder %s13, 0
    %p101 = por %p99, %p100
    %p102 = scmp.ne.s32.totalorder %s91, %s94
    %p103 = scmp.eq.s32.totalorder %s18, 1
    %p104 = por %p102, %p103
    %p105 = scmp.ne.s32.totalorder %s94, %s95
    %p106 = scmp.eq.s32.totalorder %s18, 0
    %p107 = por %p105, %p106
    %p108 = scmp.ne.s32.totalorder %s94, %s95
    %p109 = scmp.eq.s32.totalorder %s19, 1
    %p110 = por %p108, %p109
    %p112 = scmp.ne.s32.totalorder %s95, %s111
    %p113 = scmp.eq.s32.totalorder %s19, 0
    %p114 = por %p112, %p113
    %s115 = ssub.s32 %s13, %s20
    %p116 = scmp.eq.s32.totalorder %s115, 0
    %s118 = sadd.s32 %s117, 1
    %s119 = scalar_select %p116, %s117, %s118
    %p122 = pneg %p116
    %p123 = scmp.eq.s32.totalorder %s13, 1
    %p124 = por %p122, %p123
    %p125 = scmp.ne.s32.totalorder %s117, %s120
    %p126 = scmp.eq.s32.totalorder %s13, 0
    %p127 = por %p125, %p126
    %p128 = scmp.ne.s32.totalorder %s117, %s120
    %p129 = scmp.eq.s32.totalorder %s18, 1
    %p130 = por %p128, %p129
    %p131 = scmp.ne.s32.totalorder %s120, %s121
    %p132 = scmp.eq.s32.totalorder %s18, 0
    %p133 = por %p131, %p132
    %p134 = scmp.ne.s32.totalorder %s120, %s121
    %p135 = scmp.eq.s32.totalorder %s19, 1
    %p136 = por %p134, %p135
    %p138 = scmp.ne.s32.totalorder %s121, %s137
    %p139 = scmp.eq.s32.totalorder %s19, 0
    %p140 = por %p138, %p139
    %s141 = ssub.s32 %s13, %s20
    %p142 = scmp.eq.s32.totalorder %s141, 0
    %s144 = sadd.s32 %s143, 1
    %s145 = scalar_select %p142, %s143, %s144
    %p148 = pneg %p142
    %p149 = scmp.eq.s32.totalorder %s13, 1
    %p150 = por %p148, %p149
    %p151 = scmp.ne.s32.totalorder %s143, %s146
    %p152 = scmp.eq.s32.totalorder %s13, 0
    %p153 = por %p151, %p152
    %p154 = scmp.ne.s32.totalorder %s143, %s146
    %p155 = scmp.eq.s32.totalorder %s18, 1
    %p156 = por %p154, %p155
    %p157 = scmp.ne.s32.totalorder %s146, %s147
    %p158 = scmp.eq.s32.totalorder %s18, 0
    %p159 = por %p157, %p158
    %p160 = scmp.ne.s32.totalorder %s146, %s147
    %p161 = scmp.eq.s32.totalorder %s19, 1
    %p162 = por %p160, %p161
    %p164 = scmp.ne.s32.totalorder %s147, %s163
    %p165 = scmp.eq.s32.totalorder %s19, 0
    %p166 = por %p164, %p165
    %p167 = scmp.le.s32.totalorder 1, %s13
    %p168 = scmp.lt.s32.totalorder %s13, 3
    %p169 = pnand %p167, %p168
    %p170 = pneg %p169
    // Predicated region
    $region9: #{ernn_forward.5} parent=5 // pred_check
      _
    $region10: #{ernn_forward.5} parent=5 // pred_check_branch
      %172 = sbr.rel (%p169) target = $region12
    $region11: #{ernn_forward.5} parent=5 // pred_region
      %s173 = ssub.s32 %s13, 1
      // Predicated region
      $region13: #{ernn_forward.5} parent=11 // pred_check
        %p174 = pneg %p34
      $region14: #{ernn_forward.5} parent=11 // pred_check_branch
        %176 = sbr.rel (%p174) target = $region16
      $region15: #{ernn_forward.5} parent=11 // pred_region
        _
      $region16: #{ernn_forward.5} parent=11 // pred_fallthru
        _
      // Predicated region
      $region17: #{ernn_forward.5} parent=11 // pred_check
        %p177 = pneg %p81
      $region18: #{ernn_forward.5} parent=11 // pred_check_branch
        %179 = sbr.rel (%p177) target = $region20
      $region19: #{ernn_forward.5} parent=11 // pred_region
        _
      $region20: #{ernn_forward.5} parent=11 // pred_fallthru
        _
    $region12: #{ernn_forward.5} parent=5 // pred_fallthru
      _
    %p180 = scmp.lt.s32.totalorder %s13, 2
    // Predicated region
    $region21: #{ernn_forward.5} parent=5 // pred_check
      %p181 = pneg %p180
    $region22: #{ernn_forward.5} parent=5 // pred_check_branch
      %183 = sbr.rel (%p181) target = $region24
    $region23: #{ernn_forward.5} parent=5 // pred_region
      // Predicated region
      $region25: #{ernn_forward.5} parent=23 // pred_check
        %p184 = pneg %p54
      $region26: #{ernn_forward.5} parent=23 // pred_check_branch
        %186 = sbr.rel (%p184) target = $region28
      $region27: #{ernn_forward.5} parent=23 // pred_region
        %s187 = smul.u32 8, %s13
        %p188 = scmp.lt.s32.totalorder %s187, 15
        %s189 = scalar_select %p188, %s187, 15
        %s190 = smul.addr %s189, 8
        %s191 = scalar_lea.vmem %s1, %s190
        %s192 = smul.u32 8, %s13
      $region28: #{ernn_forward.5} parent=23 // pred_fallthru
        _
      // Predicated region
      $region29: #{ernn_forward.5} parent=23 // pred_check
        %p193 = pneg %p101
      $region30: #{ernn_forward.5} parent=23 // pred_check_branch
        %195 = sbr.rel (%p193) target = $region32
      $region31: #{ernn_forward.5} parent=23 // pred_region
        %s196 = smul.u32 8, %s13
        %p197 = scmp.lt.s32.totalorder %s196, 15
        %s198 = scalar_select %p197, %s196, 15
        %s199 = smul.addr %s198, 8
        %s200 = scalar_lea.vmem %s3, %s199
        %s201 = smul.u32 8, %s13
      $region32: #{ernn_forward.5} parent=23 // pred_fallthru
        _
    $region24: #{ernn_forward.5} parent=5 // pred_fallthru
      _
    %p202 = scmp.le.s32.totalorder 1, %s13
    %p203 = scmp.lt.s32.totalorder %s13, 3
    %p204 = pnand %p202, %p203
    %p205 = pneg %p204
    // Predicated region
    $region33: #{ernn_forward.5} parent=5 // pred_check
      _
    $region34: #{ernn_forward.5} parent=5 // pred_check_branch
      %207 = sbr.rel (%p204) target = $region36
    $region35: #{ernn_forward.5} parent=5 // pred_region
      %s208 = ssub.s32 %s13, 1
      %p209 = pneg %p34
      %p210 = pneg %p31
      %s211 = smul.u32 8, %s18
      %p212 = scmp.lt.s32.totalorder %s211, 15
      %s213 = scalar_select %p212, %s211, 15
      %s214 = smul.addr %s213, 8
      %s215 = scalar_lea.vmem %s1, %s214
      %p216 = pneg %p60
      %p217 = pneg %p57
      %p218 = pneg %p81
      %p219 = pneg %p78
      %s220 = smul.u32 8, %s18
      %p221 = scmp.lt.s32.totalorder %s220, 15
      %s222 = scalar_select %p221, %s220, 15
      %s223 = smul.addr %s222, 8
      %s224 = scalar_lea.vmem %s3, %s223
      %p225 = pneg %p107
      %p226 = pneg %p104
      %p227 = pneg %p133
      %p228 = pneg %p130
      %s229 = smul.u32 8, %s18
      %p230 = scmp.lt.s32.totalorder %s229, 15
      %s231 = scalar_select %p230, %s229, 15
      %s232 = smul.addr %s231, 8
      %s233 = scalar_lea.vmem %s4, %s232
      %p234 = pneg %p159
      %p235 = pneg %p156
      %s236 = smul.u32 8, %s18
      %p237 = scmp.lt.s32.totalorder %s236, 15
      %s238 = scalar_select %p237, %s236, 15
      %s239 = smul.addr %s238, 8
      %s240 = scalar_lea.vmem %s5, %s239
      %s241 = smul.u32 8, %s18
      %p242 = scmp.lt.s32.totalorder %s241, 15
      %s243 = scalar_select %p242, %s241, 15
      %s244 = smul.addr %s243, 8
      %s245 = scalar_lea.vmem %s1, %s244
      %s246 = smul.u32 8, %s18
      %s247 = smul.u32 8, %s18
      %p248 = scmp.lt.s32.totalorder %s247, 15
      %s249 = scalar_select %p248, %s247, 15
      %s250 = smul.addr %s249, 8
      %s251 = scalar_lea.vmem %s3, %s250
      %s252 = smul.u32 8, %s18
      %s253 = smul.u32 8, %s18
      %p254 = scmp.lt.s32.totalorder %s253, 15
      %s255 = scalar_select %p254, %s253, 15
      %s256 = smul.addr %s255, 8
      %s257 = scalar_lea.vmem %s4, %s256
      %s258 = smul.u32 8, %s18
      %s259 = smul.u32 8, %s18
      %p260 = scmp.lt.s32.totalorder %s259, 15
      %s261 = scalar_select %p260, %s259, 15
      %s262 = smul.addr %s261, 8
      %s263 = scalar_lea.vmem %s5, %s262
      %s264 = smul.u32 8, %s18
      %p265 = scmp.eq.s32.totalorder %s18, 0
      // Predicated region
      $region37: #{ernn_forward.5} parent=35 // pred_check
        %p266 = pneg %p265
      $region38: #{ernn_forward.5} parent=35 // pred_check_branch
        %268 = sbr.rel (%p266) target = $region40
      $region39: #{ernn_forward.5} parent=35 // pred_region
        %vm269 = vcmask 261120
        %270 = vst.msk [vmem:[#allocation2] sm:$0xff] %vm269, 0.0
        %271 = vst.msk [vmem:[#allocation3] sm:$0xff] %vm269, 0.0
      $region40: #{ernn_forward.5} parent=35 // pred_fallthru
        _
      %s272 = sld [smem:[#allocation4]]
      %v273 = vld [vmem:[%s2] sm:$0xff]
      %v274 = vld [vmem:[%s2 + $0x8] sm:$0xff]
      %v275 = vld [vmem:[%s2 + $0x10] sm:$0xff]
      %v276 = vld [vmem:[%s2 + $0x18] sm:$0xff]
      %v277 = vld [vmem:[#allocation2] sm:$0xff]
      %v278 = vld [vmem:[%s245] sm:$0xff]
      %vm279 = vcmask 261120
      %v281 = vsel %vm279, %v277, 0
      %283 = vmatprep.subr.mxu0 0.0
      %284 = vmatpush1.msra.mxu0 %v273
      %285 = vmatprep.subr.mxu0 0.0
      %286 = vmatpush1.msra.mxu0 %v274
      %287 = vmatprep.subr.mxu0 0.0
      %288 = vmatpush1.msra.mxu0 %v275
      %289 = vmatprep.subr.mxu0 0.0
      %290 = vmatpush1.msra.mxu0 %v276
      %291 = vmatprep.subr.mxu0 0.0
      %292 = vmatpush1.msra.mxu0 0.0
      %293 = vmatprep.subr.mxu0 0.0
      %294 = vmatpush1.msra.mxu0 0.0
      %295 = vmatprep.subr.mxu0 0.0
      %296 = vmatpush1.msra.mxu0 0.0
      %297 = vmatprep.subr.mxu0 0.0
      %298 = vmatpush1.msra.mxu0 0.0
      %299 = vmatprep.subr.mxu0 0.0
      %300 = vmatpush1.msra.mxu0 0.0
      %301 = vmatprep.subr.mxu0 0.0
      %302 = vmatpush1.msra.mxu0 0.0
      %303 = vmatprep.subr.mxu0 0.0
      %304 = vmatpush1.msra.mxu0 0.0
      %305 = vmatprep.subr.mxu0 0.0
      %306 = vmatpush1.msra.mxu0 0.0
      %307 = vmatprep.subr.mxu0 0.0
      %308 = vmatpush1.msra.mxu0 0.0
      %309 = vmatprep.subr.mxu0 0.0
      %310 = vmatpush1.msra.mxu0 0.0
      %311 = vmatprep.subr.mxu0 0.0
      %312 = vmatpush1.msra.mxu0 0.0
      %313 = vmatprep.subr.mxu0 0.0
      %314 = vmatpush1.msra.mxu0 0.0
      %315 = vmatprep.subr.mxu0 0.0
      %316 = vmatpush1.msra.mxu0 0.0
      %317 = vmatprep.subr.mxu0 0.0
      %318 = vmatpush1.msra.mxu0 0.0
      %319 = vmatprep.subr.mxu0 0.0
      %320 = vmatpush1.msra.mxu0 0.0
      %321 = vmatprep.subr.mxu0 0.0
      %322 = vmatpush1.msra.mxu0 0.0
      %323 = vmatprep.subr.mxu0 0.0
      %324 = vmatpush1.msra.mxu0 0.0
      %325 = vmatprep.subr.mxu0 0.0
      %326 = vmatpush1.msra.mxu0 0.0
      %327 = vmatprep.subr.mxu0 0.0
      %328 = vmatpush1.msra.mxu0 0.0
      %329 = vmatprep.subr.mxu0 0.0
      %330 = vmatpush1.msra.mxu0 0.0
      %331 = vmatprep.subr.mxu0 0.0
      %332 = vmatpush1.msra.mxu0 0.0
      %333 = vmatprep.subr.mxu0 0.0
      %334 = vmatpush1.msra.mxu0 0.0
      %335 = vmatprep.subr.mxu0 0.0
      %336 = vmatpush1.msra.mxu0 0.0
      %337 = vmatprep.subr.mxu0 0.0
      %338 = vmatpush1.msra.mxu0 0.0
      %339 = vmatprep.subr.mxu0 0.0
      %340 = vmatpush1.msra.mxu0 0.0
      %341 = vmatprep.subr.mxu0 0.0
      %342 = vmatpush1.msra.mxu0 0.0
      %343 = vmatprep.subr.mxu0 0.0
      %344 = vmatpush1.msra.mxu0 0.0
      %345 = vmatprep.subr.mxu0 0.0
      %346 = vmatpush1.msra.mxu0 0.0
      %347 = vmatprep.mubr.f32.mxu0 0.0
      %348 = vmatmul.mubr.f32.gmra.mrb[0].mxu0 %v281
      %v349 = vpop.f32.mrb[0].mxu0
      %v350 = vadd.f32 0.0, %v349
      %v351 = vpop.f32.mrb[0].mxu0
      %352 = vdwg.mxu0
      %v353 = vadd.f32 %v278, %v350
      %v354 = vxor.u32 %v353, 2147483648
      %v355 = vmul.f32 %v354, 1.442695
      %v356 = vpow.pop %v355
      %v357 = vadd.f32 %v356, 1.0
      %v358 = vrcp.pop %v357
      %v359 = vmul.f32 1.0, %v358
      %v360 = vtanh.pop %v353
      %v361 = vld [vmem:[#allocation3] sm:$0xff]
      %363 = vrot.lane.b32.xlu0 %v361, 32
      %v364 = vpop.permute.xlu0 %363
      %v366 = vmul.f32 %v359, %v364
      %368 = vrot.lane.b32.xlu0 %v360, 64
      %v369 = vpop.permute.xlu0 %368
      %v371 = vmul.f32 %v359, %v369
      %373 = vrot.lane.b32.xlu0 %v371, 32
      %v374 = vpop.permute.xlu0 %373
      %v376 = vadd.f32 %v366, %v374
      %v377 = vtanh.pop %v376
      %379 = vrot.lane.b32.xlu0 %v377, 64
      %v380 = vpop.permute.xlu0 %379
      %v382 = vmul.f32 %v359, %v380
      %384 = vrot.lane.b32.xlu0 %v376, 96
      %v385 = vpop.permute.xlu0 %384
      %387 = vst.msk [vmem:[#allocation3] sm:$0xff] %vm279, %v385
      %389 = vrot.lane.b32.xlu0 %v382, 32
      %v390 = vpop.permute.xlu0 %389
      %392 = vst.msk [vmem:[#allocation2] sm:$0xff] %vm279, %v390
      %393 = vst.msk [vmem:[%s257] sm:$0xff] %vm279, %v390
      %v394 = vld [vmem:[%s251] sm:$0xff]
      %v395 = vstv %s272
      %v396 = vmul.f32 %v395, %v382
      %398 = vrot.lane.b32.xlu0 %v396, 32
      %v399 = vpop.permute.xlu0 %398
      %v401 = vadd.f32 %v394, %v399
      %402 = vst.msk [vmem:[%s263] sm:$0xff] %vm279, %v401
      %v403 = vld [vmem:[#allocation2] sm:$0xff]
      %s404 = scalar_lea.vmem %s245, 8
      %v405 = vld [vmem:[%s404] sm:$0xff]
      %v407 = vsel %vm279, %v403, 0
      %409 = vmatprep.subr.mxu0 0.0
      %410 = vmatpush1.msra.mxu0 %v273
      %411 = vmatprep.subr.mxu0 0.0
      %412 = vmatpush1.msra.mxu0 %v274
      %413 = vmatprep.subr.mxu0 0.0
      %414 = vmatpush1.msra.mxu0 %v275
      %415 = vmatprep.subr.mxu0 0.0
      %416 = vmatpush1.msra.mxu0 %v276
      %417 = vmatprep.subr.mxu0 0.0
      %418 = vmatpush1.msra.mxu0 0.0
      %419 = vmatprep.subr.mxu0 0.0
      %420 = vmatpush1.msra.mxu0 0.0
      %421 = vmatprep.subr.mxu0 0.0
      %422 = vmatpush1.msra.mxu0 0.0
      %423 = vmatprep.subr.mxu0 0.0
      %424 = vmatpush1.msra.mxu0 0.0
      %425 = vmatprep.subr.mxu0 0.0
      %426 = vmatpush1.msra.mxu0 0.0
      %427 = vmatprep.subr.mxu0 0.0
      %428 = vmatpush1.msra.mxu0 0.0
      %429 = vmatprep.subr.mxu0 0.0
      %430 = vmatpush1.msra.mxu0 0.0
      %431 = vmatprep.subr.mxu0 0.0
      %432 = vmatpush1.msra.mxu0 0.0
      %433 = vmatprep.subr.mxu0 0.0
      %434 = vmatpush1.msra.mxu0 0.0
      %435 = vmatprep.subr.mxu0 0.0
      %436 = vmatpush1.msra.mxu0 0.0
      %437 = vmatprep.subr.mxu0 0.0
      %438 = vmatpush1.msra.mxu0 0.0
      %439 = vmatprep.subr.mxu0 0.0
      %440 = vmatpush1.msra.mxu0 0.0
      %441 = vmatprep.subr.mxu0 0.0
      %442 = vmatpush1.msra.mxu0 0.0
      %443 = vmatprep.subr.mxu0 0.0
      %444 = vmatpush1.msra.mxu0 0.0
      %445 = vmatprep.subr.mxu0 0.0
      %446 = vmatpush1.msra.mxu0 0.0
      %447 = vmatprep.subr.mxu0 0.0
      %448 = vmatpush1.msra.mxu0 0.0
      %449 = vmatprep.subr.mxu0 0.0
      %450 = vmatpush1.msra.mxu0 0.0
      %451 = vmatprep.subr.mxu0 0.0
      %452 = vmatpush1.msra.mxu0 0.0
      %453 = vmatprep.subr.mxu0 0.0
      %454 = vmatpush1.msra.mxu0 0.0
      %455 = vmatprep.subr.mxu0 0.0
      %456 = vmatpush1.msra.mxu0 0.0
      %457 = vmatprep.subr.mxu0 0.0
      %458 = vmatpush1.msra.mxu0 0.0
      %459 = vmatprep.subr.mxu0 0.0
      %460 = vmatpush1.msra.mxu0 0.0
      %461 = vmatprep.subr.mxu0 0.0
      %462 = vmatpush1.msra.mxu0 0.0
      %463 = vmatprep.subr.mxu0 0.0
      %464 = vmatpush1.msra.mxu0 0.0
      %465 = vmatprep.subr.mxu0 0.0
      %466 = vmatpush1.msra.mxu0 0.0
      %467 = vmatprep.subr.mxu0 0.0
      %468 = vmatpush1.msra.mxu0 0.0
      %469 = vmatprep.subr.mxu0 0.0
      %470 = vmatpush1.msra.mxu0 0.0
      %471 = vmatprep.subr.mxu0 0.0
      %472 = vmatpush1.msra.mxu0 0.0
      %473 = vmatprep.mubr.f32.mxu0 0.0
      %474 = vmatmul.mubr.f32.gmra.mrb[0].mxu0 %v407
      %v475 = vpop.f32.mrb[0].mxu0
      %v476 = vadd.f32 0.0, %v475
      %v477 = vpop.f32.mrb[0].mxu0
      %478 = vdwg.mxu0
      %v479 = vadd.f32 %v405, %v476
      %v480 = vxor.u32 %v479, 2147483648
      %v481 = vmul.f32 %v480, 1.442695
      %v482 = vpow.pop %v481
      %v483 = vadd.f32 %v482, 1.0
      %v484 = vrcp.pop %v483
      %v485 = vmul.f32 1.0, %v484
      %v486 = vtanh.pop %v479
      %v487 = vld [vmem:[#allocation3] sm:$0xff]
      %489 = vrot.lane.b32.xlu0 %v487, 32
      %v490 = vpop.permute.xlu0 %489
      %v492 = vmul.f32 %v485, %v490
      %494 = vrot.lane.b32.xlu0 %v486, 64
      %v495 = vpop.permute.xlu0 %494
      %v497 = vmul.f32 %v485, %v495
      %499 = vrot.lane.b32.xlu0 %v497, 32
      %v500 = vpop.permute.xlu0 %499
      %v502 = vadd.f32 %v492, %v500
      %v503 = vtanh.pop %v502
      %505 = vrot.lane.b32.xlu0 %v503, 64
      %v506 = vpop.permute.xlu0 %505
      %v508 = vmul.f32 %v485, %v506
      %510 = vrot.lane.b32.xlu0 %v502, 96
      %v511 = vpop.permute.xlu0 %510
      %513 = vst.msk [vmem:[#allocation3] sm:$0xff] %vm279, %v511
      %515 = vrot.lane.b32.xlu0 %v508, 32
      %v516 = vpop.permute.xlu0 %515
      %518 = vst.msk [vmem:[#allocation2] sm:$0xff] %vm279, %v516
      %s519 = scalar_lea.vmem %s257, 8
      %520 = vst.msk [vmem:[%s519] sm:$0xff] %vm279, %v516
      %s521 = scalar_lea.vmem %s251, 8
      %v522 = vld [vmem:[%s521] sm:$0xff]
      %v523 = vmul.f32 %v395, %v508
      %525 = vrot.lane.b32.xlu0 %v523, 32
      %v526 = vpop.permute.xlu0 %525
      %v528 = vadd.f32 %v522, %v526
      %s529 = scalar_lea.vmem %s263, 8
      %530 = vst.msk [vmem:[%s529] sm:$0xff] %vm279, %v528
      %v531 = vld [vmem:[#allocation2] sm:$0xff]
      %s532 = scalar_lea.vmem %s245, 16
      %v533 = vld [vmem:[%s532] sm:$0xff]
      %v535 = vsel %vm279, %v531, 0
      %537 = vmatprep.subr.mxu0 0.0
      %538 = vmatpush1.msra.mxu0 %v273
      %539 = vmatprep.subr.mxu0 0.0
      %540 = vmatpush1.msra.mxu0 %v274
      %541 = vmatprep.subr.mxu0 0.0
      %542 = vmatpush1.msra.mxu0 %v275
      %543 = vmatprep.subr.mxu0 0.0
      %544 = vmatpush1.msra.mxu0 %v276
      %545 = vmatprep.subr.mxu0 0.0
      %546 = vmatpush1.msra.mxu0 0.0
      %547 = vmatprep.subr.mxu0 0.0
      %548 = vmatpush1.msra.mxu0 0.0
      %549 = vmatprep.subr.mxu0 0.0
      %550 = vmatpush1.msra.mxu0 0.0
      %551 = vmatprep.subr.mxu0 0.0
      %552 = vmatpush1.msra.mxu0 0.0
      %553 = vmatprep.subr.mxu0 0.0
      %554 = vmatpush1.msra.mxu0 0.0
      %555 = vmatprep.subr.mxu0 0.0
      %556 = vmatpush1.msra.mxu0 0.0
      %557 = vmatprep.subr.mxu0 0.0
      %558 = vmatpush1.msra.mxu0 0.0
      %559 = vmatprep.subr.mxu0 0.0
      %560 = vmatpush1.msra.mxu0 0.0
      %561 = vmatprep.subr.mxu0 0.0
      %562 = vmatpush1.msra.mxu0 0.0
      %563 = vmatprep.subr.mxu0 0.0
      %564 = vmatpush1.msra.mxu0 0.0
      %565 = vmatprep.subr.mxu0 0.0
      %566 = vmatpush1.msra.mxu0 0.0
      %567 = vmatprep.subr.mxu0 0.0
      %568 = vmatpush1.msra.mxu0 0.0
      %569 = vmatprep.subr.mxu0 0.0
      %570 = vmatpush1.msra.mxu0 0.0
      %571 = vmatprep.subr.mxu0 0.0
      %572 = vmatpush1.msra.mxu0 0.0
      %573 = vmatprep.subr.mxu0 0.0
      %574 = vmatpush1.msra.mxu0 0.0
      %575 = vmatprep.subr.mxu0 0.0
      %576 = vmatpush1.msra.mxu0 0.0
      %577 = vmatprep.subr.mxu0 0.0
      %578 = vmatpush1.msra.mxu0 0.0
      %579 = vmatprep.subr.mxu0 0.0
      %580 = vmatpush1.msra.mxu0 0.0
      %581 = vmatprep.subr.mxu0 0.0
      %582 = vmatpush1.msra.mxu0 0.0
      %583 = vmatprep.subr.mxu0 0.0
      %584 = vmatpush1.msra.mxu0 0.0
      %585 = vmatprep.subr.mxu0 0.0
      %586 = vmatpush1.msra.mxu0 0.0
      %587 = vmatprep.subr.mxu0 0.0
      %588 = vmatpush1.msra.mxu0 0.0
      %589 = vmatprep.subr.mxu0 0.0
      %590 = vmatpush1.msra.mxu0 0.0
      %591 = vmatprep.subr.mxu0 0.0
      %592 = vmatpush1.msra.mxu0 0.0
      %593 = vmatprep.subr.mxu0 0.0
      %594 = vmatpush1.msra.mxu0 0.0
      %595 = vmatprep.subr.mxu0 0.0
      %596 = vmatpush1.msra.mxu0 0.0
      %597 = vmatprep.subr.mxu0 0.0
      %598 = vmatpush1.msra.mxu0 0.0
      %599 = vmatprep.subr.mxu0 0.0
      %600 = vmatpush1.msra.mxu0 0.0
      %601 = vmatprep.mubr.f32.mxu0 0.0
      %602 = vmatmul.mubr.f32.gmra.mrb[0].mxu0 %v535
      %v603 = vpop.f32.mrb[0].mxu0
      %v604 = vadd.f32 0.0, %v603
      %v605 = vpop.f32.mrb[0].mxu0
      %606 = vdwg.mxu0
      %v607 = vadd.f32 %v533, %v604
      %v608 = vxor.u32 %v607, 2147483648
      %v609 = vmul.f32 %v608, 1.442695
      %v610 = vpow.pop %v609
      %v611 = vadd.f32 %v610, 1.0
      %v612 = vrcp.pop %v611
      %v613 = vmul.f32 1.0, %v612
      %v614 = vtanh.pop %v607
      %v615 = vld [vmem:[#allocation3] sm:$0xff]
      %617 = vrot.lane.b32.xlu0 %v615, 32
      %v618 = vpop.permute.xlu0 %617
      %v620 = vmul.f32 %v613, %v618
      %622 = vrot.lane.b32.xlu0 %v614, 64
      %v623 = vpop.permute.xlu0 %622
      %v625 = vmul.f32 %v613, %v623
      %627 = vrot.lane.b32.xlu0 %v625, 32
      %v628 = vpop.permute.xlu0 %627
      %v630 = vadd.f32 %v620, %v628
      %v631 = vtanh.pop %v630
      %633 = vrot.lane.b32.xlu0 %v631, 64
      %v634 = vpop.permute.xlu0 %633
      %v636 = vmul.f32 %v613, %v634
      %638 = vrot.lane.b32.xlu0 %v630, 96
      %v639 = vpop.permute.xlu0 %638
      %641 = vst.msk [vmem:[#allocation3] sm:$0xff] %vm279, %v639
      %643 = vrot.lane.b32.xlu0 %v636, 32
      %v644 = vpop.permute.xlu0 %643
      %646 = vst.msk [vmem:[#allocation2] sm:$0xff] %vm279, %v644
      %s647 = scalar_lea.vmem %s257, 16
      %648 = vst.msk [vmem:[%s647] sm:$0xff] %vm279, %v644
      %s649 = scalar_lea.vmem %s251, 16
      %v650 = vld [vmem:[%s649] sm:$0xff]
      %v651 = vmul.f32 %v395, %v636
      %653 = vrot.lane.b32.xlu0 %v651, 32
      %v654 = vpop.permute.xlu0 %653
      %v656 = vadd.f32 %v650, %v654
      %s657 = scalar_lea.vmem %s263, 16
      %658 = vst.msk [vmem:[%s657] sm:$0xff] %vm279, %v656
      %v659 = vld [vmem:[#allocation2] sm:$0xff]
      %s660 = scalar_lea.vmem %s245, 24
      %v661 = vld [vmem:[%s660] sm:$0xff]
      %v663 = vsel %vm279, %v659, 0
      %665 = vmatprep.subr.mxu0 0.0
      %666 = vmatpush1.msra.mxu0 %v273
      %667 = vmatprep.subr.mxu0 0.0
      %668 = vmatpush1.msra.mxu0 %v274
      %669 = vmatprep.subr.mxu0 0.0
      %670 = vmatpush1.msra.mxu0 %v275
      %671 = vmatprep.subr.mxu0 0.0
      %672 = vmatpush1.msra.mxu0 %v276
      %673 = vmatprep.subr.mxu0 0.0
      %674 = vmatpush1.msra.mxu0 0.0
      %675 = vmatprep.subr.mxu0 0.0
      %676 = vmatpush1.msra.mxu0 0.0
      %677 = vmatprep.subr.mxu0 0.0
      %678 = vmatpush1.msra.mxu0 0.0
      %679 = vmatprep.subr.mxu0 0.0
      %680 = vmatpush1.msra.mxu0 0.0
      %681 = vmatprep.subr.mxu0 0.0
      %682 = vmatpush1.msra.mxu0 0.0
      %683 = vmatprep.subr.mxu0 0.0
      %684 = vmatpush1.msra.mxu0 0.0
      %685 = vmatprep.subr.mxu0 0.0
      %686 = vmatpush1.msra.mxu0 0.0
      %687 = vmatprep.subr.mxu0 0.0
      %688 = vmatpush1.msra.mxu0 0.0
      %689 = vmatprep.subr.mxu0 0.0
      %690 = vmatpush1.msra.mxu0 0.0
      %691 = vmatprep.subr.mxu0 0.0
      %692 = vmatpush1.msra.mxu0 0.0
      %693 = vmatprep.subr.mxu0 0.0
      %694 = vmatpush1.msra.mxu0 0.0
      %695 = vmatprep.subr.mxu0 0.0
      %696 = vmatpush1.msra.mxu0 0.0
      %697 = vmatprep.subr.mxu0 0.0
      %698 = vmatpush1.msra.mxu0 0.0
      %699 = vmatprep.subr.mxu0 0.0
      %700 = vmatpush1.msra.mxu0 0.0
      %701 = vmatprep.subr.mxu0 0.0
      %702 = vmatpush1.msra.mxu0 0.0
      %703 = vmatprep.subr.mxu0 0.0
      %704 = vmatpush1.msra.mxu0 0.0
      %705 = vmatprep.subr.mxu0 0.0
      %706 = vmatpush1.msra.mxu0 0.0
      %707 = vmatprep.subr.mxu0 0.0
      %708 = vmatpush1.msra.mxu0 0.0
      %709 = vmatprep.subr.mxu0 0.0
      %710 = vmatpush1.msra.mxu0 0.0
      %711 = vmatprep.subr.mxu0 0.0
      %712 = vmatpush1.msra.mxu0 0.0
      %713 = vmatprep.subr.mxu0 0.0
      %714 = vmatpush1.msra.mxu0 0.0
      %715 = vmatprep.subr.mxu0 0.0
      %716 = vmatpush1.msra.mxu0 0.0
      %717 = vmatprep.subr.mxu0 0.0
      %718 = vmatpush1.msra.mxu0 0.0
      %719 = vmatprep.subr.mxu0 0.0
      %720 = vmatpush1.msra.mxu0 0.0
      %721 = vmatprep.subr.mxu0 0.0
      %722 = vmatpush1.msra.mxu0 0.0
      %723 = vmatprep.subr.mxu0 0.0
      %724 = vmatpush1.msra.mxu0 0.0
      %725 = vmatprep.subr.mxu0 0.0
      %726 = vmatpush1.msra.mxu0 0.0
      %727 = vmatprep.subr.mxu0 0.0
      %728 = vmatpush1.msra.mxu0 0.0
      %729 = vmatprep.mubr.f32.mxu0 0.0
      %730 = vmatmul.mubr.f32.gmra.mrb[0].mxu0 %v663
      %v731 = vpop.f32.mrb[0].mxu0
      %v732 = vadd.f32 0.0, %v731
      %v733 = vpop.f32.mrb[0].mxu0
      %734 = vdwg.mxu0
      %v735 = vadd.f32 %v661, %v732
      %v736 = vxor.u32 %v735, 2147483648
      %v737 = vmul.f32 %v736, 1.442695
      %v738 = vpow.pop %v737
      %v739 = vadd.f32 %v738, 1.0
      %v740 = vrcp.pop %v739
      %v741 = vmul.f32 1.0, %v740
      %v742 = vtanh.pop %v735
      %v743 = vld [vmem:[#allocation3] sm:$0xff]
      %745 = vrot.lane.b32.xlu0 %v743, 32
      %v746 = vpop.permute.xlu0 %745
      %v748 = vmul.f32 %v741, %v746
      %750 = vrot.lane.b32.xlu0 %v742, 64
      %v751 = vpop.permute.xlu0 %750
      %v753 = vmul.f32 %v741, %v751
      %755 = vrot.lane.b32.xlu0 %v753, 32
      %v756 = vpop.permute.xlu0 %755
      %v758 = vadd.f32 %v748, %v756
      %v759 = vtanh.pop %v758
      %761 = vrot.lane.b32.xlu0 %v759, 64
      %v762 = vpop.permute.xlu0 %761
      %v764 = vmul.f32 %v741, %v762
      %766 = vrot.lane.b32.xlu0 %v758, 96
      %v767 = vpop.permute.xlu0 %766
      %769 = vst.msk [vmem:[#allocation3] sm:$0xff] %vm279, %v767
      %771 = vrot.lane.b32.xlu0 %v764, 32
      %v772 = vpop.permute.xlu0 %771
      %774 = vst.msk [vmem:[#allocation2] sm:$0xff] %vm279, %v772
      %s775 = scalar_lea.vmem %s257, 24
      %776 = vst.msk [vmem:[%s775] sm:$0xff] %vm279, %v772
      %s777 = scalar_lea.vmem %s251, 24
      %v778 = vld [vmem:[%s777] sm:$0xff]
      %v779 = vmul.f32 %v395, %v764
      %781 = vrot.lane.b32.xlu0 %v779, 32
      %v782 = vpop.permute.xlu0 %781
      %v784 = vadd.f32 %v778, %v782
      %s785 = scalar_lea.vmem %s263, 24
      %786 = vst.msk [vmem:[%s785] sm:$0xff] %vm279, %v784
      %v787 = vld [vmem:[#allocation2] sm:$0xff]
      %s788 = scalar_lea.vmem %s245, 32
      %v789 = vld [vmem:[%s788] sm:$0xff]
      %v791 = vsel %vm279, %v787, 0
      %793 = vmatprep.subr.mxu0 0.0
      %794 = vmatpush1.msra.mxu0 %v273
      %795 = vmatprep.subr.mxu0 0.0
      %796 = vmatpush1.msra.mxu0 %v274
      %797 = vmatprep.subr.mxu0 0.0
      %798 = vmatpush1.msra.mxu0 %v275
      %799 = vmatprep.subr.mxu0 0.0
      %800 = vmatpush1.msra.mxu0 %v276
      %801 = vmatprep.subr.mxu0 0.0
      %802 = vmatpush1.msra.mxu0 0.0
      %803 = vmatprep.subr.mxu0 0.0
      %804 = vmatpush1.msra.mxu0 0.0
      %805 = vmatprep.subr.mxu0 0.0
      %806 = vmatpush1.msra.mxu0 0.0
      %807 = vmatprep.subr.mxu0 0.0
      %808 = vmatpush1.msra.mxu0 0.0
      %809 = vmatprep.subr.mxu0 0.0
      %810 = vmatpush1.msra.mxu0 0.0
      %811 = vmatprep.subr.mxu0 0.0
      %812 = vmatpush1.msra.mxu0 0.0
      %813 = vmatprep.subr.mxu0 0.0
      %814 = vmatpush1.msra.mxu0 0.0
      %815 = vmatprep.subr.mxu0 0.0
      %816 = vmatpush1.msra.mxu0 0.0
      %817 = vmatprep.subr.mxu0 0.0
      %818 = vmatpush1.msra.mxu0 0.0
      %819 = vmatprep.subr.mxu0 0.0
      %820 = vmatpush1.msra.mxu0 0.0
      %821 = vmatprep.subr.mxu0 0.0
      %822 = vmatpush1.msra.mxu0 0.0
      %823 = vmatprep.subr.mxu0 0.0
      %824 = vmatpush1.msra.mxu0 0.0
      %825 = vmatprep.subr.mxu0 0.0
      %826 = vmatpush1.msra.mxu0 0.0
      %827 = vmatprep.subr.mxu0 0.0
      %828 = vmatpush1.msra.mxu0 0.0
      %829 = vmatprep.subr.mxu0 0.0
      %830 = vmatpush1.msra.mxu0 0.0
      %831 = vmatprep.subr.mxu0 0.0
      %832 = vmatpush1.msra.mxu0 0.0
      %833 = vmatprep.subr.mxu0 0.0
      %834 = vmatpush1.msra.mxu0 0.0
      %835 = vmatprep.subr.mxu0 0.0
      %836 = vmatpush1.msra.mxu0 0.0
      %837 = vmatprep.subr.mxu0 0.0
      %838 = vmatpush1.msra.mxu0 0.0
      %839 = vmatprep.subr.mxu0 0.0
      %840 = vmatpush1.msra.mxu0 0.0
      %841 = vmatprep.subr.mxu0 0.0
      %842 = vmatpush1.msra.mxu0 0.0
      %843 = vmatprep.subr.mxu0 0.0
      %844 = vmatpush1.msra.mxu0 0.0
      %845 = vmatprep.subr.mxu0 0.0
      %846 = vmatpush1.msra.mxu0 0.0
      %847 = vmatprep.subr.mxu0 0.0
      %848 = vmatpush1.msra.mxu0 0.0
      %849 = vmatprep.subr.mxu0 0.0
      %850 = vmatpush1.msra.mxu0 0.0
      %851 = vmatprep.subr.mxu0 0.0
      %852 = vmatpush1.msra.mxu0 0.0
      %853 = vmatprep.subr.mxu0 0.0
      %854 = vmatpush1.msra.mxu0 0.0
      %855 = vmatprep.subr.mxu0 0.0
      %856 = vmatpush1.msra.mxu0 0.0
      %857 = vmatprep.mubr.f32.mxu0 0.0
      %858 = vmatmul.mubr.f32.gmra.mrb[0].mxu0 %v791
      %v859 = vpop.f32.mrb[0].mxu0
      %v860 = vadd.f32 0.0, %v859
      %v861 = vpop.f32.mrb[0].mxu0
      %862 = vdwg.mxu0
      %v863 = vadd.f32 %v789, %v860
      %v864 = vxor.u32 %v863, 2147483648
      %v865 = vmul.f32 %v864, 1.442695
      %v866 = vpow.pop %v865
      %v867 = vadd.f32 %v866, 1.0
      %v868 = vrcp.pop %v867
      %v869 = vmul.f32 1.0, %v868
      %v870 = vtanh.pop %v863
      %v871 = vld [vmem:[#allocation3] sm:$0xff]
      %873 = vrot.lane.b32.xlu0 %v871, 32
      %v874 = vpop.permute.xlu0 %873
      %v876 = vmul.f32 %v869, %v874
      %878 = vrot.lane.b32.xlu0 %v870, 64
      %v879 = vpop.permute.xlu0 %878
      %v881 = vmul.f32 %v869, %v879
      %883 = vrot.lane.b32.xlu0 %v881, 32
      %v884 = vpop.permute.xlu0 %883
      %v886 = vadd.f32 %v876, %v884
      %v887 = vtanh.pop %v886
      %889 = vrot.lane.b32.xlu0 %v887, 64
      %v890 = vpop.permute.xlu0 %889
      %v892 = vmul.f32 %v869, %v890
      %894 = vrot.lane.b32.xlu0 %v886, 96
      %v895 = vpop.permute.xlu0 %894
      %897 = vst.msk [vmem:[#allocation3] sm:$0xff] %vm279, %v895
      %899 = vrot.lane.b32.xlu0 %v892, 32
      %v900 = vpop.permute.xlu0 %899
      %902 = vst.msk [vmem:[#allocation2] sm:$0xff] %vm279, %v900
      %s903 = scalar_lea.vmem %s257, 32
      %904 = vst.msk [vmem:[%s903] sm:$0xff] %vm279, %v900
      %s905 = scalar_lea.vmem %s251, 32
      %v906 = vld [vmem:[%s905] sm:$0xff]
      %v907 = vmul.f32 %v395, %v892
      %909 = vrot.lane.b32.xlu0 %v907, 32
      %v910 = vpop.permute.xlu0 %909
      %v912 = vadd.f32 %v906, %v910
      %s913 = scalar_lea.vmem %s263, 32
      %914 = vst.msk [vmem:[%s913] sm:$0xff] %vm279, %v912
      %v915 = vld [vmem:[#allocation2] sm:$0xff]
      %s916 = scalar_lea.vmem %s245, 40
      %v917 = vld [vmem:[%s916] sm:$0xff]
      %v919 = vsel %vm279, %v915, 0
      %921 = vmatprep.subr.mxu0 0.0
      %922 = vmatpush1.msra.mxu0 %v273
      %923 = vmatprep.subr.mxu0 0.0
      %924 = vmatpush1.msra.mxu0 %v274
      %925 = vmatprep.subr.mxu0 0.0
      %926 = vmatpush1.msra.mxu0 %v275
      %927 = vmatprep.subr.mxu0 0.0
      %928 = vmatpush1.msra.mxu0 %v276
      %929 = vmatprep.subr.mxu0 0.0
      %930 = vmatpush1.msra.mxu0 0.0
      %931 = vmatprep.subr.mxu0 0.0
      %932 = vmatpush1.msra.mxu0 0.0
      %933 = vmatprep.subr.mxu0 0.0
      %934 = vmatpush1.msra.mxu0 0.0
      %935 = vmatprep.subr.mxu0 0.0
      %936 = vmatpush1.msra.mxu0 0.0
      %937 = vmatprep.subr.mxu0 0.0
      %938 = vmatpush1.msra.mxu0 0.0
      %939 = vmatprep.subr.mxu0 0.0
      %940 = vmatpush1.msra.mxu0 0.0
      %941 = vmatprep.subr.mxu0 0.0
      %942 = vmatpush1.msra.mxu0 0.0
      %943 = vmatprep.subr.mxu0 0.0
      %944 = vmatpush1.msra.mxu0 0.0
      %945 = vmatprep.subr.mxu0 0.0
      %946 = vmatpush1.msra.mxu0 0.0
      %947 = vmatprep.subr.mxu0 0.0
      %948 = vmatpush1.msra.mxu0 0.0
      %949 = vmatprep.subr.mxu0 0.0
      %950 = vmatpush1.msra.mxu0 0.0
      %951 = vmatprep.subr.mxu0 0.0
      %952 = vmatpush1.msra.mxu0 0.0
      %953 = vmatprep.subr.mxu0 0.0
      %954 = vmatpush1.msra.mxu0 0.0
      %955 = vmatprep.subr.mxu0 0.0
      %956 = vmatpush1.msra.mxu0 0.0
      %957 = vmatprep.subr.mxu0 0.0
      %958 = vmatpush1.msra.mxu0 0.0
      %959 = vmatprep.subr.mxu0 0.0
      %960 = vmatpush1.msra.mxu0 0.0
      %961 = vmatprep.subr.mxu0 0.0
      %962 = vmatpush1.msra.mxu0 0.0
      %963 = vmatprep.subr.mxu0 0.0
      %964 = vmatpush1.msra.mxu0 0.0
      %965 = vmatprep.subr.mxu0 0.0
      %966 = vmatpush1.msra.mxu0 0.0
      %967 = vmatprep.subr.mxu0 0.0
      %968 = vmatpush1.msra.mxu0 0.0
      %969 = vmatprep.subr.mxu0 0.0
      %970 = vmatpush1.msra.mxu0 0.0
      %971 = vmatprep.subr.mxu0 0.0
      %972 = vmatpush1.msra.mxu0 0.0
      %973 = vmatprep.subr.mxu0 0.0
      %974 = vmatpush1.msra.mxu0 0.0
      %975 = vmatprep.subr.mxu0 0.0
      %976 = vmatpush1.msra.mxu0 0.0
      %977 = vmatprep.subr.mxu0 0.0
      %978 = vmatpush1.msra.mxu0 0.0
      %979 = vmatprep.subr.mxu0 0.0
      %980 = vmatpush1.msra.mxu0 0.0
      %981 = vmatprep.subr.mxu0 0.0
      %982 = vmatpush1.msra.mxu0 0.0
      %983 = vmatprep.subr.mxu0 0.0
      %984 = vmatpush1.msra.mxu0 0.0
      %985 = vmatprep.mubr.f32.mxu0 0.0
      %986 = vmatmul.mubr.f32.gmra.mrb[0].mxu0 %v919
      %v987 = vpop.f32.mrb[0].mxu0
      %v988 = vadd.f32 0.0, %v987
      %v989 = vpop.f32.mrb[0].mxu0
      %990 = vdwg.mxu0
      %v991 = vadd.f32 %v917, %v988
      %v992 = vxor.u32 %v991, 2147483648
      %v993 = vmul.f32 %v992, 1.442695
      %v994 = vpow.pop %v993
      %v995 = vadd.f32 %v994, 1.0
      %v996 = vrcp.pop %v995
      %v997 = vmul.f32 1.0, %v996
      %v998 = vtanh.pop %v991
      %v999 = vld [vmem:[#allocation3] sm:$0xff]
      %1001 = vrot.lane.b32.xlu0 %v999, 32
      %v1002 = vpop.permute.xlu0 %1001
      %v1004 = vmul.f32 %v997, %v1002
      %1006 = vrot.lane.b32.xlu0 %v998, 64
      %v1007 = vpop.permute.xlu0 %1006
      %v1009 = vmul.f32 %v997, %v1007
      %1011 = vrot.lane.b32.xlu0 %v1009, 32
      %v1012 = vpop.permute.xlu0 %1011
      %v1014 = vadd.f32 %v1004, %v1012
      %v1015 = vtanh.pop %v1014
      %1017 = vrot.lane.b32.xlu0 %v1015, 64
      %v1018 = vpop.permute.xlu0 %1017
      %v1020 = vmul.f32 %v997, %v1018
      %1022 = vrot.lane.b32.xlu0 %v1014, 96
      %v1023 = vpop.permute.xlu0 %1022
      %1025 = vst.msk [vmem:[#allocation3] sm:$0xff] %vm279, %v1023
      %1027 = vrot.lane.b32.xlu0 %v1020, 32
      %v1028 = vpop.permute.xlu0 %1027
      %1030 = vst.msk [vmem:[#allocation2] sm:$0xff] %vm279, %v1028
      %s1031 = scalar_lea.vmem %s257, 40
      %1032 = vst.msk [vmem:[%s1031] sm:$0xff] %vm279, %v1028
      %s1033 = scalar_lea.vmem %s251, 40
      %v1034 = vld [vmem:[%s1033] sm:$0xff]
      %v1035 = vmul.f32 %v395, %v1020
      %1037 = vrot.lane.b32.xlu0 %v1035, 32
      %v1038 = vpop.permute.xlu0 %1037
      %v1040 = vadd.f32 %v1034, %v1038
      %s1041 = scalar_lea.vmem %s263, 40
      %1042 = vst.msk [vmem:[%s1041] sm:$0xff] %vm279, %v1040
      %v1043 = vld [vmem:[#allocation2] sm:$0xff]
      %s1044 = scalar_lea.vmem %s245, 48
      %v1045 = vld [vmem:[%s1044] sm:$0xff]
      %v1047 = vsel %vm279, %v1043, 0
      %1049 = vmatprep.subr.mxu0 0.0
      %1050 = vmatpush1.msra.mxu0 %v273
      %1051 = vmatprep.subr.mxu0 0.0
      %1052 = vmatpush1.msra.mxu0 %v274
      %1053 = vmatprep.subr.mxu0 0.0
      %1054 = vmatpush1.msra.mxu0 %v275
      %1055 = vmatprep.subr.mxu0 0.0
      %1056 = vmatpush1.msra.mxu0 %v276
      %1057 = vmatprep.subr.mxu0 0.0
      %1058 = vmatpush1.msra.mxu0 0.0
      %1059 = vmatprep.subr.mxu0 0.0
      %1060 = vmatpush1.msra.mxu0 0.0
      %1061 = vmatprep.subr.mxu0 0.0
      %1062 = vmatpush1.msra.mxu0 0.0
      %1063 = vmatprep.subr.mxu0 0.0
      %1064 = vmatpush1.msra.mxu0 0.0
      %1065 = vmatprep.subr.mxu0 0.0
      %1066 = vmatpush1.msra.mxu0 0.0
      %1067 = vmatprep.subr.mxu0 0.0
      %1068 = vmatpush1.msra.mxu0 0.0
      %1069 = vmatprep.subr.mxu0 0.0
      %1070 = vmatpush1.msra.mxu0 0.0
      %1071 = vmatprep.subr.mxu0 0.0
      %1072 = vmatpush1.msra.mxu0 0.0
      %1073 = vmatprep.subr.mxu0 0.0
      %1074 = vmatpush1.msra.mxu0 0.0
      %1075 = vmatprep.subr.mxu0 0.0
      %1076 = vmatpush1.msra.mxu0 0.0
      %1077 = vmatprep.subr.mxu0 0.0
      %1078 = vmatpush1.msra.mxu0 0.0
      %1079 = vmatprep.subr.mxu0 0.0
      %1080 = vmatpush1.msra.mxu0 0.0
      %1081 = vmatprep.subr.mxu0 0.0
      %1082 = vmatpush1.msra.mxu0 0.0
      %1083 = vmatprep.subr.mxu0 0.0
      %1084 = vmatpush1.msra.mxu0 0.0
      %1085 = vmatprep.subr.mxu0 0.0
      %1086 = vmatpush1.msra.mxu0 0.0
      %1087 = vmatprep.subr.mxu0 0.0
      %1088 = vmatpush1.msra.mxu0 0.0
      %1089 = vmatprep.subr.mxu0 0.0
      %1090 = vmatpush1.msra.mxu0 0.0
      %1091 = vmatprep.subr.mxu0 0.0
      %1092 = vmatpush1.msra.mxu0 0.0
      %1093 = vmatprep.subr.mxu0 0.0
      %1094 = vmatpush1.msra.mxu0 0.0
      %1095 = vmatprep.subr.mxu0 0.0
      %1096 = vmatpush1.msra.mxu0 0.0
      %1097 = vmatprep.subr.mxu0 0.0
      %1098 = vmatpush1.msra.mxu0 0.0
      %1099 = vmatprep.subr.mxu0 0.0
      %1100 = vmatpush1.msra.mxu0 0.0
      %1101 = vmatprep.subr.mxu0 0.0
      %1102 = vmatpush1.msra.mxu0 0.0
      %1103 = vmatprep.subr.mxu0 0.0
      %1104 = vmatpush1.msra.mxu0 0.0
      %1105 = vmatprep.subr.mxu0 0.0
      %1106 = vmatpush1.msra.mxu0 0.0
      %1107 = vmatprep.subr.mxu0 0.0
      %1108 = vmatpush1.msra.mxu0 0.0
      %1109 = vmatprep.subr.mxu0 0.0
      %1110 = vmatpush1.msra.mxu0 0.0
      %1111 = vmatprep.subr.mxu0 0.0
      %1112 = vmatpush1.msra.mxu0 0.0
      %1113 = vmatprep.mubr.f32.mxu0 0.0
      %1114 = vmatmul.mubr.f32.gmra.mrb[0].mxu0 %v1047
      %v1115 = vpop.f32.mrb[0].mxu0
      %v1116 = vadd.f32 0.0, %v1115
      %v1117 = vpop.f32.mrb[0].mxu0
      %1118 = vdwg.mxu0
      %v1119 = vadd.f32 %v1045, %v1116
      %v1120 = vxor.u32 %v1119, 2147483648
      %v1121 = vmul.f32 %v1120, 1.442695
      %v1122 = vpow.pop %v1121
      %v1123 = vadd.f32 %v1122, 1.0
      %v1124 = vrcp.pop %v1123
      %v1125 = vmul.f32 1.0, %v1124
      %v1126 = vtanh.pop %v1119
      %v1127 = vld [vmem:[#allocation3] sm:$0xff]
      %1129 = vrot.lane.b32.xlu0 %v1127, 32
      %v1130 = vpop.permute.xlu0 %1129
      %v1132 = vmul.f32 %v1125, %v1130
      %1134 = vrot.lane.b32.xlu0 %v1126, 64
      %v1135 = vpop.permute.xlu0 %1134
      %v1137 = vmul.f32 %v1125, %v1135
      %1139 = vrot.lane.b32.xlu0 %v1137, 32
      %v1140 = vpop.permute.xlu0 %1139
      %v1142 = vadd.f32 %v1132, %v1140
      %v1143 = vtanh.pop %v1142
      %1145 = vrot.lane.b32.xlu0 %v1143, 64
      %v1146 = vpop.permute.xlu0 %1145
      %v1148 = vmul.f32 %v1125, %v1146
      %1150 = vrot.lane.b32.xlu0 %v1142, 96
      %v1151 = vpop.permute.xlu0 %1150
      %1153 = vst.msk [vmem:[#allocation3] sm:$0xff] %vm279, %v1151
      %1155 = vrot.lane.b32.xlu0 %v1148, 32
      %v1156 = vpop.permute.xlu0 %1155
      %1158 = vst.msk [vmem:[#allocation2] sm:$0xff] %vm279, %v1156
      %s1159 = scalar_lea.vmem %s257, 48
      %1160 = vst.msk [vmem:[%s1159] sm:$0xff] %vm279, %v1156
      %s1161 = scalar_lea.vmem %s251, 48
      %v1162 = vld [vmem:[%s1161] sm:$0xff]
      %v1163 = vmul.f32 %v395, %v1148
      %1165 = vrot.lane.b32.xlu0 %v1163, 32
      %v1166 = vpop.permute.xlu0 %1165
      %v1168 = vadd.f32 %v1162, %v1166
      %s1169 = scalar_lea.vmem %s263, 48
      %1170 = vst.msk [vmem:[%s1169] sm:$0xff] %vm279, %v1168
      %v1171 = vld [vmem:[#allocation2] sm:$0xff]
      %s1172 = scalar_lea.vmem %s245, 56
      %v1173 = vld [vmem:[%s1172] sm:$0xff]
      %v1175 = vsel %vm279, %v1171, 0
      %1177 = vmatprep.subr.mxu0 0.0
      %1178 = vmatpush1.msra.mxu0 %v273
      %1179 = vmatprep.subr.mxu0 0.0
      %1180 = vmatpush1.msra.mxu0 %v274
      %1181 = vmatprep.subr.mxu0 0.0
      %1182 = vmatpush1.msra.mxu0 %v275
      %1183 = vmatprep.subr.mxu0 0.0
      %1184 = vmatpush1.msra.mxu0 %v276
      %1185 = vmatprep.subr.mxu0 0.0
      %1186 = vmatpush1.msra.mxu0 0.0
      %1187 = vmatprep.subr.mxu0 0.0
      %1188 = vmatpush1.msra.mxu0 0.0
      %1189 = vmatprep.subr.mxu0 0.0
      %1190 = vmatpush1.msra.mxu0 0.0
      %1191 = vmatprep.subr.mxu0 0.0
      %1192 = vmatpush1.msra.mxu0 0.0
      %1193 = vmatprep.subr.mxu0 0.0
      %1194 = vmatpush1.msra.mxu0 0.0
      %1195 = vmatprep.subr.mxu0 0.0
      %1196 = vmatpush1.msra.mxu0 0.0
      %1197 = vmatprep.subr.mxu0 0.0
      %1198 = vmatpush1.msra.mxu0 0.0
      %1199 = vmatprep.subr.mxu0 0.0
      %1200 = vmatpush1.msra.mxu0 0.0
      %1201 = vmatprep.subr.mxu0 0.0
      %1202 = vmatpush1.msra.mxu0 0.0
      %1203 = vmatprep.subr.mxu0 0.0
      %1204 = vmatpush1.msra.mxu0 0.0
      %1205 = vmatprep.subr.mxu0 0.0
      %1206 = vmatpush1.msra.mxu0 0.0
      %1207 = vmatprep.subr.mxu0 0.0
      %1208 = vmatpush1.msra.mxu0 0.0
      %1209 = vmatprep.subr.mxu0 0.0
      %1210 = vmatpush1.msra.mxu0 0.0
      %1211 = vmatprep.subr.mxu0 0.0
      %1212 = vmatpush1.msra.mxu0 0.0
      %1213 = vmatprep.subr.mxu0 0.0
      %1214 = vmatpush1.msra.mxu0 0.0
      %1215 = vmatprep.subr.mxu0 0.0
      %1216 = vmatpush1.msra.mxu0 0.0
      %1217 = vmatprep.subr.mxu0 0.0
      %1218 = vmatpush1.msra.mxu0 0.0
      %1219 = vmatprep.subr.mxu0 0.0
      %1220 = vmatpush1.msra.mxu0 0.0
      %1221 = vmatprep.subr.mxu0 0.0
      %1222 = vmatpush1.msra.mxu0 0.0
      %1223 = vmatprep.subr.mxu0 0.0
      %1224 = vmatpush1.msra.mxu0 0.0
      %1225 = vmatprep.subr.mxu0 0.0
      %1226 = vmatpush1.msra.mxu0 0.0
      %1227 = vmatprep.subr.mxu0 0.0
      %1228 = vmatpush1.msra.mxu0 0.0
      %1229 = vmatprep.subr.mxu0 0.0
      %1230 = vmatpush1.msra.mxu0 0.0
      %1231 = vmatprep.subr.mxu0 0.0
      %1232 = vmatpush1.msra.mxu0 0.0
      %1233 = vmatprep.subr.mxu0 0.0
      %1234 = vmatpush1.msra.mxu0 0.0
      %1235 = vmatprep.subr.mxu0 0.0
      %1236 = vmatpush1.msra.mxu0 0.0
      %1237 = vmatprep.subr.mxu0 0.0
      %1238 = vmatpush1.msra.mxu0 0.0
      %1239 = vmatprep.subr.mxu0 0.0
      %1240 = vmatpush1.msra.mxu0 0.0
      %1241 = vmatprep.mubr.f32.mxu0 0.0
      %1242 = vmatmul.mubr.f32.gmra.mrb[0].mxu0 %v1175
      %v1243 = vpop.f32.mrb[0].mxu0
      %v1244 = vadd.f32 0.0, %v1243
      %v1245 = vpop.f32.mrb[0].mxu0
      %1246 = vdwg.mxu0
      %v1247 = vadd.f32 %v1173, %v1244
      %v1248 = vxor.u32 %v1247, 2147483648
      %v1249 = vmul.f32 %v1248, 1.442695
      %v1250 = vpow.pop %v1249
      %v1251 = vadd.f32 %v1250, 1.0
      %v1252 = vrcp.pop %v1251
      %v1253 = vmul.f32 1.0, %v1252
      %v1254 = vtanh.pop %v1247
      %v1255 = vld [vmem:[#allocation3] sm:$0xff]
      %1257 = vrot.lane.b32.xlu0 %v1255, 32
      %v1258 = vpop.permute.xlu0 %1257
      %v1260 = vmul.f32 %v1253, %v1258
      %1262 = vrot.lane.b32.xlu0 %v1254, 64
      %v1263 = vpop.permute.xlu0 %1262
      %v1265 = vmul.f32 %v1253, %v1263
      %1267 = vrot.lane.b32.xlu0 %v1265, 32
      %v1268 = vpop.permute.xlu0 %1267
      %v1270 = vadd.f32 %v1260, %v1268
      %v1271 = vtanh.pop %v1270
      %1273 = vrot.lane.b32.xlu0 %v1271, 64
      %v1274 = vpop.permute.xlu0 %1273
      %v1276 = vmul.f32 %v1253, %v1274
      %1278 = vrot.lane.b32.xlu0 %v1270, 96
      %v1279 = vpop.permute.xlu0 %1278
      %1281 = vst.msk [vmem:[#allocation3] sm:$0xff] %vm279, %v1279
      %1283 = vrot.lane.b32.xlu0 %v1276, 32
      %v1284 = vpop.permute.xlu0 %1283
      %1286 = vst.msk [vmem:[#allocation2] sm:$0xff] %vm279, %v1284
      %s1287 = scalar_lea.vmem %s257, 56
      %1288 = vst.msk [vmem:[%s1287] sm:$0xff] %vm279, %v1284
      %s1289 = scalar_lea.vmem %s251, 56
      %v1290 = vld [vmem:[%s1289] sm:$0xff]
      %v1291 = vmul.f32 %v395, %v1276
      %1293 = vrot.lane.b32.xlu0 %v1291, 32
      %v1294 = vpop.permute.xlu0 %1293
      %v1296 = vadd.f32 %v1290, %v1294
      %s1297 = scalar_lea.vmem %s263, 56
      %1298 = vst.msk [vmem:[%s1297] sm:$0xff] %vm279, %v1296
      %s1299 = smul.u32 8, %s18
      %p1300 = scmp.lt.s32.totalorder %s1299, 15
      %s1301 = scalar_select %p1300, %s1299, 15
      %s1302 = smul.addr %s1301, 8
      %s1303 = scalar_lea.vmem %s4, %s1302
      %s1304 = smul.u32 8, %s18
      %p1305 = scmp.lt.s32.totalorder %s1304, 15
      %s1306 = scalar_select %p1305, %s1304, 15
      %s1307 = smul.addr %s1306, 8
      %s1308 = scalar_lea.vmem %s5, %s1307
      // Predicated region
      $region41: #{ernn_forward.5} parent=35 // pred_check
        %p1309 = pneg %p130
      $region42: #{ernn_forward.5} parent=35 // pred_check_branch
        %1311 = sbr.rel (%p1309) target = $region44
      $region43: #{ernn_forward.5} parent=35 // pred_region
        %s1312 = smul.u32 8, %s18
      $region44: #{ernn_forward.5} parent=35 // pred_fallthru
        _
      // Predicated region
      $region45: #{ernn_forward.5} parent=35 // pred_check
        %p1313 = pneg %p156
      $region46: #{ernn_forward.5} parent=35 // pred_check_branch
        %1315 = sbr.rel (%p1313) target = $region48
      $region47: #{ernn_forward.5} parent=35 // pred_region
        %s1316 = smul.u32 8, %s18
      $region48: #{ernn_forward.5} parent=35 // pred_fallthru
        _
    $region36: #{ernn_forward.5} parent=5 // pred_fallthru
      _
    %p1317 = scmp.le.s32.totalorder 2, %s13
    // Predicated region
    $region49: #{ernn_forward.5} parent=5 // pred_check
      %p1318 = pneg %p1317
    $region50: #{ernn_forward.5} parent=5 // pred_check_branch
      %1320 = sbr.rel (%p1318) target = $region52
    $region51: #{ernn_forward.5} parent=5 // pred_region
      %s1321 = ssub.s32 %s13, 2
      // Predicated region
      $region53: #{ernn_forward.5} parent=51 // pred_check
        %p1322 = pneg %p136
      $region54: #{ernn_forward.5} parent=51 // pred_check_branch
        %1324 = sbr.rel (%p1322) target = $region56
      $region55: #{ernn_forward.5} parent=51 // pred_region
        %s1325 = smul.u32 8, %s19
        %p1326 = scmp.lt.s32.totalorder %s1325, 15
        %s1327 = scalar_select %p1326, %s1325, 15
        %s1328 = smul.addr %s1327, 8
        %s1329 = scalar_lea.vmem %s4, %s1328
      $region56: #{ernn_forward.5} parent=51 // pred_fallthru
        _
      // Predicated region
      $region57: #{ernn_forward.5} parent=51 // pred_check
        %p1330 = pneg %p162
      $region58: #{ernn_forward.5} parent=51 // pred_check_branch
        %1332 = sbr.rel (%p1330) target = $region60
      $region59: #{ernn_forward.5} parent=51 // pred_region
        %s1333 = smul.u32 8, %s19
        %p1334 = scmp.lt.s32.totalorder %s1333, 15
        %s1335 = scalar_select %p1334, %s1333, 15
        %s1336 = smul.addr %s1335, 8
        %s1337 = scalar_lea.vmem %s5, %s1336
      $region60: #{ernn_forward.5} parent=51 // pred_fallthru
        _
    $region52: #{ernn_forward.5} parent=5 // pred_fallthru
      _
  $region6: #{ernn_forward.5} parent=0 // loop_footer
    %s17 = sadd.s32 1, %s13
  $region7: #{ernn_forward.5} parent=0 // loop_footer_branch
    %12 = sbr.rel target = $region3
  $region8: #{ernn_forward.5} parent=0 // loop_exit
    _

// kernel: ernn_forward.7
$region0: #{ernn_forward.7}
  #allocation0 [shape = 'u32[]', space=smem, size = 0x4, offset = 0x4, fixed_abs, tag = 'smem constant byte address 0x4 - core index']
  #allocation1 [shape = 'u32[144,128]{1,0:T(1,128)}', space=vmem, size = 0x12000, scoped, tag = 'internal scratch']
  #allocation2 [shape = 'f32[8,32]{1,0:T(8,128)}', space=vmem, size = 0x1000, scoped, tag = 'scratch operand']
  #allocation3 [shape = 'f32[8,32]{1,0:T(8,128)}', space=vmem, size = 0x1000, scoped, tag = 'scratch operand']
  #allocation4 [shape = 'f32[1]{0:T(128)S(6)}', space=smem, size = 0x200, scoped, tag = 'scoped memory for ernn_forward.7']
  %s0 = inlined_call_operand.<no memory space> [shape: f32[1], index: 0, kind: input, shape index: {}]
  %s1 = inlined_call_operand.vmem [shape: f32[16,8,128], index: 1, kind: input, shape index: {}]
  %s2 = inlined_call_operand.vmem [shape: f32[32,128], index: 2, kind: input, shape index: {}]
  %s3 = inlined_call_operand.vmem [shape: f32[16,8,32], index: 3, kind: input, shape index: {}, may-alias: {3,5}]
  %s4 = inlined_call_operand.hbm [shape: f32[16,8,32], index: 4, kind: output, shape index: {0}]
  %s5 = inlined_call_operand.vmem [shape: f32[16,8,32], index: 5, kind: output, shape index: {1}, may-alias: {3,5}]
  %6 = xla_tuple %s4, %s5
  %s7 = sld [smem:[#allocation0]]
  $region61: #{ernn_forward.7} parent=0
    _
  %s9 = ssub.s32 1, %s7
  %s10 = scalar_select 0, %s9, %s7
  %11 = sst [smem:[#allocation4]] %s0
  $region1: #{ernn_forward.7} parent=0
    #allocation5 [shape = 'u8[65536]{0}', space=vmem, size = 0x10000, scoped, tag = 'output window, operand 0']
    #allocation6 [shape = 's32[2]{0}', space=sflag, size = 0x8, scoped, tag = 'scoped memory for ernn_forward.7']
    %12 = vsyncpa [#allocation6], 0
    %s13 = scalar_lea.sflag [#allocation6], 1
    %14 = vsyncpa %s13, 0
    loop: start=0, step=1, limit=4
    $region2: #{ernn_forward.7} parent=1 // loop_pre_header
      _
    $region3: #{ernn_forward.7} parent=1 // loop_header
      %s16 = sphi 0, %s20
      %p17 = scmp.ge.s32.totalorder %s16, 4
      %s24 = sphi 0, %s24
      %s26 = sphi 0, %s24
      %s27 = sphi 0, %s26
      %s41 = sphi 0, %s27
      %s47 = sphi 0, %s49
      %s50 = sphi 0, %s47
      %s51 = sphi 0, %s50
      %s67 = sphi 0, %s51
      %s71 = sphi 0, %s71
      %s73 = sphi 0, %s71
      %s74 = sphi 0, %s73
      %s88 = sphi 0, %s74
      %s94 = sphi 0, %s96
      %s97 = sphi 0, %s94
      %s98 = sphi 0, %s97
      %s114 = sphi 0, %s98
      %s120 = sphi 0, %s122
      %s123 = sphi 0, %s120
      %s124 = sphi 0, %s123
      %s140 = sphi 0, %s124
      %s146 = sphi 0, %s148
      %s149 = sphi 0, %s146
      %s150 = sphi 0, %s149
      %s166 = sphi 0, %s150
    $region4: #{ernn_forward.7} parent=1 // loop_header_branch
      %19 = sbr.rel (%p17) target = $region8
    $region5: #{ernn_forward.7} parent=1 // loop_body
      %s21 = ssub.s32 %s16, 1
      %s22 = ssub.s32 %s16, 2
      %s23 = sadd.s32 %s16, 1
      %s25 = sadd.s32 %s24, 1
      %p28 = scmp.eq.s32.totalorder %s16, 1
      %p29 = scmp.ne.s32.totalorder %s24, %s26
      %p30 = scmp.eq.s32.totalorder %s16, 0
      %p31 = por %p29, %p30
      %p32 = scmp.ne.s32.totalorder %s24, %s26
      %p33 = scmp.eq.s32.totalorder %s21, 1
      %p34 = por %p32, %p33
      %p35 = scmp.ne.s32.totalorder %s26, %s27
      %p36 = scmp.eq.s32.totalorder %s21, 0
      %p37 = por %p35, %p36
      %p38 = scmp.ne.s32.totalorder %s26, %s27
      %p39 = scmp.eq.s32.totalorder %s22, 1
      %p40 = por %p38, %p39
      %p42 = scmp.ne.s32.totalorder %s27, %s41
      %p43 = scmp.eq.s32.totalorder %s22, 0
      %p44 = por %p42, %p43
      %s45 = ssub.s32 %s16, %s23
      %p46 = scmp.eq.s32.totalorder %s45, 0
      %s48 = sadd.s32 %s47, 1
      %s49 = scalar_select %p46, %s47, %s48
      %p52 = pneg %p46
      %p53 = scmp.eq.s32.totalorder %s16, 1
      %p54 = por %p52, %p53
      %p55 = scmp.ne.s32.totalorder %s47, %s50
      %p56 = scmp.eq.s32.totalorder %s16, 0
      %p57 = por %p55, %p56
      %p58 = scmp.ne.s32.totalorder %s47, %s50
      %p59 = scmp.eq.s32.totalorder %s21, 1
      %p60 = por %p58, %p59
      %p61 = scmp.ne.s32.totalorder %s50, %s51
      %p62 = scmp.eq.s32.totalorder %s21, 0
      %p63 = por %p61, %p62
      %p64 = scmp.ne.s32.totalorder %s50, %s51
      %p65 = scmp.eq.s32.totalorder %s22, 1
      %p66 = por %p64, %p65
      %p68 = scmp.ne.s32.totalorder %s51, %s67
      %p69 = scmp.eq.s32.totalorder %s22, 0
      %p70 = por %p68, %p69
      %s72 = sadd.s32 %s71, 1
      %p75 = scmp.eq.s32.totalorder %s16, 1
      %p76 = scmp.ne.s32.totalorder %s71, %s73
      %p77 = scmp.eq.s32.totalorder %s16, 0
      %p78 = por %p76, %p77
      %p79 = scmp.ne.s32.totalorder %s71, %s73
      %p80 = scmp.eq.s32.totalorder %s21, 1
      %p81 = por %p79, %p80
      %p82 = scmp.ne.s32.totalorder %s73, %s74
      %p83 = scmp.eq.s32.totalorder %s21, 0
      %p84 = por %p82, %p83
      %p85 = scmp.ne.s32.totalorder %s73, %s74
      %p86 = scmp.eq.s32.totalorder %s22, 1
      %p87 = por %p85, %p86
      %p89 = scmp.ne.s32.totalorder %s74, %s88
      %p90 = scmp.eq.s32.totalorder %s22, 0
      %p91 = por %p89, %p90
      %s92 = ssub.s32 %s16, %s23
      %p93 = scmp.eq.s32.totalorder %s92, 0
      %s95 = sadd.s32 %s94, 1
      %s96 = scalar_select %p93, %s94, %s95
      %p99 = pneg %p93
      %p100 = scmp.eq.s32.totalorder %s16, 1
      %p101 = por %p99, %p100
      %p102 = scmp.ne.s32.totalorder %s94, %s97
      %p103 = scmp.eq.s32.totalorder %s16, 0
      %p104 = por %p102, %p103
      %p105 = scmp.ne.s32.totalorder %s94, %s97
      %p106 = scmp.eq.s32.totalorder %s21, 1
      %p107 = por %p105, %p106
      %p108 = scmp.ne.s32.totalorder %s97, %s98
      %p109 = scmp.eq.s32.totalorder %s21, 0
      %p110 = por %p108, %p109
      %p111 = scmp.ne.s32.totalorder %s97, %s98
      %p112 = scmp.eq.s32.totalorder %s22, 1
      %p113 = por %p111, %p112
      %p115 = scmp.ne.s32.totalorder %s98, %s114
      %p116 = scmp.eq.s32.totalorder %s22, 0
      %p117 = por %p115, %p116
      %s118 = ssub.s32 %s16, %s23
      %p119 = scmp.eq.s32.totalorder %s118, 0
      %s121 = sadd.s32 %s120, 1
      %s122 = scalar_select %p119, %s120, %s121
      %p125 = pneg %p119
      %p126 = scmp.eq.s32.totalorder %s16, 1
      %p127 = por %p125, %p126
      %p128 = scmp.ne.s32.totalorder %s120, %s123
      %p129 = scmp.eq.s32.totalorder %s16, 0
      %p130 = por %p128, %p129
      %p131 = scmp.ne.s32.totalorder %s120, %s123
      %p132 = scmp.eq.s32.totalorder %s21, 1
      %p133 = por %p131, %p132
      %p134 = scmp.ne.s32.totalorder %s123, %s124
      %p135 = scmp.eq.s32.totalorder %s21, 0
      %p136 = por %p134, %p135
      %p137 = scmp.ne.s32.totalorder %s123, %s124
      %p138 = scmp.eq.s32.totalorder %s22, 1
      %p139 = por %p137, %p138
      %p141 = scmp.ne.s32.totalorder %s124, %s140
      %p142 = scmp.eq.s32.totalorder %s22, 0
      %p143 = por %p141, %p142
      %s144 = ssub.s32 %s16, %s23
      %p145 = scmp.eq.s32.totalorder %s144, 0
      %s147 = sadd.s32 %s146, 1
      %s148 = scalar_select %p145, %s146, %s147
      %p151 = pneg %p145
      %p152 = scmp.eq.s32.totalorder %s16, 1
      %p153 = por %p151, %p152
      %p154 = scmp.ne.s32.totalorder %s146, %s149
      %p155 = scmp.eq.s32.totalorder %s16, 0
      %p156 = por %p154, %p155
      %p157 = scmp.ne.s32.totalorder %s146, %s149
      %p158 = scmp.eq.s32.totalorder %s21, 1
      %p159 = por %p157, %p158
      %p160 = scmp.ne.s32.totalorder %s149, %s150
      %p161 = scmp.eq.s32.totalorder %s21, 0
      %p162 = por %p160, %p161
      %p163 = scmp.ne.s32.totalorder %s149, %s150
      %p164 = scmp.eq.s32.totalorder %s22, 1
      %p165 = por %p163, %p164
      %p167 = scmp.ne.s32.totalorder %s150, %s166
      %p168 = scmp.eq.s32.totalorder %s22, 0
      %p169 = por %p167, %p168
      %p170 = scmp.le.s32.totalorder 1, %s16
      %p171 = scmp.lt.s32.totalorder %s16, 3
      %p172 = pnand %p170, %p171
      %p173 = pneg %p172
      // Predicated region
      $region9: #{ernn_forward.7} parent=5 // pred_check
        _
      $region10: #{ernn_forward.7} parent=5 // pred_check_branch
        %175 = sbr.rel (%p172) target = $region12
      $region11: #{ernn_forward.7} parent=5 // pred_region
        %s176 = ssub.s32 %s16, 1
        // Predicated region
        $region13: #{ernn_forward.7} parent=11 // pred_check
          %p177 = pneg %p37
        $region14: #{ernn_forward.7} parent=11 // pred_check_branch
          %179 = sbr.rel (%p177) target = $region16
        $region15: #{ernn_forward.7} parent=11 // pred_region
          _
        $region16: #{ernn_forward.7} parent=11 // pred_fallthru
          _
        // Predicated region
        $region17: #{ernn_forward.7} parent=11 // pred_check
          %p180 = pneg %p84
        $region18: #{ernn_forward.7} parent=11 // pred_check_branch
          %182 = sbr.rel (%p180) target = $region20
        $region19: #{ernn_forward.7} parent=11 // pred_region
          _
        $region20: #{ernn_forward.7} parent=11 // pred_fallthru
          _
      $region12: #{ernn_forward.7} parent=5 // pred_fallthru
        _
      %p183 = scmp.lt.s32.totalorder %s16, 2
      // Predicated region
      $region21: #{ernn_forward.7} parent=5 // pred_check
        %p184 = pneg %p183
      $region22: #{ernn_forward.7} parent=5 // pred_check_branch
        %186 = sbr.rel (%p184) target = $region24
      $region23: #{ernn_forward.7} parent=5 // pred_region
        // Predicated region
        $region25: #{ernn_forward.7} parent=23 // pred_check
          %p187 = pneg %p57
        $region26: #{ernn_forward.7} parent=23 // pred_check_branch
          %189 = sbr.rel (%p187) target = $region28
        $region27: #{ernn_forward.7} parent=23 // pred_region
          %s190 = smul.u32 8, %s16
          %p191 = scmp.lt.s32.totalorder %s190, 15
          %s192 = scalar_select %p191, %s190, 15
          %s193 = smul.addr %s192, 8
          %s194 = scalar_lea.vmem %s1, %s193
          %s195 = smul.u32 8, %s16
        $region28: #{ernn_forward.7} parent=23 // pred_fallthru
          _
        // Predicated region
        $region29: #{ernn_forward.7} parent=23 // pred_check
          %p196 = pneg %p104
        $region30: #{ernn_forward.7} parent=23 // pred_check_branch
          %198 = sbr.rel (%p196) target = $region32
        $region31: #{ernn_forward.7} parent=23 // pred_region
          %s199 = smul.u32 8, %s16
          %p200 = scmp.lt.s32.totalorder %s199, 15
          %s201 = scalar_select %p200, %s199, 15
          %s202 = smul.addr %s201, 8
          %s203 = scalar_lea.vmem %s3, %s202
          %s204 = smul.u32 8, %s16
        $region32: #{ernn_forward.7} parent=23 // pred_fallthru
          _
      $region24: #{ernn_forward.7} parent=5 // pred_fallthru
        _
      %p205 = scmp.le.s32.totalorder 1, %s16
      %p206 = scmp.lt.s32.totalorder %s16, 3
      %p207 = pnand %p205, %p206
      %p208 = pneg %p207
      // Predicated region
      $region33: #{ernn_forward.7} parent=5 // pred_check
        _
      $region34: #{ernn_forward.7} parent=5 // pred_check_branch
        %210 = sbr.rel (%p207) target = $region36
      $region35: #{ernn_forward.7} parent=5 // pred_region
        %s211 = ssub.s32 %s16, 1
        %p212 = pneg %p37
        %p213 = pneg %p34
        %s214 = smul.u32 8, %s21
        %p215 = scmp.lt.s32.totalorder %s214, 15
        %s216 = scalar_select %p215, %s214, 15
        %s217 = smul.addr %s216, 8
        %s218 = scalar_lea.vmem %s1, %s217
        %p219 = pneg %p63
        %p220 = pneg %p60
        %p221 = pneg %p84
        %p222 = pneg %p81
        %s223 = smul.u32 8, %s21
        %p224 = scmp.lt.s32.totalorder %s223, 15
        %s225 = scalar_select %p224, %s223, 15
        %s226 = smul.addr %s225, 8
        %s227 = scalar_lea.vmem %s3, %s226
        %p228 = pneg %p110
        %p229 = pneg %p107
        %p230 = pneg %p136
        %p231 = pneg %p133
        %s232 = sand.u32 %s123, 1
        %s233 = scalar_lea.sflag [#allocation6], %s232
        %s234 = sand.u32 %s123, 1
        %s235 = smul.addr %s234, 64
        %s236 = scalar_lea.vmem [#allocation5], %s235
        %p237 = pneg %p162
        %p238 = pneg %p159
        %s239 = smul.u32 8, %s21
        %p240 = scmp.lt.s32.totalorder %s239, 15
        %s241 = scalar_select %p240, %s239, 15
        %s242 = smul.addr %s241, 8
        %s243 = scalar_lea.vmem %s5, %s242
        %s244 = smul.u32 8, %s21
        %p245 = scmp.lt.s32.totalorder %s244, 15
        %s246 = scalar_select %p245, %s244, 15
        %s247 = smul.addr %s246, 8
        %s248 = scalar_lea.vmem %s1, %s247
        %s249 = smul.u32 8, %s21
        %s250 = smul.u32 8, %s21
        %p251 = scmp.lt.s32.totalorder %s250, 15
        %s252 = scalar_select %p251, %s250, 15
        %s253 = smul.addr %s252, 8
        %s254 = scalar_lea.vmem %s3, %s253
        %s255 = smul.u32 8, %s21
        %s256 = smul.u32 8, %s21
        %s257 = smul.u32 8, %s21
        %p258 = scmp.lt.s32.totalorder %s257, 15
        %s259 = scalar_select %p258, %s257, 15
        %s260 = smul.addr %s259, 8
        %s261 = scalar_lea.vmem %s5, %s260
        %s262 = smul.u32 8, %s21
        %p263 = scmp.eq.s32.totalorder %s21, 0
        // Predicated region
        $region37: #{ernn_forward.7} parent=35 // pred_check
          %p264 = pneg %p263
        $region38: #{ernn_forward.7} parent=35 // pred_check_branch
          %266 = sbr.rel (%p264) target = $region40
        $region39: #{ernn_forward.7} parent=35 // pred_region
          %vm267 = vcmask 261120
          %268 = vst.msk [vmem:[#allocation2] sm:$0xff] %vm267, 0.0
          %269 = vst.msk [vmem:[#allocation3] sm:$0xff] %vm267, 0.0
        $region40: #{ernn_forward.7} parent=35 // pred_fallthru
          _
        %s270 = sld [smem:[#allocation4]]
        %v271 = vld [vmem:[%s2] sm:$0xff]
        %v272 = vld [vmem:[%s2 + $0x8] sm:$0xff]
        %v273 = vld [vmem:[%s2 + $0x10] sm:$0xff]
        %v274 = vld [vmem:[%s2 + $0x18] sm:$0xff]
        %v275 = vld [vmem:[#allocation2] sm:$0xff]
        %v276 = vld [vmem:[%s248] sm:$0xff]
        %vm277 = vcmask 261120
        %v279 = vsel %vm277, %v275, 0
        %281 = vmatprep.subr.mxu0 0.0
        %282 = vmatpush1.msra.mxu0 %v271
        %283 = vmatprep.subr.mxu0 0.0
        %284 = vmatpush1.msra.mxu0 %v272
        %285 = vmatprep.subr.mxu0 0.0
        %286 = vmatpush1.msra.mxu0 %v273
        %287 = vmatprep.subr.mxu0 0.0
        %288 = vmatpush1.msra.mxu0 %v274
        %289 = vmatprep.subr.mxu0 0.0
        %290 = vmatpush1.msra.mxu0 0.0
        %291 = vmatprep.subr.mxu0 0.0
        %292 = vmatpush1.msra.mxu0 0.0
        %293 = vmatprep.subr.mxu0 0.0
        %294 = vmatpush1.msra.mxu0 0.0
        %295 = vmatprep.subr.mxu0 0.0
        %296 = vmatpush1.msra.mxu0 0.0
        %297 = vmatprep.subr.mxu0 0.0
        %298 = vmatpush1.msra.mxu0 0.0
        %299 = vmatprep.subr.mxu0 0.0
        %300 = vmatpush1.msra.mxu0 0.0
        %301 = vmatprep.subr.mxu0 0.0
        %302 = vmatpush1.msra.mxu0 0.0
        %303 = vmatprep.subr.mxu0 0.0
        %304 = vmatpush1.msra.mxu0 0.0
        %305 = vmatprep.subr.mxu0 0.0
        %306 = vmatpush1.msra.mxu0 0.0
        %307 = vmatprep.subr.mxu0 0.0
        %308 = vmatpush1.msra.mxu0 0.0
        %309 = vmatprep.subr.mxu0 0.0
        %310 = vmatpush1.msra.mxu0 0.0
        %311 = vmatprep.subr.mxu0 0.0
        %312 = vmatpush1.msra.mxu0 0.0
        %313 = vmatprep.subr.mxu0 0.0
        %314 = vmatpush1.msra.mxu0 0.0
        %315 = vmatprep.subr.mxu0 0.0
        %316 = vmatpush1.msra.mxu0 0.0
        %317 = vmatprep.subr.mxu0 0.0
        %318 = vmatpush1.msra.mxu0 0.0
        %319 = vmatprep.subr.mxu0 0.0
        %320 = vmatpush1.msra.mxu0 0.0
        %321 = vmatprep.subr.mxu0 0.0
        %322 = vmatpush1.msra.mxu0 0.0
        %323 = vmatprep.subr.mxu0 0.0
        %324 = vmatpush1.msra.mxu0 0.0
        %325 = vmatprep.subr.mxu0 0.0
        %326 = vmatpush1.msra.mxu0 0.0
        %327 = vmatprep.subr.mxu0 0.0
        %328 = vmatpush1.msra.mxu0 0.0
        %329 = vmatprep.subr.mxu0 0.0
        %330 = vmatpush1.msra.mxu0 0.0
        %331 = vmatprep.subr.mxu0 0.0
        %332 = vmatpush1.msra.mxu0 0.0
        %333 = vmatprep.subr.mxu0 0.0
        %334 = vmatpush1.msra.mxu0 0.0
        %335 = vmatprep.subr.mxu0 0.0
        %336 = vmatpush1.msra.mxu0 0.0
        %337 = vmatprep.subr.mxu0 0.0
        %338 = vmatpush1.msra.mxu0 0.0
        %339 = vmatprep.subr.mxu0 0.0
        %340 = vmatpush1.msra.mxu0 0.0
        %341 = vmatprep.subr.mxu0 0.0
        %342 = vmatpush1.msra.mxu0 0.0
        %343 = vmatprep.subr.mxu0 0.0
        %344 = vmatpush1.msra.mxu0 0.0
        %345 = vmatprep.mubr.f32.mxu0 0.0
        %346 = vmatmul.mubr.f32.gmra.mrb[0].mxu0 %v279
        %v347 = vpop.f32.mrb[0].mxu0
        %v348 = vadd.f32 0.0, %v347
        %v349 = vpop.f32.mrb[0].mxu0
        %350 = vdwg.mxu0
        %v351 = vadd.f32 %v276, %v348
        %v352 = vxor.u32 %v351, 2147483648
        %v353 = vmul.f32 %v352, 1.442695
        %v354 = vpow.pop %v353
        %v355 = vadd.f32 %v354, 1.0
        %v356 = vrcp.pop %v355
        %v357 = vmul.f32 1.0, %v356
        %v358 = vtanh.pop %v351
        %v359 = vld [vmem:[#allocation3] sm:$0xff]
        %361 = vrot.lane.b32.xlu0 %v359, 32
        %v362 = vpop.permute.xlu0 %361
        %v364 = vmul.f32 %v357, %v362
        %366 = vrot.lane.b32.xlu0 %v358, 64
        %v367 = vpop.permute.xlu0 %366
        %v369 = vmul.f32 %v357, %v367
        %371 = vrot.lane.b32.xlu0 %v369, 32
        %v372 = vpop.permute.xlu0 %371
        %v374 = vadd.f32 %v364, %v372
        %v375 = vtanh.pop %v374
        %377 = vrot.lane.b32.xlu0 %v375, 64
        %v378 = vpop.permute.xlu0 %377
        %v380 = vmul.f32 %v357, %v378
        %382 = vrot.lane.b32.xlu0 %v374, 96
        %v383 = vpop.permute.xlu0 %382
        %385 = vst.msk [vmem:[#allocation3] sm:$0xff] %vm277, %v383
        %387 = vrot.lane.b32.xlu0 %v380, 32
        %v388 = vpop.permute.xlu0 %387
        %390 = vst.msk [vmem:[#allocation2] sm:$0xff] %vm277, %v388
        %391 = vst.msk [vmem:[%s236] sm:$0xff] %vm277, %v388
        %v392 = vld [vmem:[%s254] sm:$0xff]
        %v393 = vstv %s270
        %v394 = vmul.f32 %v393, %v380
        %396 = vrot.lane.b32.xlu0 %v394, 32
        %v397 = vpop.permute.xlu0 %396
        %v399 = vadd.f32 %v392, %v397
        %400 = vst.msk [vmem:[%s261] sm:$0xff] %vm277, %v399
        %v401 = vld [vmem:[#allocation2] sm:$0xff]
        %s402 = scalar_lea.vmem %s248, 8
        %v403 = vld [vmem:[%s402] sm:$0xff]
        %v405 = vsel %vm277, %v401, 0
        %407 = vmatprep.subr.mxu0 0.0
        %408 = vmatpush1.msra.mxu0 %v271
        %409 = vmatprep.subr.mxu0 0.0
        %410 = vmatpush1.msra.mxu0 %v272
        %411 = vmatprep.subr.mxu0 0.0
        %412 = vmatpush1.msra.mxu0 %v273
        %413 = vmatprep.subr.mxu0 0.0
        %414 = vmatpush1.msra.mxu0 %v274
        %415 = vmatprep.subr.mxu0 0.0
        %416 = vmatpush1.msra.mxu0 0.0
        %417 = vmatprep.subr.mxu0 0.0
        %418 = vmatpush1.msra.mxu0 0.0
        %419 = vmatprep.subr.mxu0 0.0
        %420 = vmatpush1.msra.mxu0 0.0
        %421 = vmatprep.subr.mxu0 0.0
        %422 = vmatpush1.msra.mxu0 0.0
        %423 = vmatprep.subr.mxu0 0.0
        %424 = vmatpush1.msra.mxu0 0.0
        %425 = vmatprep.subr.mxu0 0.0
        %426 = vmatpush1.msra.mxu0 0.0
        %427 = vmatprep.subr.mxu0 0.0
        %428 = vmatpush1.msra.mxu0 0.0
        %429 = vmatprep.subr.mxu0 0.0
        %430 = vmatpush1.msra.mxu0 0.0
        %431 = vmatprep.subr.mxu0 0.0
        %432 = vmatpush1.msra.mxu0 0.0
        %433 = vmatprep.subr.mxu0 0.0
        %434 = vmatpush1.msra.mxu0 0.0
        %435 = vmatprep.subr.mxu0 0.0
        %436 = vmatpush1.msra.mxu0 0.0
        %437 = vmatprep.subr.mxu0 0.0
        %438 = vmatpush1.msra.mxu0 0.0
        %439 = vmatprep.subr.mxu0 0.0
        %440 = vmatpush1.msra.mxu0 0.0
        %441 = vmatprep.subr.mxu0 0.0
        %442 = vmatpush1.msra.mxu0 0.0
        %443 = vmatprep.subr.mxu0 0.0
        %444 = vmatpush1.msra.mxu0 0.0
        %445 = vmatprep.subr.mxu0 0.0
        %446 = vmatpush1.msra.mxu0 0.0
        %447 = vmatprep.subr.mxu0 0.0
        %448 = vmatpush1.msra.mxu0 0.0
        %449 = vmatprep.subr.mxu0 0.0
        %450 = vmatpush1.msra.mxu0 0.0
        %451 = vmatprep.subr.mxu0 0.0
        %452 = vmatpush1.msra.mxu0 0.0
        %453 = vmatprep.subr.mxu0 0.0
        %454 = vmatpush1.msra.mxu0 0.0
        %455 = vmatprep.subr.mxu0 0.0
        %456 = vmatpush1.msra.mxu0 0.0
        %457 = vmatprep.subr.mxu0 0.0
        %458 = vmatpush1.msra.mxu0 0.0
        %459 = vmatprep.subr.mxu0 0.0
        %460 = vmatpush1.msra.mxu0 0.0
        %461 = vmatprep.subr.mxu0 0.0
        %462 = vmatpush1.msra.mxu0 0.0
        %463 = vmatprep.subr.mxu0 0.0
        %464 = vmatpush1.msra.mxu0 0.0
        %465 = vmatprep.subr.mxu0 0.0
        %466 = vmatpush1.msra.mxu0 0.0
        %467 = vmatprep.subr.mxu0 0.0
        %468 = vmatpush1.msra.mxu0 0.0
        %469 = vmatprep.subr.mxu0 0.0
        %470 = vmatpush1.msra.mxu0 0.0
        %471 = vmatprep.mubr.f32.mxu0 0.0
        %472 = vmatmul.mubr.f32.gmra.mrb[0].mxu0 %v405
        %v473 = vpop.f32.mrb[0].mxu0
        %v474 = vadd.f32 0.0, %v473
        %v475 = vpop.f32.mrb[0].mxu0
        %476 = vdwg.mxu0
        %v477 = vadd.f32 %v403, %v474
        %v478 = vxor.u32 %v477, 2147483648
        %v479 = vmul.f32 %v478, 1.442695
        %v480 = vpow.pop %v479
        %v481 = vadd.f32 %v480, 1.0
        %v482 = vrcp.pop %v481
        %v483 = vmul.f32 1.0, %v482
        %v484 = vtanh.pop %v477
        %v485 = vld [vmem:[#allocation3] sm:$0xff]
        %487 = vrot.lane.b32.xlu0 %v485, 32
        %v488 = vpop.permute.xlu0 %487
        %v490 = vmul.f32 %v483, %v488
        %492 = vrot.lane.b32.xlu0 %v484, 64
        %v493 = vpop.permute.xlu0 %492
        %v495 = vmul.f32 %v483, %v493
        %497 = vrot.lane.b32.xlu0 %v495, 32
        %v498 = vpop.permute.xlu0 %497
        %v500 = vadd.f32 %v490, %v498
        %v501 = vtanh.pop %v500
        %503 = vrot.lane.b32.xlu0 %v501, 64
        %v504 = vpop.permute.xlu0 %503
        %v506 = vmul.f32 %v483, %v504
        %508 = vrot.lane.b32.xlu0 %v500, 96
        %v509 = vpop.permute.xlu0 %508
        %511 = vst.msk [vmem:[#allocation3] sm:$0xff] %vm277, %v509
        %513 = vrot.lane.b32.xlu0 %v506, 32
        %v514 = vpop.permute.xlu0 %513
        %516 = vst.msk [vmem:[#allocation2] sm:$0xff] %vm277, %v514
        %s517 = scalar_lea.vmem %s236, 8 [#allocation5]
        %518 = vst.msk [vmem:[%s517] sm:$0xff] %vm277, %v514
        %s519 = scalar_lea.vmem %s254, 8
        %v520 = vld [vmem:[%s519] sm:$0xff]
        %v521 = vmul.f32 %v393, %v506
        %523 = vrot.lane.b32.xlu0 %v521, 32
        %v524 = vpop.permute.xlu0 %523
        %v526 = vadd.f32 %v520, %v524
        %s527 = scalar_lea.vmem %s261, 8
        %528 = vst.msk [vmem:[%s527] sm:$0xff] %vm277, %v526
        %v529 = vld [vmem:[#allocation2] sm:$0xff]
        %s530 = scalar_lea.vmem %s248, 16
        %v531 = vld [vmem:[%s530] sm:$0xff]
        %v533 = vsel %vm277, %v529, 0
        %535 = vmatprep.subr.mxu0 0.0
        %536 = vmatpush1.msra.mxu0 %v271
        %537 = vmatprep.subr.mxu0 0.0
        %538 = vmatpush1.msra.mxu0 %v272
        %539 = vmatprep.subr.mxu0 0.0
        %540 = vmatpush1.msra.mxu0 %v273
        %541 = vmatprep.subr.mxu0 0.0
        %542 = vmatpush1.msra.mxu0 %v274
        %543 = vmatprep.subr.mxu0 0.0
        %544 = vmatpush1.msra.mxu0 0.0
        %545 = vmatprep.subr.mxu0 0.0
        %546 = vmatpush1.msra.mxu0 0.0
        %547 = vmatprep.subr.mxu0 0.0
        %548 = vmatpush1.msra.mxu0 0.0
        %549 = vmatprep.subr.mxu0 0.0
        %550 = vmatpush1.msra.mxu0 0.0
        %551 = vmatprep.subr.mxu0 0.0
        %552 = vmatpush1.msra.mxu0 0.0
        %553 = vmatprep.subr.mxu0 0.0
        %554 = vmatpush1.msra.mxu0 0.0
        %555 = vmatprep.subr.mxu0 0.0
        %556 = vmatpush1.msra.mxu0 0.0
        %557 = vmatprep.subr.mxu0 0.0
        %558 = vmatpush1.msra.mxu0 0.0
        %559 = vmatprep.subr.mxu0 0.0
        %560 = vmatpush1.msra.mxu0 0.0
        %561 = vmatprep.subr.mxu0 0.0
        %562 = vmatpush1.msra.mxu0 0.0
        %563 = vmatprep.subr.mxu0 0.0
        %564 = vmatpush1.msra.mxu0 0.0
        %565 = vmatprep.subr.mxu0 0.0
        %566 = vmatpush1.msra.mxu0 0.0
        %567 = vmatprep.subr.mxu0 0.0
        %568 = vmatpush1.msra.mxu0 0.0
        %569 = vmatprep.subr.mxu0 0.0
        %570 = vmatpush1.msra.mxu0 0.0
        %571 = vmatprep.subr.mxu0 0.0
        %572 = vmatpush1.msra.mxu0 0.0
        %573 = vmatprep.subr.mxu0 0.0
        %574 = vmatpush1.msra.mxu0 0.0
        %575 = vmatprep.subr.mxu0 0.0
        %576 = vmatpush1.msra.mxu0 0.0
        %577 = vmatprep.subr.mxu0 0.0
        %578 = vmatpush1.msra.mxu0 0.0
        %579 = vmatprep.subr.mxu0 0.0
        %580 = vmatpush1.msra.mxu0 0.0
        %581 = vmatprep.subr.mxu0 0.0
        %582 = vmatpush1.msra.mxu0 0.0
        %583 = vmatprep.subr.mxu0 0.0
        %584 = vmatpush1.msra.mxu0 0.0
        %585 = vmatprep.subr.mxu0 0.0
        %586 = vmatpush1.msra.mxu0 0.0
        %587 = vmatprep.subr.mxu0 0.0
        %588 = vmatpush1.msra.mxu0 0.0
        %589 = vmatprep.subr.mxu0 0.0
        %590 = vmatpush1.msra.mxu0 0.0
        %591 = vmatprep.subr.mxu0 0.0
        %592 = vmatpush1.msra.mxu0 0.0
        %593 = vmatprep.subr.mxu0 0.0
        %594 = vmatpush1.msra.mxu0 0.0
        %595 = vmatprep.subr.mxu0 0.0
        %596 = vmatpush1.msra.mxu0 0.0
        %597 = vmatprep.subr.mxu0 0.0
        %598 = vmatpush1.msra.mxu0 0.0
        %599 = vmatprep.mubr.f32.mxu0 0.0
        %600 = vmatmul.mubr.f32.gmra.mrb[0].mxu0 %v533
        %v601 = vpop.f32.mrb[0].mxu0
        %v602 = vadd.f32 0.0, %v601
        %v603 = vpop.f32.mrb[0].mxu0
        %604 = vdwg.mxu0
        %v605 = vadd.f32 %v531, %v602
        %v606 = vxor.u32 %v605, 2147483648
        %v607 = vmul.f32 %v606, 1.442695
        %v608 = vpow.pop %v607
        %v609 = vadd.f32 %v608, 1.0
        %v610 = vrcp.pop %v609
        %v611 = vmul.f32 1.0, %v610
        %v612 = vtanh.pop %v605
        %v613 = vld [vmem:[#allocation3] sm:$0xff]
        %615 = vrot.lane.b32.xlu0 %v613, 32
        %v616 = vpop.permute.xlu0 %615
        %v618 = vmul.f32 %v611, %v616
        %620 = vrot.lane.b32.xlu0 %v612, 64
        %v621 = vpop.permute.xlu0 %620
        %v623 = vmul.f32 %v611, %v621
        %625 = vrot.lane.b32.xlu0 %v623, 32
        %v626 = vpop.permute.xlu0 %625
        %v628 = vadd.f32 %v618, %v626
        %v629 = vtanh.pop %v628
        %631 = vrot.lane.b32.xlu0 %v629, 64
        %v632 = vpop.permute.xlu0 %631
        %v634 = vmul.f32 %v611, %v632
        %636 = vrot.lane.b32.xlu0 %v628, 96
        %v637 = vpop.permute.xlu0 %636
        %639 = vst.msk [vmem:[#allocation3] sm:$0xff] %vm277, %v637
        %641 = vrot.lane.b32.xlu0 %v634, 32
        %v642 = vpop.permute.xlu0 %641
        %644 = vst.msk [vmem:[#allocation2] sm:$0xff] %vm277, %v642
        %s645 = scalar_lea.vmem %s236, 16 [#allocation5]
        %646 = vst.msk [vmem:[%s645] sm:$0xff] %vm277, %v642
        %s647 = scalar_lea.vmem %s254, 16
        %v648 = vld [vmem:[%s647] sm:$0xff]
        %v649 = vmul.f32 %v393, %v634
        %651 = vrot.lane.b32.xlu0 %v649, 32
        %v652 = vpop.permute.xlu0 %651
        %v654 = vadd.f32 %v648, %v652
        %s655 = scalar_lea.vmem %s261, 16
        %656 = vst.msk [vmem:[%s655] sm:$0xff] %vm277, %v654
        %v657 = vld [vmem:[#allocation2] sm:$0xff]
        %s658 = scalar_lea.vmem %s248, 24
        %v659 = vld [vmem:[%s658] sm:$0xff]
        %v661 = vsel %vm277, %v657, 0
        %663 = vmatprep.subr.mxu0 0.0
        %664 = vmatpush1.msra.mxu0 %v271
        %665 = vmatprep.subr.mxu0 0.0
        %666 = vmatpush1.msra.mxu0 %v272
        %667 = vmatprep.subr.mxu0 0.0
        %668 = vmatpush1.msra.mxu0 %v273
        %669 = vmatprep.subr.mxu0 0.0
        %670 = vmatpush1.msra.mxu0 %v274
        %671 = vmatprep.subr.mxu0 0.0
        %672 = vmatpush1.msra.mxu0 0.0
        %673 = vmatprep.subr.mxu0 0.0
        %674 = vmatpush1.msra.mxu0 0.0
        %675 = vmatprep.subr.mxu0 0.0
        %676 = vmatpush1.msra.mxu0 0.0
        %677 = vmatprep.subr.mxu0 0.0
        %678 = vmatpush1.msra.mxu0 0.0
        %679 = vmatprep.subr.mxu0 0.0
        %680 = vmatpush1.msra.mxu0 0.0
        %681 = vmatprep.subr.mxu0 0.0
        %682 = vmatpush1.msra.mxu0 0.0
        %683 = vmatprep.subr.mxu0 0.0
        %684 = vmatpush1.msra.mxu0 0.0
        %685 = vmatprep.subr.mxu0 0.0
        %686 = vmatpush1.msra.mxu0 0.0
        %687 = vmatprep.subr.mxu0 0.0
        %688 = vmatpush1.msra.mxu0 0.0
        %689 = vmatprep.subr.mxu0 0.0
        %690 = vmatpush1.msra.mxu0 0.0
        %691 = vmatprep.subr.mxu0 0.0
        %692 = vmatpush1.msra.mxu0 0.0
        %693 = vmatprep.subr.mxu0 0.0
        %694 = vmatpush1.msra.mxu0 0.0
        %695 = vmatprep.subr.mxu0 0.0
        %696 = vmatpush1.msra.mxu0 0.0
        %697 = vmatprep.subr.mxu0 0.0
        %698 = vmatpush1.msra.mxu0 0.0
        %699 = vmatprep.subr.mxu0 0.0
        %700 = vmatpush1.msra.mxu0 0.0
        %701 = vmatprep.subr.mxu0 0.0
        %702 = vmatpush1.msra.mxu0 0.0
        %703 = vmatprep.subr.mxu0 0.0
        %704 = vmatpush1.msra.mxu0 0.0
        %705 = vmatprep.subr.mxu0 0.0
        %706 = vmatpush1.msra.mxu0 0.0
        %707 = vmatprep.subr.mxu0 0.0
        %708 = vmatpush1.msra.mxu0 0.0
        %709 = vmatprep.subr.mxu0 0.0
        %710 = vmatpush1.msra.mxu0 0.0
        %711 = vmatprep.subr.mxu0 0.0
        %712 = vmatpush1.msra.mxu0 0.0
        %713 = vmatprep.subr.mxu0 0.0
        %714 = vmatpush1.msra.mxu0 0.0
        %715 = vmatprep.subr.mxu0 0.0
        %716 = vmatpush1.msra.mxu0 0.0
        %717 = vmatprep.subr.mxu0 0.0
        %718 = vmatpush1.msra.mxu0 0.0
        %719 = vmatprep.subr.mxu0 0.0
        %720 = vmatpush1.msra.mxu0 0.0
        %721 = vmatprep.subr.mxu0 0.0
        %722 = vmatpush1.msra.mxu0 0.0
        %723 = vmatprep.subr.mxu0 0.0
        %724 = vmatpush1.msra.mxu0 0.0
        %725 = vmatprep.subr.mxu0 0.0
        %726 = vmatpush1.msra.mxu0 0.0
        %727 = vmatprep.mubr.f32.mxu0 0.0
        %728 = vmatmul.mubr.f32.gmra.mrb[0].mxu0 %v661
        %v729 = vpop.f32.mrb[0].mxu0
        %v730 = vadd.f32 0.0, %v729
        %v731 = vpop.f32.mrb[0].mxu0
        %732 = vdwg.mxu0
        %v733 = vadd.f32 %v659, %v730
        %v734 = vxor.u32 %v733, 2147483648
        %v735 = vmul.f32 %v734, 1.442695
        %v736 = vpow.pop %v735
        %v737 = vadd.f32 %v736, 1.0
        %v738 = vrcp.pop %v737
        %v739 = vmul.f32 1.0, %v738
        %v740 = vtanh.pop %v733
        %v741 = vld [vmem:[#allocation3] sm:$0xff]
        %743 = vrot.lane.b32.xlu0 %v741, 32
        %v744 = vpop.permute.xlu0 %743
        %v746 = vmul.f32 %v739, %v744
        %748 = vrot.lane.b32.xlu0 %v740, 64
        %v749 = vpop.permute.xlu0 %748
        %v751 = vmul.f32 %v739, %v749
        %753 = vrot.lane.b32.xlu0 %v751, 32
        %v754 = vpop.permute.xlu0 %753
        %v756 = vadd.f32 %v746, %v754
        %v757 = vtanh.pop %v756
        %759 = vrot.lane.b32.xlu0 %v757, 64
        %v760 = vpop.permute.xlu0 %759
        %v762 = vmul.f32 %v739, %v760
        %764 = vrot.lane.b32.xlu0 %v756, 96
        %v765 = vpop.permute.xlu0 %764
        %767 = vst.msk [vmem:[#allocation3] sm:$0xff] %vm277, %v765
        %769 = vrot.lane.b32.xlu0 %v762, 32
        %v770 = vpop.permute.xlu0 %769
        %772 = vst.msk [vmem:[#allocation2] sm:$0xff] %vm277, %v770
        %s773 = scalar_lea.vmem %s236, 24 [#allocation5]
        %774 = vst.msk [vmem:[%s773] sm:$0xff] %vm277, %v770
        %s775 = scalar_lea.vmem %s254, 24
        %v776 = vld [vmem:[%s775] sm:$0xff]
        %v777 = vmul.f32 %v393, %v762
        %779 = vrot.lane.b32.xlu0 %v777, 32
        %v780 = vpop.permute.xlu0 %779
        %v782 = vadd.f32 %v776, %v780
        %s783 = scalar_lea.vmem %s261, 24
        %784 = vst.msk [vmem:[%s783] sm:$0xff] %vm277, %v782
        %v785 = vld [vmem:[#allocation2] sm:$0xff]
        %s786 = scalar_lea.vmem %s248, 32
        %v787 = vld [vmem:[%s786] sm:$0xff]
        %v789 = vsel %vm277, %v785, 0
        %791 = vmatprep.subr.mxu0 0.0
        %792 = vmatpush1.msra.mxu0 %v271
        %793 = vmatprep.subr.mxu0 0.0
        %794 = vmatpush1.msra.mxu0 %v272
        %795 = vmatprep.subr.mxu0 0.0
        %796 = vmatpush1.msra.mxu0 %v273
        %797 = vmatprep.subr.mxu0 0.0
        %798 = vmatpush1.msra.mxu0 %v274
        %799 = vmatprep.subr.mxu0 0.0
        %800 = vmatpush1.msra.mxu0 0.0
        %801 = vmatprep.subr.mxu0 0.0
        %802 = vmatpush1.msra.mxu0 0.0
        %803 = vmatprep.subr.mxu0 0.0
        %804 = vmatpush1.msra.mxu0 0.0
        %805 = vmatprep.subr.mxu0 0.0
        %806 = vmatpush1.msra.mxu0 0.0
        %807 = vmatprep.subr.mxu0 0.0
        %808 = vmatpush1.msra.mxu0 0.0
        %809 = vmatprep.subr.mxu0 0.0
        %810 = vmatpush1.msra.mxu0 0.0
        %811 = vmatprep.subr.mxu0 0.0
        %812 = vmatpush1.msra.mxu0 0.0
        %813 = vmatprep.subr.mxu0 0.0
        %814 = vmatpush1.msra.mxu0 0.0
        %815 = vmatprep.subr.mxu0 0.0
        %816 = vmatpush1.msra.mxu0 0.0
        %817 = vmatprep.subr.mxu0 0.0
        %818 = vmatpush1.msra.mxu0 0.0
        %819 = vmatprep.subr.mxu0 0.0
        %820 = vmatpush1.msra.mxu0 0.0
        %821 = vmatprep.subr.mxu0 0.0
        %822 = vmatpush1.msra.mxu0 0.0
        %823 = vmatprep.subr.mxu0 0.0
        %824 = vmatpush1.msra.mxu0 0.0
        %825 = vmatprep.subr.mxu0 0.0
        %826 = vmatpush1.msra.mxu0 0.0
        %827 = vmatprep.subr.mxu0 0.0
        %828 = vmatpush1.msra.mxu0 0.0
        %829 = vmatprep.subr.mxu0 0.0
        %830 = vmatpush1.msra.mxu0 0.0
        %831 = vmatprep.subr.mxu0 0.0
        %832 = vmatpush1.msra.mxu0 0.0
        %833 = vmatprep.subr.mxu0 0.0
        %834 = vmatpush1.msra.mxu0 0.0
        %835 = vmatprep.subr.mxu0 0.0
        %836 = vmatpush1.msra.mxu0 0.0
        %837 = vmatprep.subr.mxu0 0.0
        %838 = vmatpush1.msra.mxu0 0.0
        %839 = vmatprep.subr.mxu0 0.0
        %840 = vmatpush1.msra.mxu0 0.0
        %841 = vmatprep.subr.mxu0 0.0
        %842 = vmatpush1.msra.mxu0 0.0
        %843 = vmatprep.subr.mxu0 0.0
        %844 = vmatpush1.msra.mxu0 0.0
        %845 = vmatprep.subr.mxu0 0.0
        %846 = vmatpush1.msra.mxu0 0.0
        %847 = vmatprep.subr.mxu0 0.0
        %848 = vmatpush1.msra.mxu0 0.0
        %849 = vmatprep.subr.mxu0 0.0
        %850 = vmatpush1.msra.mxu0 0.0
        %851 = vmatprep.subr.mxu0 0.0
        %852 = vmatpush1.msra.mxu0 0.0
        %853 = vmatprep.subr.mxu0 0.0
        %854 = vmatpush1.msra.mxu0 0.0
        %855 = vmatprep.mubr.f32.mxu0 0.0
        %856 = vmatmul.mubr.f32.gmra.mrb[0].mxu0 %v789
        %v857 = vpop.f32.mrb[0].mxu0
        %v858 = vadd.f32 0.0, %v857
        %v859 = vpop.f32.mrb[0].mxu0
        %860 = vdwg.mxu0
        %v861 = vadd.f32 %v787, %v858
        %v862 = vxor.u32 %v861, 2147483648
        %v863 = vmul.f32 %v862, 1.442695
        %v864 = vpow.pop %v863
        %v865 = vadd.f32 %v864, 1.0
        %v866 = vrcp.pop %v865
        %v867 = vmul.f32 1.0, %v866
        %v868 = vtanh.pop %v861
        %v869 = vld [vmem:[#allocation3] sm:$0xff]
        %871 = vrot.lane.b32.xlu0 %v869, 32
        %v872 = vpop.permute.xlu0 %871
        %v874 = vmul.f32 %v867, %v872
        %876 = vrot.lane.b32.xlu0 %v868, 64
        %v877 = vpop.permute.xlu0 %876
        %v879 = vmul.f32 %v867, %v877
        %881 = vrot.lane.b32.xlu0 %v879, 32
        %v882 = vpop.permute.xlu0 %881
        %v884 = vadd.f32 %v874, %v882
        %v885 = vtanh.pop %v884
        %887 = vrot.lane.b32.xlu0 %v885, 64
        %v888 = vpop.permute.xlu0 %887
        %v890 = vmul.f32 %v867, %v888
        %892 = vrot.lane.b32.xlu0 %v884, 96
        %v893 = vpop.permute.xlu0 %892
        %895 = vst.msk [vmem:[#allocation3] sm:$0xff] %vm277, %v893
        %897 = vrot.lane.b32.xlu0 %v890, 32
        %v898 = vpop.permute.xlu0 %897
        %900 = vst.msk [vmem:[#allocation2] sm:$0xff] %vm277, %v898
        %s901 = scalar_lea.vmem %s236, 32 [#allocation5]
        %902 = vst.msk [vmem:[%s901] sm:$0xff] %vm277, %v898
        %s903 = scalar_lea.vmem %s254, 32
        %v904 = vld [vmem:[%s903] sm:$0xff]
        %v905 = vmul.f32 %v393, %v890
        %907 = vrot.lane.b32.xlu0 %v905, 32
        %v908 = vpop.permute.xlu0 %907
        %v910 = vadd.f32 %v904, %v908
        %s911 = scalar_lea.vmem %s261, 32
        %912 = vst.msk [vmem:[%s911] sm:$0xff] %vm277, %v910
        %v913 = vld [vmem:[#allocation2] sm:$0xff]
        %s914 = scalar_lea.vmem %s248, 40
        %v915 = vld [vmem:[%s914] sm:$0xff]
        %v917 = vsel %vm277, %v913, 0
        %919 = vmatprep.subr.mxu0 0.0
        %920 = vmatpush1.msra.mxu0 %v271
        %921 = vmatprep.subr.mxu0 0.0
        %922 = vmatpush1.msra.mxu0 %v272
        %923 = vmatprep.subr.mxu0 0.0
        %924 = vmatpush1.msra.mxu0 %v273
        %925 = vmatprep.subr.mxu0 0.0
        %926 = vmatpush1.msra.mxu0 %v274
        %927 = vmatprep.subr.mxu0 0.0
        %928 = vmatpush1.msra.mxu0 0.0
        %929 = vmatprep.subr.mxu0 0.0
        %930 = vmatpush1.msra.mxu0 0.0
        %931 = vmatprep.subr.mxu0 0.0
        %932 = vmatpush1.msra.mxu0 0.0
        %933 = vmatprep.subr.mxu0 0.0
        %934 = vmatpush1.msra.mxu0 0.0
        %935 = vmatprep.subr.mxu0 0.0
        %936 = vmatpush1.msra.mxu0 0.0
        %937 = vmatprep.subr.mxu0 0.0
        %938 = vmatpush1.msra.mxu0 0.0
        %939 = vmatprep.subr.mxu0 0.0
        %940 = vmatpush1.msra.mxu0 0.0
        %941 = vmatprep.subr.mxu0 0.0
        %942 = vmatpush1.msra.mxu0 0.0
        %943 = vmatprep.subr.mxu0 0.0
        %944 = vmatpush1.msra.mxu0 0.0
        %945 = vmatprep.subr.mxu0 0.0
        %946 = vmatpush1.msra.mxu0 0.0
        %947 = vmatprep.subr.mxu0 0.0
        %948 = vmatpush1.msra.mxu0 0.0
        %949 = vmatprep.subr.mxu0 0.0
        %950 = vmatpush1.msra.mxu0 0.0
        %951 = vmatprep.subr.mxu0 0.0
        %952 = vmatpush1.msra.mxu0 0.0
        %953 = vmatprep.subr.mxu0 0.0
        %954 = vmatpush1.msra.mxu0 0.0
        %955 = vmatprep.subr.mxu0 0.0
        %956 = vmatpush1.msra.mxu0 0.0
        %957 = vmatprep.subr.mxu0 0.0
        %958 = vmatpush1.msra.mxu0 0.0
        %959 = vmatprep.subr.mxu0 0.0
        %960 = vmatpush1.msra.mxu0 0.0
        %961 = vmatprep.subr.mxu0 0.0
        %962 = vmatpush1.msra.mxu0 0.0
        %963 = vmatprep.subr.mxu0 0.0
        %964 = vmatpush1.msra.mxu0 0.0
        %965 = vmatprep.subr.mxu0 0.0
        %966 = vmatpush1.msra.mxu0 0.0
        %967 = vmatprep.subr.mxu0 0.0
        %968 = vmatpush1.msra.mxu0 0.0
        %969 = vmatprep.subr.mxu0 0.0
        %970 = vmatpush1.msra.mxu0 0.0
        %971 = vmatprep.subr.mxu0 0.0
        %972 = vmatpush1.msra.mxu0 0.0
        %973 = vmatprep.subr.mxu0 0.0
        %974 = vmatpush1.msra.mxu0 0.0
        %975 = vmatprep.subr.mxu0 0.0
        %976 = vmatpush1.msra.mxu0 0.0
        %977 = vmatprep.subr.mxu0 0.0
        %978 = vmatpush1.msra.mxu0 0.0
        %979 = vmatprep.subr.mxu0 0.0
        %980 = vmatpush1.msra.mxu0 0.0
        %981 = vmatprep.subr.mxu0 0.0
        %982 = vmatpush1.msra.mxu0 0.0
        %983 = vmatprep.mubr.f32.mxu0 0.0
        %984 = vmatmul.mubr.f32.gmra.mrb[0].mxu0 %v917
        %v985 = vpop.f32.mrb[0].mxu0
        %v986 = vadd.f32 0.0, %v985
        %v987 = vpop.f32.mrb[0].mxu0
        %988 = vdwg.mxu0
        %v989 = vadd.f32 %v915, %v986
        %v990 = vxor.u32 %v989, 2147483648
        %v991 = vmul.f32 %v990, 1.442695
        %v992 = vpow.pop %v991
        %v993 = vadd.f32 %v992, 1.0
        %v994 = vrcp.pop %v993
        %v995 = vmul.f32 1.0, %v994
        %v996 = vtanh.pop %v989
        %v997 = vld [vmem:[#allocation3] sm:$0xff]
        %999 = vrot.lane.b32.xlu0 %v997, 32
        %v1000 = vpop.permute.xlu0 %999
        %v1002 = vmul.f32 %v995, %v1000
        %1004 = vrot.lane.b32.xlu0 %v996, 64
        %v1005 = vpop.permute.xlu0 %1004
        %v1007 = vmul.f32 %v995, %v1005
        %1009 = vrot.lane.b32.xlu0 %v1007, 32
        %v1010 = vpop.permute.xlu0 %1009
        %v1012 = vadd.f32 %v1002, %v1010
        %v1013 = vtanh.pop %v1012
        %1015 = vrot.lane.b32.xlu0 %v1013, 64
        %v1016 = vpop.permute.xlu0 %1015
        %v1018 = vmul.f32 %v995, %v1016
        %1020 = vrot.lane.b32.xlu0 %v1012, 96
        %v1021 = vpop.permute.xlu0 %1020
        %1023 = vst.msk [vmem:[#allocation3] sm:$0xff] %vm277, %v1021
        %1025 = vrot.lane.b32.xlu0 %v1018, 32
        %v1026 = vpop.permute.xlu0 %1025
        %1028 = vst.msk [vmem:[#allocation2] sm:$0xff] %vm277, %v1026
        %s1029 = scalar_lea.vmem %s236, 40 [#allocation5]
        %1030 = vst.msk [vmem:[%s1029] sm:$0xff] %vm277, %v1026
        %s1031 = scalar_lea.vmem %s254, 40
        %v1032 = vld [vmem:[%s1031] sm:$0xff]
        %v1033 = vmul.f32 %v393, %v1018
        %1035 = vrot.lane.b32.xlu0 %v1033, 32
        %v1036 = vpop.permute.xlu0 %1035
        %v1038 = vadd.f32 %v1032, %v1036
        %s1039 = scalar_lea.vmem %s261, 40
        %1040 = vst.msk [vmem:[%s1039] sm:$0xff] %vm277, %v1038
        %v1041 = vld [vmem:[#allocation2] sm:$0xff]
        %s1042 = scalar_lea.vmem %s248, 48
        %v1043 = vld [vmem:[%s1042] sm:$0xff]
        %v1045 = vsel %vm277, %v1041, 0
        %1047 = vmatprep.subr.mxu0 0.0
        %1048 = vmatpush1.msra.mxu0 %v271
        %1049 = vmatprep.subr.mxu0 0.0
        %1050 = vmatpush1.msra.mxu0 %v272
        %1051 = vmatprep.subr.mxu0 0.0
        %1052 = vmatpush1.msra.mxu0 %v273
        %1053 = vmatprep.subr.mxu0 0.0
        %1054 = vmatpush1.msra.mxu0 %v274
        %1055 = vmatprep.subr.mxu0 0.0
        %1056 = vmatpush1.msra.mxu0 0.0
        %1057 = vmatprep.subr.mxu0 0.0
        %1058 = vmatpush1.msra.mxu0 0.0
        %1059 = vmatprep.subr.mxu0 0.0
        %1060 = vmatpush1.msra.mxu0 0.0
        %1061 = vmatprep.subr.mxu0 0.0
        %1062 = vmatpush1.msra.mxu0 0.0
        %1063 = vmatprep.subr.mxu0 0.0
        %1064 = vmatpush1.msra.mxu0 0.0
        %1065 = vmatprep.subr.mxu0 0.0
        %1066 = vmatpush1.msra.mxu0 0.0
        %1067 = vmatprep.subr.mxu0 0.0
        %1068 = vmatpush1.msra.mxu0 0.0
        %1069 = vmatprep.subr.mxu0 0.0
        %1070 = vmatpush1.msra.mxu0 0.0
        %1071 = vmatprep.subr.mxu0 0.0
        %1072 = vmatpush1.msra.mxu0 0.0
        %1073 = vmatprep.subr.mxu0 0.0
        %1074 = vmatpush1.msra.mxu0 0.0
        %1075 = vmatprep.subr.mxu0 0.0
        %1076 = vmatpush1.msra.mxu0 0.0
        %1077 = vmatprep.subr.mxu0 0.0
        %1078 = vmatpush1.msra.mxu0 0.0
        %1079 = vmatprep.subr.mxu0 0.0
        %1080 = vmatpush1.msra.mxu0 0.0
        %1081 = vmatprep.subr.mxu0 0.0
        %1082 = vmatpush1.msra.mxu0 0.0
        %1083 = vmatprep.subr.mxu0 0.0
        %1084 = vmatpush1.msra.mxu0 0.0
        %1085 = vmatprep.subr.mxu0 0.0
        %1086 = vmatpush1.msra.mxu0 0.0
        %1087 = vmatprep.subr.mxu0 0.0
        %1088 = vmatpush1.msra.mxu0 0.0
        %1089 = vmatprep.subr.mxu0 0.0
        %1090 = vmatpush1.msra.mxu0 0.0
        %1091 = vmatprep.subr.mxu0 0.0
        %1092 = vmatpush1.msra.mxu0 0.0
        %1093 = vmatprep.subr.mxu0 0.0
        %1094 = vmatpush1.msra.mxu0 0.0
        %1095 = vmatprep.subr.mxu0 0.0
        %1096 = vmatpush1.msra.mxu0 0.0
        %1097 = vmatprep.subr.mxu0 0.0
        %1098 = vmatpush1.msra.mxu0 0.0
        %1099 = vmatprep.subr.mxu0 0.0
        %1100 = vmatpush1.msra.mxu0 0.0
        %1101 = vmatprep.subr.mxu0 0.0
        %1102 = vmatpush1.msra.mxu0 0.0
        %1103 = vmatprep.subr.mxu0 0.0
        %1104 = vmatpush1.msra.mxu0 0.0
        %1105 = vmatprep.subr.mxu0 0.0
        %1106 = vmatpush1.msra.mxu0 0.0
        %1107 = vmatprep.subr.mxu0 0.0
        %1108 = vmatpush1.msra.mxu0 0.0
        %1109 = vmatprep.subr.mxu0 0.0
        %1110 = vmatpush1.msra.mxu0 0.0
        %1111 = vmatprep.mubr.f32.mxu0 0.0
        %1112 = vmatmul.mubr.f32.gmra.mrb[0].mxu0 %v1045
        %v1113 = vpop.f32.mrb[0].mxu0
        %v1114 = vadd.f32 0.0, %v1113
        %v1115 = vpop.f32.mrb[0].mxu0
        %1116 = vdwg.mxu0
        %v1117 = vadd.f32 %v1043, %v1114
        %v1118 = vxor.u32 %v1117, 2147483648
        %v1119 = vmul.f32 %v1118, 1.442695
        %v1120 = vpow.pop %v1119
        %v1121 = vadd.f32 %v1120, 1.0
        %v1122 = vrcp.pop %v1121
        %v1123 = vmul.f32 1.0, %v1122
        %v1124 = vtanh.pop %v1117
        %v1125 = vld [vmem:[#allocation3] sm:$0xff]
        %1127 = vrot.lane.b32.xlu0 %v1125, 32
        %v1128 = vpop.permute.xlu0 %1127
        %v1130 = vmul.f32 %v1123, %v1128
        %1132 = vrot.lane.b32.xlu0 %v1124, 64
        %v1133 = vpop.permute.xlu0 %1132
        %v1135 = vmul.f32 %v1123, %v1133
        %1137 = vrot.lane.b32.xlu0 %v1135, 32
        %v1138 = vpop.permute.xlu0 %1137
        %v1140 = vadd.f32 %v1130, %v1138
        %v1141 = vtanh.pop %v1140
        %1143 = vrot.lane.b32.xlu0 %v1141, 64
        %v1144 = vpop.permute.xlu0 %1143
        %v1146 = vmul.f32 %v1123, %v1144
        %1148 = vrot.lane.b32.xlu0 %v1140, 96
        %v1149 = vpop.permute.xlu0 %1148
        %1151 = vst.msk [vmem:[#allocation3] sm:$0xff] %vm277, %v1149
        %1153 = vrot.lane.b32.xlu0 %v1146, 32
        %v1154 = vpop.permute.xlu0 %1153
        %1156 = vst.msk [vmem:[#allocation2] sm:$0xff] %vm277, %v1154
        %s1157 = scalar_lea.vmem %s236, 48 [#allocation5]
        %1158 = vst.msk [vmem:[%s1157] sm:$0xff] %vm277, %v1154
        %s1159 = scalar_lea.vmem %s254, 48
        %v1160 = vld [vmem:[%s1159] sm:$0xff]
        %v1161 = vmul.f32 %v393, %v1146
        %1163 = vrot.lane.b32.xlu0 %v1161, 32
        %v1164 = vpop.permute.xlu0 %1163
        %v1166 = vadd.f32 %v1160, %v1164
        %s1167 = scalar_lea.vmem %s261, 48
        %1168 = vst.msk [vmem:[%s1167] sm:$0xff] %vm277, %v1166
        %v1169 = vld [vmem:[#allocation2] sm:$0xff]
        %s1170 = scalar_lea.vmem %s248, 56
        %v1171 = vld [vmem:[%s1170] sm:$0xff]
        %v1173 = vsel %vm277, %v1169, 0
        %1175 = vmatprep.subr.mxu0 0.0
        %1176 = vmatpush1.msra.mxu0 %v271
        %1177 = vmatprep.subr.mxu0 0.0
        %1178 = vmatpush1.msra.mxu0 %v272
        %1179 = vmatprep.subr.mxu0 0.0
        %1180 = vmatpush1.msra.mxu0 %v273
        %1181 = vmatprep.subr.mxu0 0.0
        %1182 = vmatpush1.msra.mxu0 %v274
        %1183 = vmatprep.subr.mxu0 0.0
        %1184 = vmatpush1.msra.mxu0 0.0
        %1185 = vmatprep.subr.mxu0 0.0
        %1186 = vmatpush1.msra.mxu0 0.0
        %1187 = vmatprep.subr.mxu0 0.0
        %1188 = vmatpush1.msra.mxu0 0.0
        %1189 = vmatprep.subr.mxu0 0.0
        %1190 = vmatpush1.msra.mxu0 0.0
        %1191 = vmatprep.subr.mxu0 0.0
        %1192 = vmatpush1.msra.mxu0 0.0
        %1193 = vmatprep.subr.mxu0 0.0
        %1194 = vmatpush1.msra.mxu0 0.0
        %1195 = vmatprep.subr.mxu0 0.0
        %1196 = vmatpush1.msra.mxu0 0.0
        %1197 = vmatprep.subr.mxu0 0.0
        %1198 = vmatpush1.msra.mxu0 0.0
        %1199 = vmatprep.subr.mxu0 0.0
        %1200 = vmatpush1.msra.mxu0 0.0
        %1201 = vmatprep.subr.mxu0 0.0
        %1202 = vmatpush1.msra.mxu0 0.0
        %1203 = vmatprep.subr.mxu0 0.0
        %1204 = vmatpush1.msra.mxu0 0.0
        %1205 = vmatprep.subr.mxu0 0.0
        %1206 = vmatpush1.msra.mxu0 0.0
        %1207 = vmatprep.subr.mxu0 0.0
        %1208 = vmatpush1.msra.mxu0 0.0
        %1209 = vmatprep.subr.mxu0 0.0
        %1210 = vmatpush1.msra.mxu0 0.0
        %1211 = vmatprep.subr.mxu0 0.0
        %1212 = vmatpush1.msra.mxu0 0.0
        %1213 = vmatprep.subr.mxu0 0.0
        %1214 = vmatpush1.msra.mxu0 0.0
        %1215 = vmatprep.subr.mxu0 0.0
        %1216 = vmatpush1.msra.mxu0 0.0
        %1217 = vmatprep.subr.mxu0 0.0
        %1218 = vmatpush1.msra.mxu0 0.0
        %1219 = vmatprep.subr.mxu0 0.0
        %1220 = vmatpush1.msra.mxu0 0.0
        %1221 = vmatprep.subr.mxu0 0.0
        %1222 = vmatpush1.msra.mxu0 0.0
        %1223 = vmatprep.subr.mxu0 0.0
        %1224 = vmatpush1.msra.mxu0 0.0
        %1225 = vmatprep.subr.mxu0 0.0
        %1226 = vmatpush1.msra.mxu0 0.0
        %1227 = vmatprep.subr.mxu0 0.0
        %1228 = vmatpush1.msra.mxu0 0.0
        %1229 = vmatprep.subr.mxu0 0.0
        %1230 = vmatpush1.msra.mxu0 0.0
        %1231 = vmatprep.subr.mxu0 0.0
        %1232 = vmatpush1.msra.mxu0 0.0
        %1233 = vmatprep.subr.mxu0 0.0
        %1234 = vmatpush1.msra.mxu0 0.0
        %1235 = vmatprep.subr.mxu0 0.0
        %1236 = vmatpush1.msra.mxu0 0.0
        %1237 = vmatprep.subr.mxu0 0.0
        %1238 = vmatpush1.msra.mxu0 0.0
        %1239 = vmatprep.mubr.f32.mxu0 0.0
        %1240 = vmatmul.mubr.f32.gmra.mrb[0].mxu0 %v1173
        %v1241 = vpop.f32.mrb[0].mxu0
        %v1242 = vadd.f32 0.0, %v1241
        %v1243 = vpop.f32.mrb[0].mxu0
        %1244 = vdwg.mxu0
        %v1245 = vadd.f32 %v1171, %v1242
        %v1246 = vxor.u32 %v1245, 2147483648
        %v1247 = vmul.f32 %v1246, 1.442695
        %v1248 = vpow.pop %v1247
        %v1249 = vadd.f32 %v1248, 1.0
        %v1250 = vrcp.pop %v1249
        %v1251 = vmul.f32 1.0, %v1250
        %v1252 = vtanh.pop %v1245
        %v1253 = vld [vmem:[#allocation3] sm:$0xff]
        %1255 = vrot.lane.b32.xlu0 %v1253, 32
        %v1256 = vpop.permute.xlu0 %1255
        %v1258 = vmul.f32 %v1251, %v1256
        %1260 = vrot.lane.b32.xlu0 %v1252, 64
        %v1261 = vpop.permute.xlu0 %1260
        %v1263 = vmul.f32 %v1251, %v1261
        %1265 = vrot.lane.b32.xlu0 %v1263, 32
        %v1266 = vpop.permute.xlu0 %1265
        %v1268 = vadd.f32 %v1258, %v1266
        %v1269 = vtanh.pop %v1268
        %1271 = vrot.lane.b32.xlu0 %v1269, 64
        %v1272 = vpop.permute.xlu0 %1271
        %v1274 = vmul.f32 %v1251, %v1272
        %1276 = vrot.lane.b32.xlu0 %v1268, 96
        %v1277 = vpop.permute.xlu0 %1276
        %1279 = vst.msk [vmem:[#allocation3] sm:$0xff] %vm277, %v1277
        %1281 = vrot.lane.b32.xlu0 %v1274, 32
        %v1282 = vpop.permute.xlu0 %1281
        %1284 = vst.msk [vmem:[#allocation2] sm:$0xff] %vm277, %v1282
        %s1285 = scalar_lea.vmem %s236, 56 [#allocation5]
        %1286 = vst.msk [vmem:[%s1285] sm:$0xff] %vm277, %v1282
        %s1287 = scalar_lea.vmem %s254, 56
        %v1288 = vld [vmem:[%s1287] sm:$0xff]
        %v1289 = vmul.f32 %v393, %v1274
        %1291 = vrot.lane.b32.xlu0 %v1289, 32
        %v1292 = vpop.permute.xlu0 %1291
        %v1294 = vadd.f32 %v1288, %v1292
        %s1295 = scalar_lea.vmem %s261, 56
        %1296 = vst.msk [vmem:[%s1295] sm:$0xff] %vm277, %v1294
        %s1297 = sand.u32 %s123, 1
        %s1298 = scalar_lea.sflag [#allocation6], %s1297
        %s1299 = sand.u32 %s123, 1
        %s1300 = smul.addr %s1299, 64
        %s1301 = scalar_lea.vmem [#allocation5], %s1300
        %s1302 = smul.u32 8, %s21
        %p1303 = scmp.lt.s32.totalorder %s1302, 15
        %s1304 = scalar_select %p1303, %s1302, 15
        %s1305 = smul.addr %s1304, 8
        %s1306 = scalar_lea.vmem %s5, %s1305
        // Predicated region
        $region41: #{ernn_forward.7} parent=35 // pred_check
          %p1307 = pneg %p133
        $region42: #{ernn_forward.7} parent=35 // pred_check_branch
          %1309 = sbr.rel (%p1307) target = $region44
        $region43: #{ernn_forward.7} parent=35 // pred_region
          %s1310 = smul.u32 8, %s21
          %s1312 = ssub.s32 1024, 1024
          %1313 = vsyncadd %s1298, %s1312
          %s1314 = smul.addr %s1310, 128
          %s1315 = scalar_lea.hbm %s4, %s1314
          %s1316 = sshll.u32 %s1301, 4
          %s1317 = int_to_ptr.vmem [resolvable:$true] %s1316
          %1322 = dma.vmem_to_hbm [thread:$0]  %s1317, 1024, %s1315, %s1298, 128, 128, 8
        $region44: #{ernn_forward.7} parent=35 // pred_fallthru
          _
        // Predicated region
        $region45: #{ernn_forward.7} parent=35 // pred_check
          %p1323 = pneg %p159
        $region46: #{ernn_forward.7} parent=35 // pred_check_branch
          %1325 = sbr.rel (%p1323) target = $region48
        $region47: #{ernn_forward.7} parent=35 // pred_region
          %s1326 = smul.u32 8, %s21
        $region48: #{ernn_forward.7} parent=35 // pred_fallthru
          _
      $region36: #{ernn_forward.7} parent=5 // pred_fallthru
        _
      %p1327 = scmp.le.s32.totalorder 2, %s16
      // Predicated region
      $region49: #{ernn_forward.7} parent=5 // pred_check
        %p1328 = pneg %p1327
      $region50: #{ernn_forward.7} parent=5 // pred_check_branch
        %1330 = sbr.rel (%p1328) target = $region52
      $region51: #{ernn_forward.7} parent=5 // pred_region
        %s1331 = ssub.s32 %s16, 2
        // Predicated region
        $region53: #{ernn_forward.7} parent=51 // pred_check
          %p1332 = pneg %p139
        $region54: #{ernn_forward.7} parent=51 // pred_check_branch
          %1334 = sbr.rel (%p1332) target = $region56
        $region55: #{ernn_forward.7} parent=51 // pred_region
          %s1335 = sand.u32 %s124, 1
          %s1336 = scalar_lea.sflag [#allocation6], %s1335
          %s1337 = sand.u32 %s124, 1
          %s1338 = smul.addr %s1337, 64
          %s1339 = scalar_lea.vmem [#allocation5], %s1338
          %1340 = dma.done %s1336, 1024
        $region56: #{ernn_forward.7} parent=51 // pred_fallthru
          _
        // Predicated region
        $region57: #{ernn_forward.7} parent=51 // pred_check
          %p1341 = pneg %p165
        $region58: #{ernn_forward.7} parent=51 // pred_check_branch
          %1343 = sbr.rel (%p1341) target = $region60
        $region59: #{ernn_forward.7} parent=51 // pred_region
          %s1344 = smul.u32 8, %s22
          %p1345 = scmp.lt.s32.totalorder %s1344, 15
          %s1346 = scalar_select %p1345, %s1344, 15
          %s1347 = smul.addr %s1346, 8
          %s1348 = scalar_lea.vmem %s5, %s1347
        $region60: #{ernn_forward.7} parent=51 // pred_fallthru
          _
      $region52: #{ernn_forward.7} parent=5 // pred_fallthru
        _
    $region6: #{ernn_forward.7} parent=1 // loop_footer
      %s20 = sadd.s32 1, %s16
    $region7: #{ernn_forward.7} parent=1 // loop_footer_branch
      %15 = sbr.rel target = $region3
    $region8: #{ernn_forward.7} parent=1 // loop_exit
      _
    %1349 = vsyncpa [#allocation6], 1
    %s1350 = scalar_lea.sflag [#allocation6], 1
    %1351 = vsyncpa %s1350, 1

</llo_original>
